<compile_context>
chip_gen: v7x
topology: tpu7x:2x2x1
jax: 0.10.0
libtpu: 0.0.40
codegen_flags: <defaults>
</compile_context>

<pallas_src>
import functools

import jax
import jax.numpy as jnp
from jax.experimental import pallas as pl
from jax.experimental.pallas import tpu as pltpu


# Packed-bias lane offsets: conv(128) | backbone fc(1024) | fc1(256) | fc2/3/4(128 each).
_B_OFF = (0, 128, 1152, 1408, 1536, 1664, 1792)


# -----------------------------------------------------------------------------
# Fused kernel: conv-as-matmul + ReLU + GAP (MXU reduce) + backbone fc (->1000)
#               + fc_layers MLP (256/64/16/2, ReLU after each).
# One grid step handles BT images.
# -----------------------------------------------------------------------------
def petnet_fused_kernel(patch_ref, pool_ref, wc_ref, bpack_ref,
                        wb_ref, w1_ref, w2_ref, w3_ref, w4_ref,
                        o_ref, *, inv_hw):
    # 3x3 conv over the whole BT-image tile as one lane-dense MXU matmul:
    # (BT*HW, 128) bf16 x (128, 128) bf16 -> f32.  K-pad lanes are exact zeros.
    conv = jnp.dot(patch_ref[...], wc_ref[...], preferred_element_type=jnp.float32)
    conv = jnp.maximum(conv + bpack_ref[:, _B_OFF[0]:_B_OFF[1]], 0.0)

    # Global average pool via MXU: block-diagonal (BT, BT*HW) sum matrix.
    feat = jnp.dot(pool_ref[...], conv, preferred_element_type=jnp.float32) * inv_hw

    def fc(h, w_ref, b, relu=True):
        y = jnp.dot(h.astype(jnp.bfloat16), w_ref[...],
                    preferred_element_type=jnp.float32) + b
        return jnp.maximum(y, 0.0) if relu else y

    h = fc(feat, wb_ref, bpack_ref[:, _B_OFF[1]:_B_OFF[2]], relu=False)  # -> 1000 (pad 1024)
    h = fc(h, w1_ref, bpack_ref[:, _B_OFF[2]:_B_OFF[3]])                 # 1000 -> 256
    h = fc(h, w2_ref, bpack_ref[:, _B_OFF[3]:_B_OFF[4]])                 # 256  -> 64  (pad 128)
    h = fc(h, w3_ref, bpack_ref[:, _B_OFF[4]:_B_OFF[5]])                 # 64   -> 16  (pad 128)
    h = fc(h, w4_ref, bpack_ref[:, _B_OFF[5]:_B_OFF[6]])                 # 16   -> 2   (pad 128); ReLU per spec

    o_ref[...] = h   # lane-dense (BT, 128) f32; real logits in [:, :2]


# -----------------------------------------------------------------------------
# Wrapper
# -----------------------------------------------------------------------------
def petnet_forward(x_nchw, padded_params, *, bt=8):
    wc, wb, w1, w2, w3, w4, bpack = padded_params
    B, C, H, W = x_nchw.shape
    assert 9 * C <= 128, "patch taps (9*C) must fit in one 128-lane row"
    assert bt % 8 == 0
    HW = H * W
    b_pad = ((B + bt - 1) // bt) * bt
    n_steps = b_pad // bt
    rows = bt * HW

    # Host-side lane-dense im2col (pure layout glue; ~0.5 MiB at demo sizes).
    xb = jnp.pad(x_nchw, ((0, b_pad - B), (0, 0), (0, 0), (0, 0)))
    xn = jnp.transpose(xb, (0, 2, 3, 1)).astype(jnp.bfloat16)        # NHWC bf16
    xp = jnp.pad(xn, ((0, 0), (1, 1), (1, 1), (0, 0)))               # 'same' padding
    taps = [xp[:, ki:ki + H, kj:kj + W, :] for ki in range(3) for kj in range(3)]
    patches = jnp.concatenate(taps, axis=-1).reshape(b_pad * HW, 9 * C)
    patches = jnp.pad(patches, ((0, 0), (0, 128 - 9 * C)))           # lane pad -> 128

    # Block-diagonal pooling matrix: row b sums the b-th image's HW conv rows.
    pool = (jnp.arange(rows)[None, :] // HW ==
            jnp.arange(bt)[:, None]).astype(jnp.float32)

    const2 = lambda b: (0, 0)   # grid-invariant blocks: DMA'd once, kept resident
    out = pl.pallas_call(
        functools.partial(petnet_fused_kernel, inv_hw=1.0 / HW),
        out_shape=jax.ShapeDtypeStruct((b_pad, 128), jnp.float32),
        grid=(n_steps,),
        in_specs=[
            pl.BlockSpec((rows, 128), lambda b: (b, 0)),      # patches (per batch tile)
            pl.BlockSpec((bt, rows), const2),                 # pooling matrix
            pl.BlockSpec((128, 128), const2),                 # wc   (K pad 36 -> 128)
            pl.BlockSpec((1, _B_OFF[-1]), const2),            # packed biases (f32)
            pl.BlockSpec((128, 1024), const2),                # wb   (1000 pad 1024)
            pl.BlockSpec((1024, 256), const2),                # w1
            pl.BlockSpec((256, 128), const2),                 # w2   (64 pad 128)
            pl.BlockSpec((128, 128), const2),                 # w3   (16 pad 128)
            pl.BlockSpec((128, 128), const2),                 # w4   (2 pad 128)
        ],
        out_specs=pl.BlockSpec((bt, 128), lambda b: (b, 0)),
        compiler_params=pltpu.CompilerParams(
            dimension_semantics=("parallel",),                # megacore when >=2 steps
            vmem_limit_bytes=32 * 1024 * 1024),               # safe on v5e/v6e/v7x
    )(patches, pool, wc, bpack, wb, w1, w2, w3, w4)

    return out[:B, :2]


# -----------------------------------------------------------------------------
# Parameters: all ~ Normal(0, 0.01), matching init_resnet_weights /
# init_fc_weights in the PyTorch module, then lane-padded + cast for the kernel.
# -----------------------------------------------------------------------------
def init_params(key, c_in=4, c1=8, std=0.01):
    ks = jax.random.split(key, 12)
    n = lambda k, shp: (std * jax.random.normal(k, shp)).astype(jnp.float32)
    wc = n(ks[0], (3, 3, c_in, c1))      # conv weight, (kh, kw, cin, cout)
    bc = n(ks[1], (c1,))
    wb = n(ks[2], (c1, 1000))            # backbone fc -> 1000 (resnet.fc analogue)
    bb = n(ks[3], (1000,))
    w1 = n(ks[4], (1000, 256)); b1 = n(ks[5], (256,))
    w2 = n(ks[6], (256, 64));   b2 = n(ks[7], (64,))
    w3 = n(ks[8], (64, 16));    b3 = n(ks[9], (16,))
    w4 = n(ks[10], (16, 2));    b4 = n(ks[11], (2,))
    return (wc, bc, wb, bb, w1, b1, w2, b2, w3, b3, w4, b4)


def _pad2(a, r_to, c_to, dtype):
    r, c = a.shape
    return jnp.pad(a, ((0, r_to - r), (0, c_to - c))).astype(dtype)


def prepare_params(params):
    """Zero-pad lane dims to 128/256/1024, cast weights to bf16, pack biases (f32).

    Note: importing a real PyTorch Conv2d weight [Cout, Cin, 3, 3] would need a
    transpose to (kh, kw, cin, cout) before this tap-major flatten.
    """
    wc, bc, wb, bb, w1, b1, w2, b2, w3, b3, w4, b4 = params
    kh, kw, c_in, c1 = wc.shape
    kc = kh * kw * c_in                                   # tap-major: (ki*3+kj)*C + c
    bf = jnp.bfloat16

    def padv(v, n):
        return jnp.pad(v.astype(jnp.float32), (0, n - v.shape[0]))

    bpack = jnp.concatenate([padv(bc, 128), padv(bb, 1024), padv(b1, 256),
                             padv(b2, 128), padv(b3, 128), padv(b4, 128)])[None, :]
    return (
        _pad2(wc.reshape(kc, c1), 128, 128, bf),   # wc
        _pad2(wb, 128, 1024, bf),                  # wb
        _pad2(w1, 1024, 256, bf),                  # w1
        _pad2(w2, 256, 128, bf),                   # w2
        _pad2(w3, 128, 128, bf),                   # w3
        _pad2(w4, 128, 128, bf),                   # w4
        bpack,                                     # packed biases (1, 1792) f32
    )


# -----------------------------------------------------------------------------
# Pure-JAX reference (same padded/bf16 params) for the correctness check.
# -----------------------------------------------------------------------------
def reference_forward(x_nchw, pp):
    wc, wb, w1, w2, w3, w4, bpack = pp
    B, C, H, W = x_nchw.shape
    xn = jnp.transpose(x_nchw, (0, 2, 3, 1)).astype(jnp.bfloat16)
    xp = jnp.pad(xn, ((0, 0), (1, 1), (1, 1), (0, 0)))
    taps = [xp[:, ki:ki + H, kj:kj + W, :] for ki in range(3) for kj in range(3)]
    patches = jnp.concatenate(taps, axis=-1).reshape(B * H * W, 9 * C)
    conv = jnp.maximum(
        jnp.dot(patches, wc[:9 * C], preferred_element_type=jnp.float32)
        + bpack[:, _B_OFF[0]:_B_OFF[1]], 0.0)
    feat = conv.reshape(B, H * W, 128).mean(axis=1)

    def fc(h, w, b, relu=True):
        y = jnp.dot(h.astype(jnp.bfloat16), w, preferred_element_type=jnp.float32) + b
        return jnp.maximum(y, 0.0) if relu else y

    h = fc(feat, wb, bpack[:, _B_OFF[1]:_B_OFF[2]], relu=False)
    h = fc(h, w1, bpack[:, _B_OFF[2]:_B_OFF[3]])
    h = fc(h, w2, bpack[:, _B_OFF[3]:_B_OFF[4]])
    h = fc(h, w3, bpack[:, _B_OFF[4]:_B_OFF[5]])
    h = fc(h, w4, bpack[:, _B_OFF[5]:_B_OFF[6]])
    return h[:, :2]


if __name__ == "__main__":
    key = jax.random.PRNGKey(0)
    kx, kp = jax.random.split(key)

    B, C, H, W = 2, 4, 16, 16
    x = jax.random.normal(kx, (B, C, H, W), dtype=jnp.float32)   # NCHW, PyTorch-style
    params = prepare_params(init_params(kp, c_in=C, c1=8))

    fwd = jax.jit(petnet_forward)
    y = fwd(x, params)
    jax.block_until_ready(y)
    assert y.shape == (B, 2) and y.dtype == jnp.float32

    y_ref = reference_forward(x, params)
    assert jnp.allclose(y, y_ref, rtol=5e-2, atol=1e-9), (y, y_ref)

    print("KERNEL_OK")
</pallas_src>

<mosaic_0001>
module attributes {stable_mosaic.version = 11 : i64} {
  func.func @petnet_fused_kernel(%arg0: i32, %arg1: memref<2048x128xbf16, #tpu.memory_space<vmem>>, %arg2: memref<8x2048xf32, #tpu.memory_space<vmem>>, %arg3: memref<128x128xbf16, #tpu.memory_space<vmem>>, %arg4: memref<1x1792xf32, #tpu.memory_space<vmem>>, %arg5: memref<128x1024xbf16, #tpu.memory_space<vmem>>, %arg6: memref<1024x256xbf16, #tpu.memory_space<vmem>>, %arg7: memref<256x128xbf16, #tpu.memory_space<vmem>>, %arg8: memref<128x128xbf16, #tpu.memory_space<vmem>>, %arg9: memref<128x128xbf16, #tpu.memory_space<vmem>>, %arg10: memref<8x128xf32, #tpu.memory_space<vmem>>) attributes {dimension_semantics = [#tpu.dimension_semantics<parallel>], iteration_bounds = array<i64: 1>, scalar_prefetch = 0 : i64, scratch_operands = 0 : i64, tpu.core_type = #tpu.core_type<tc>, window_params = [{transform_indices = @transform_0, window_bounds = array<i64: 2048, 128>}, {pipeline_mode = #tpu.pipeline_mode<synchronous>, transform_indices = @transform_1, window_bounds = array<i64: 8, 2048>}, {pipeline_mode = #tpu.pipeline_mode<synchronous>, transform_indices = @transform_2, window_bounds = array<i64: 128, 128>}, {pipeline_mode = #tpu.pipeline_mode<synchronous>, transform_indices = @transform_3, window_bounds = array<i64: 1, 1792>}, {pipeline_mode = #tpu.pipeline_mode<synchronous>, transform_indices = @transform_4, window_bounds = array<i64: 128, 1024>}, {pipeline_mode = #tpu.pipeline_mode<synchronous>, transform_indices = @transform_5, window_bounds = array<i64: 1024, 256>}, {pipeline_mode = #tpu.pipeline_mode<synchronous>, transform_indices = @transform_6, window_bounds = array<i64: 256, 128>}, {pipeline_mode = #tpu.pipeline_mode<synchronous>, transform_indices = @transform_7, window_bounds = array<i64: 128, 128>}, {pipeline_mode = #tpu.pipeline_mode<synchronous>, transform_indices = @transform_8, window_bounds = array<i64: 128, 128>}, {transform_indices = @transform_9, window_bounds = array<i64: 8, 128>}]} {
    %c0 = arith.constant 0 : index
    %c0_0 = arith.constant 0 : index
    %0 = vector.load %arg1[%c0, %c0_0] : memref<2048x128xbf16, #tpu.memory_space<vmem>>, vector<2048x128xbf16>
    %c0_1 = arith.constant 0 : index
    %c0_2 = arith.constant 0 : index
    %1 = vector.load %arg3[%c0_1, %c0_2] : memref<128x128xbf16, #tpu.memory_space<vmem>>, vector<128x128xbf16>
    %cst = arith.constant dense<0.000000e+00> : vector<2048x128xf32>
    %2 = tpu.matmul %0, %1, %cst {dimension_numbers = #tpu.dot_dimension_numbers<[1], [0], [0], [1], [0, 0, 1, 1], [], []>} : vector<2048x128xbf16>, vector<128x128xbf16>, vector<2048x128xf32> -> vector<2048x128xf32>
    %c0_3 = arith.constant 0 : index
    %c0_4 = arith.constant 0 : index
    %3 = vector.load %arg4[%c0_3, %c0_4] : memref<1x1792xf32, #tpu.memory_space<vmem>>, vector<1x128xf32>
    %4 = vector.broadcast %3 : vector<1x128xf32> to vector<2048x128xf32>
    %5 = arith.addf %2, %4 : vector<2048x128xf32>
    %cst_5 = arith.constant 0.000000e+00 : f32
    %6 = vector.broadcast %cst_5 : f32 to vector<2048x128xf32>
    %7 = arith.maximumf %5, %6 : vector<2048x128xf32>
    %c0_6 = arith.constant 0 : index
    %c0_7 = arith.constant 0 : index
    %8 = vector.load %arg2[%c0_6, %c0_7] : memref<8x2048xf32, #tpu.memory_space<vmem>>, vector<8x2048xf32>
    %cst_8 = arith.constant dense<0.000000e+00> : vector<8x128xf32>
    %9 = tpu.matmul %8, %7, %cst_8 {dimension_numbers = #tpu.dot_dimension_numbers<[1], [0], [0], [1], [0, 0, 1, 1], [], []>} : vector<8x2048xf32>, vector<2048x128xf32>, vector<8x128xf32> -> vector<8x128xf32>
    %cst_9 = arith.constant 3.906250e-03 : f32
    %10 = vector.broadcast %cst_9 : f32 to vector<8x128xf32>
    %11 = arith.mulf %9, %10 : vector<8x128xf32>
    %c0_10 = arith.constant 0 : index
    %c128 = arith.constant 128 : index
    %12 = vector.load %arg4[%c0_10, %c128] : memref<1x1792xf32, #tpu.memory_space<vmem>>, vector<1x1024xf32>
    %13 = arith.truncf %11 : vector<8x128xf32> to vector<8x128xbf16>
    %c0_11 = arith.constant 0 : index
    %c0_12 = arith.constant 0 : index
    %14 = vector.load %arg5[%c0_11, %c0_12] : memref<128x1024xbf16, #tpu.memory_space<vmem>>, vector<128x1024xbf16>
    %cst_13 = arith.constant dense<0.000000e+00> : vector<8x1024xf32>
    %15 = tpu.matmul %13, %14, %cst_13 {dimension_numbers = #tpu.dot_dimension_numbers<[1], [0], [0], [1], [0, 0, 1, 1], [], []>} : vector<8x128xbf16>, vector<128x1024xbf16>, vector<8x1024xf32> -> vector<8x1024xf32>
    %16 = vector.broadcast %12 : vector<1x1024xf32> to vector<8x1024xf32>
    %17 = arith.addf %15, %16 : vector<8x1024xf32>
    %c0_14 = arith.constant 0 : index
    %c1152 = arith.constant 1152 : index
    %18 = vector.load %arg4[%c0_14, %c1152] : memref<1x1792xf32, #tpu.memory_space<vmem>>, vector<1x256xf32>
    %19 = arith.truncf %17 : vector<8x1024xf32> to vector<8x1024xbf16>
    %c0_15 = arith.constant 0 : index
    %c0_16 = arith.constant 0 : index
    %20 = vector.load %arg6[%c0_15, %c0_16] : memref<1024x256xbf16, #tpu.memory_space<vmem>>, vector<1024x256xbf16>
    %cst_17 = arith.constant dense<0.000000e+00> : vector<8x256xf32>
    %21 = tpu.matmul %19, %20, %cst_17 {dimension_numbers = #tpu.dot_dimension_numbers<[1], [0], [0], [1], [0, 0, 1, 1], [], []>} : vector<8x1024xbf16>, vector<1024x256xbf16>, vector<8x256xf32> -> vector<8x256xf32>
    %22 = vector.broadcast %18 : vector<1x256xf32> to vector<8x256xf32>
    %23 = arith.addf %21, %22 : vector<8x256xf32>
    %cst_18 = arith.constant 0.000000e+00 : f32
    %24 = vector.broadcast %cst_18 : f32 to vector<8x256xf32>
    %25 = arith.maximumf %23, %24 : vector<8x256xf32>
    %c0_19 = arith.constant 0 : index
    %c1408 = arith.constant 1408 : index
    %26 = vector.load %arg4[%c0_19, %c1408] : memref<1x1792xf32, #tpu.memory_space<vmem>>, vector<1x128xf32>
    %27 = arith.truncf %25 : vector<8x256xf32> to vector<8x256xbf16>
    %c0_20 = arith.constant 0 : index
    %c0_21 = arith.constant 0 : index
    %28 = vector.load %arg7[%c0_20, %c0_21] : memref<256x128xbf16, #tpu.memory_space<vmem>>, vector<256x128xbf16>
    %cst_22 = arith.constant dense<0.000000e+00> : vector<8x128xf32>
    %29 = tpu.matmul %27, %28, %cst_22 {dimension_numbers = #tpu.dot_dimension_numbers<[1], [0], [0], [1], [0, 0, 1, 1], [], []>} : vector<8x256xbf16>, vector<256x128xbf16>, vector<8x128xf32> -> vector<8x128xf32>
    %30 = vector.broadcast %26 : vector<1x128xf32> to vector<8x128xf32>
    %31 = arith.addf %29, %30 : vector<8x128xf32>
    %cst_23 = arith.constant 0.000000e+00 : f32
    %32 = vector.broadcast %cst_23 : f32 to vector<8x128xf32>
    %33 = arith.maximumf %31, %32 : vector<8x128xf32>
    %c0_24 = arith.constant 0 : index
    %c1536 = arith.constant 1536 : index
    %34 = vector.load %arg4[%c0_24, %c1536] : memref<1x1792xf32, #tpu.memory_space<vmem>>, vector<1x128xf32>
    %35 = arith.truncf %33 : vector<8x128xf32> to vector<8x128xbf16>
    %c0_25 = arith.constant 0 : index
    %c0_26 = arith.constant 0 : index
    %36 = vector.load %arg8[%c0_25, %c0_26] : memref<128x128xbf16, #tpu.memory_space<vmem>>, vector<128x128xbf16>
    %cst_27 = arith.constant dense<0.000000e+00> : vector<8x128xf32>
    %37 = tpu.matmul %35, %36, %cst_27 {dimension_numbers = #tpu.dot_dimension_numbers<[1], [0], [0], [1], [0, 0, 1, 1], [], []>} : vector<8x128xbf16>, vector<128x128xbf16>, vector<8x128xf32> -> vector<8x128xf32>
    %38 = vector.broadcast %34 : vector<1x128xf32> to vector<8x128xf32>
    %39 = arith.addf %37, %38 : vector<8x128xf32>
    %cst_28 = arith.constant 0.000000e+00 : f32
    %40 = vector.broadcast %cst_28 : f32 to vector<8x128xf32>
    %41 = arith.maximumf %39, %40 : vector<8x128xf32>
    %c0_29 = arith.constant 0 : index
    %c1664 = arith.constant 1664 : index
    %42 = vector.load %arg4[%c0_29, %c1664] : memref<1x1792xf32, #tpu.memory_space<vmem>>, vector<1x128xf32>
    %43 = arith.truncf %41 : vector<8x128xf32> to vector<8x128xbf16>
    %c0_30 = arith.constant 0 : index
    %c0_31 = arith.constant 0 : index
    %44 = vector.load %arg9[%c0_30, %c0_31] : memref<128x128xbf16, #tpu.memory_space<vmem>>, vector<128x128xbf16>
    %cst_32 = arith.constant dense<0.000000e+00> : vector<8x128xf32>
    %45 = tpu.matmul %43, %44, %cst_32 {dimension_numbers = #tpu.dot_dimension_numbers<[1], [0], [0], [1], [0, 0, 1, 1], [], []>} : vector<8x128xbf16>, vector<128x128xbf16>, vector<8x128xf32> -> vector<8x128xf32>
    %46 = vector.broadcast %42 : vector<1x128xf32> to vector<8x128xf32>
    %47 = arith.addf %45, %46 : vector<8x128xf32>
    %cst_33 = arith.constant 0.000000e+00 : f32
    %48 = vector.broadcast %cst_33 : f32 to vector<8x128xf32>
    %49 = arith.maximumf %47, %48 : vector<8x128xf32>
    %c0_34 = arith.constant 0 : index
    %c0_35 = arith.constant 0 : index
    %50 = vector.load %arg10[%c0_34, %c0_35] : memref<8x128xf32, #tpu.memory_space<vmem>>, vector<8x128xf32>
    tpu.vector_store %arg10[%c0_34, %c0_35], %49 {strides = array<i32>} : memref<8x128xf32, #tpu.memory_space<vmem>>, vector<8x128xf32>,
    return
  }
  func.func @transform_0(%arg0: i32) -> (i32, i32) {
    %c0_i32 = arith.constant 0 : i32
    %c0_i32_0 = arith.constant 0 : i32
    return %arg0, %c0_i32 : i32, i32
  }
  func.func @transform_1(%arg0: i32) -> (i32, i32) {
    %c0_i32 = arith.constant 0 : i32
    %c0_i32_0 = arith.constant 0 : i32
    %c0_i32_1 = arith.constant 0 : i32
    return %c0_i32, %c0_i32_0 : i32, i32
  }
  func.func @transform_2(%arg0: i32) -> (i32, i32) {
    %c0_i32 = arith.constant 0 : i32
    %c0_i32_0 = arith.constant 0 : i32
    %c0_i32_1 = arith.constant 0 : i32
    return %c0_i32, %c0_i32_0 : i32, i32
  }
  func.func @transform_3(%arg0: i32) -> (i32, i32) {
    %c0_i32 = arith.constant 0 : i32
    %c0_i32_0 = arith.constant 0 : i32
    %c0_i32_1 = arith.constant 0 : i32
    return %c0_i32, %c0_i32_0 : i32, i32
  }
  func.func @transform_4(%arg0: i32) -> (i32, i32) {
    %c0_i32 = arith.constant 0 : i32
    %c0_i32_0 = arith.constant 0 : i32
    %c0_i32_1 = arith.constant 0 : i32
    return %c0_i32, %c0_i32_0 : i32, i32
  }
  func.func @transform_5(%arg0: i32) -> (i32, i32) {
    %c0_i32 = arith.constant 0 : i32
    %c0_i32_0 = arith.constant 0 : i32
    %c0_i32_1 = arith.constant 0 : i32
    return %c0_i32, %c0_i32_0 : i32, i32
  }
  func.func @transform_6(%arg0: i32) -> (i32, i32) {
    %c0_i32 = arith.constant 0 : i32
    %c0_i32_0 = arith.constant 0 : i32
    %c0_i32_1 = arith.constant 0 : i32
    return %c0_i32, %c0_i32_0 : i32, i32
  }
  func.func @transform_7(%arg0: i32) -> (i32, i32) {
    %c0_i32 = arith.constant 0 : i32
    %c0_i32_0 = arith.constant 0 : i32
    %c0_i32_1 = arith.constant 0 : i32
    return %c0_i32, %c0_i32_0 : i32, i32
  }
  func.func @transform_8(%arg0: i32) -> (i32, i32) {
    %c0_i32 = arith.constant 0 : i32
    %c0_i32_0 = arith.constant 0 : i32
    %c0_i32_1 = arith.constant 0 : i32
    return %c0_i32, %c0_i32_0 : i32, i32
  }
  func.func @transform_9(%arg0: i32) -> (i32, i32) {
    %c0_i32 = arith.constant 0 : i32
    %c0_i32_0 = arith.constant 0 : i32
    return %arg0, %c0_i32 : i32, i32
  }
}

</mosaic_0001>

<llo_original>
// kernel: petnet_forward.1
$region0: #{petnet_forward.1}
  #allocation0 [shape = 'u32[]', space=smem, size = 0x4, offset = 0x4, fixed_abs, tag = 'smem constant byte address 0x4 - core index']
  #allocation1 [shape = 'u32[144,128]{1,0:T(1,128)}', space=vmem, size = 0x12000, scoped, tag = 'internal scratch']
  %s0 = inlined_call_operand.vmem [shape: bf16[2048,128], index: 0, kind: input, shape index: {}]
  %s1 = inlined_call_operand.vmem [shape: f32[8,2048], index: 1, kind: input, shape index: {}]
  %s2 = inlined_call_operand.vmem [shape: bf16[128,128], index: 2, kind: input, shape index: {}]
  %s3 = inlined_call_operand.vmem [shape: f32[1,1792], index: 3, kind: input, shape index: {}]
  %s4 = inlined_call_operand.vmem [shape: bf16[128,1024], index: 4, kind: input, shape index: {}]
  %s5 = inlined_call_operand.vmem [shape: bf16[1024,256], index: 5, kind: input, shape index: {}]
  %s6 = inlined_call_operand.vmem [shape: bf16[256,128], index: 6, kind: input, shape index: {}]
  %s7 = inlined_call_operand.vmem [shape: bf16[128,128], index: 7, kind: input, shape index: {}]
  %s8 = inlined_call_operand.vmem [shape: bf16[128,128], index: 8, kind: input, shape index: {}]
  %s9 = inlined_call_operand.vmem [shape: f32[8,128], index: 9, kind: output, shape index: {}]
  %s10 = sld [smem:[#allocation0]]
  $region46: #{petnet_forward.1} parent=0
    _
  %s12 = ssub.s32 1, %s10
  %s13 = scalar_select 0, %s12, %s10
  // Predicated region
  $region2: #{petnet_forward.1} parent=0 // pred_check
    _
  $region3: #{petnet_forward.1} parent=0 // pred_check_branch
    %15 = sbr.rel (0) target = $region5
  $region4: #{petnet_forward.1} parent=0 // pred_region
    _
  $region5: #{petnet_forward.1} parent=0 // pred_fallthru
    _
  // Predicated region
  $region6: #{petnet_forward.1} parent=0 // pred_check
    _
  $region7: #{petnet_forward.1} parent=0 // pred_check_branch
    %17 = sbr.rel (0) target = $region9
  $region8: #{petnet_forward.1} parent=0 // pred_region
    _
  $region9: #{petnet_forward.1} parent=0 // pred_fallthru
    _
  // Predicated region
  $region10: #{petnet_forward.1} parent=0 // pred_check
    _
  $region11: #{petnet_forward.1} parent=0 // pred_check_branch
    %19 = sbr.rel (0) target = $region13
  $region12: #{petnet_forward.1} parent=0 // pred_region
    _
  $region13: #{petnet_forward.1} parent=0 // pred_fallthru
    _
  // Predicated region
  $region14: #{petnet_forward.1} parent=0 // pred_check
    _
  $region15: #{petnet_forward.1} parent=0 // pred_check_branch
    %21 = sbr.rel (0) target = $region17
  $region16: #{petnet_forward.1} parent=0 // pred_region
    _
  $region17: #{petnet_forward.1} parent=0 // pred_fallthru
    _
  // Predicated region
  $region18: #{petnet_forward.1} parent=0 // pred_check
    _
  $region19: #{petnet_forward.1} parent=0 // pred_check_branch
    %23 = sbr.rel (0) target = $region21
  $region20: #{petnet_forward.1} parent=0 // pred_region
    _
  $region21: #{petnet_forward.1} parent=0 // pred_fallthru
    _
  // Predicated region
  $region22: #{petnet_forward.1} parent=0 // pred_check
    _
  $region23: #{petnet_forward.1} parent=0 // pred_check_branch
    %25 = sbr.rel (0) target = $region25
  $region24: #{petnet_forward.1} parent=0 // pred_region
    _
  $region25: #{petnet_forward.1} parent=0 // pred_fallthru
    _
  // Predicated region
  $region26: #{petnet_forward.1} parent=0 // pred_check
    _
  $region27: #{petnet_forward.1} parent=0 // pred_check_branch
    %27 = sbr.rel (0) target = $region29
  $region28: #{petnet_forward.1} parent=0 // pred_region
    _
  $region29: #{petnet_forward.1} parent=0 // pred_fallthru
    _
  // Predicated region
  $region30: #{petnet_forward.1} parent=0 // pred_check
    _
  $region31: #{petnet_forward.1} parent=0 // pred_check_branch
    %29 = sbr.rel (0) target = $region33
  $region32: #{petnet_forward.1} parent=0 // pred_region
    _
  $region33: #{petnet_forward.1} parent=0 // pred_fallthru
    _
  // Predicated region
  $region34: #{petnet_forward.1} parent=0 // pred_check
    _
  $region35: #{petnet_forward.1} parent=0 // pred_check_branch
    %31 = sbr.rel (0) target = $region37
  $region36: #{petnet_forward.1} parent=0 // pred_region
    _
  $region37: #{petnet_forward.1} parent=0 // pred_fallthru
    _
  %v33 = vld [vmem:[%s0] sm:$0xf]
  %v34 = vld [vmem:[%s0 + $0x4] sm:$0xf]
  %v35 = vld [vmem:[%s0 + $0x8] sm:$0xf]
  %v36 = vld [vmem:[%s0 + $0xc] sm:$0xf]
  %v37 = vld [vmem:[%s0 + $0x10] sm:$0xf]
  %v38 = vld [vmem:[%s0 + $0x14] sm:$0xf]
  %v39 = vld [vmem:[%s0 + $0x18] sm:$0xf]
  %v40 = vld [vmem:[%s0 + $0x1c] sm:$0xf]
  %v41 = vld [vmem:[%s0 + $0x20] sm:$0xf]
  %v42 = vld [vmem:[%s0 + $0x24] sm:$0xf]
  %v43 = vld [vmem:[%s0 + $0x28] sm:$0xf]
  %v44 = vld [vmem:[%s0 + $0x2c] sm:$0xf]
  %v45 = vld [vmem:[%s0 + $0x30] sm:$0xf]
  %v46 = vld [vmem:[%s0 + $0x34] sm:$0xf]
  %v47 = vld [vmem:[%s0 + $0x38] sm:$0xf]
  %v48 = vld [vmem:[%s0 + $0x3c] sm:$0xf]
  %v49 = vld [vmem:[%s0 + $0x40] sm:$0xf]
  %v50 = vld [vmem:[%s0 + $0x44] sm:$0xf]
  %v51 = vld [vmem:[%s0 + $0x48] sm:$0xf]
  %v52 = vld [vmem:[%s0 + $0x4c] sm:$0xf]
  %v53 = vld [vmem:[%s0 + $0x50] sm:$0xf]
  %v54 = vld [vmem:[%s0 + $0x54] sm:$0xf]
  %v55 = vld [vmem:[%s0 + $0x58] sm:$0xf]
  %v56 = vld [vmem:[%s0 + $0x5c] sm:$0xf]
  %v57 = vld [vmem:[%s0 + $0x60] sm:$0xf]
  %v58 = vld [vmem:[%s0 + $0x64] sm:$0xf]
  %v59 = vld [vmem:[%s0 + $0x68] sm:$0xf]
  %v60 = vld [vmem:[%s0 + $0x6c] sm:$0xf]
  %v61 = vld [vmem:[%s0 + $0x70] sm:$0xf]
  %v62 = vld [vmem:[%s0 + $0x74] sm:$0xf]
  %v63 = vld [vmem:[%s0 + $0x78] sm:$0xf]
  %v64 = vld [vmem:[%s0 + $0x7c] sm:$0xf]
  %v65 = vld [vmem:[%s0 + $0x80] sm:$0xf]
  %v66 = vld [vmem:[%s0 + $0x84] sm:$0xf]
  %v67 = vld [vmem:[%s0 + $0x88] sm:$0xf]
  %v68 = vld [vmem:[%s0 + $0x8c] sm:$0xf]
  %v69 = vld [vmem:[%s0 + $0x90] sm:$0xf]
  %v70 = vld [vmem:[%s0 + $0x94] sm:$0xf]
  %v71 = vld [vmem:[%s0 + $0x98] sm:$0xf]
  %v72 = vld [vmem:[%s0 + $0x9c] sm:$0xf]
  %v73 = vld [vmem:[%s0 + $0xa0] sm:$0xf]
  %v74 = vld [vmem:[%s0 + $0xa4] sm:$0xf]
  %v75 = vld [vmem:[%s0 + $0xa8] sm:$0xf]
  %v76 = vld [vmem:[%s0 + $0xac] sm:$0xf]
  %v77 = vld [vmem:[%s0 + $0xb0] sm:$0xf]
  %v78 = vld [vmem:[%s0 + $0xb4] sm:$0xf]
  %v79 = vld [vmem:[%s0 + $0xb8] sm:$0xf]
  %v80 = vld [vmem:[%s0 + $0xbc] sm:$0xf]
  %v81 = vld [vmem:[%s0 + $0xc0] sm:$0xf]
  %v82 = vld [vmem:[%s0 + $0xc4] sm:$0xf]
  %v83 = vld [vmem:[%s0 + $0xc8] sm:$0xf]
  %v84 = vld [vmem:[%s0 + $0xcc] sm:$0xf]
  %v85 = vld [vmem:[%s0 + $0xd0] sm:$0xf]
  %v86 = vld [vmem:[%s0 + $0xd4] sm:$0xf]
  %v87 = vld [vmem:[%s0 + $0xd8] sm:$0xf]
  %v88 = vld [vmem:[%s0 + $0xdc] sm:$0xf]
  %v89 = vld [vmem:[%s0 + $0xe0] sm:$0xf]
  %v90 = vld [vmem:[%s0 + $0xe4] sm:$0xf]
  %v91 = vld [vmem:[%s0 + $0xe8] sm:$0xf]
  %v92 = vld [vmem:[%s0 + $0xec] sm:$0xf]
  %v93 = vld [vmem:[%s0 + $0xf0] sm:$0xf]
  %v94 = vld [vmem:[%s0 + $0xf4] sm:$0xf]
  %v95 = vld [vmem:[%s0 + $0xf8] sm:$0xf]
  %v96 = vld [vmem:[%s0 + $0xfc] sm:$0xf]
  %v97 = vld [vmem:[%s0 + $0x100] sm:$0xf]
  %v98 = vld [vmem:[%s0 + $0x104] sm:$0xf]
  %v99 = vld [vmem:[%s0 + $0x108] sm:$0xf]
  %v100 = vld [vmem:[%s0 + $0x10c] sm:$0xf]
  %v101 = vld [vmem:[%s0 + $0x110] sm:$0xf]
  %v102 = vld [vmem:[%s0 + $0x114] sm:$0xf]
  %v103 = vld [vmem:[%s0 + $0x118] sm:$0xf]
  %v104 = vld [vmem:[%s0 + $0x11c] sm:$0xf]
  %v105 = vld [vmem:[%s0 + $0x120] sm:$0xf]
  %v106 = vld [vmem:[%s0 + $0x124] sm:$0xf]
  %v107 = vld [vmem:[%s0 + $0x128] sm:$0xf]
  %v108 = vld [vmem:[%s0 + $0x12c] sm:$0xf]
  %v109 = vld [vmem:[%s0 + $0x130] sm:$0xf]
  %v110 = vld [vmem:[%s0 + $0x134] sm:$0xf]
  %v111 = vld [vmem:[%s0 + $0x138] sm:$0xf]
  %v112 = vld [vmem:[%s0 + $0x13c] sm:$0xf]
  %v113 = vld [vmem:[%s0 + $0x140] sm:$0xf]
  %v114 = vld [vmem:[%s0 + $0x144] sm:$0xf]
  %v115 = vld [vmem:[%s0 + $0x148] sm:$0xf]
  %v116 = vld [vmem:[%s0 + $0x14c] sm:$0xf]
  %v117 = vld [vmem:[%s0 + $0x150] sm:$0xf]
  %v118 = vld [vmem:[%s0 + $0x154] sm:$0xf]
  %v119 = vld [vmem:[%s0 + $0x158] sm:$0xf]
  %v120 = vld [vmem:[%s0 + $0x15c] sm:$0xf]
  %v121 = vld [vmem:[%s0 + $0x160] sm:$0xf]
  %v122 = vld [vmem:[%s0 + $0x164] sm:$0xf]
  %v123 = vld [vmem:[%s0 + $0x168] sm:$0xf]
  %v124 = vld [vmem:[%s0 + $0x16c] sm:$0xf]
  %v125 = vld [vmem:[%s0 + $0x170] sm:$0xf]
  %v126 = vld [vmem:[%s0 + $0x174] sm:$0xf]
  %v127 = vld [vmem:[%s0 + $0x178] sm:$0xf]
  %v128 = vld [vmem:[%s0 + $0x17c] sm:$0xf]
  %v129 = vld [vmem:[%s0 + $0x180] sm:$0xf]
  %v130 = vld [vmem:[%s0 + $0x184] sm:$0xf]
  %v131 = vld [vmem:[%s0 + $0x188] sm:$0xf]
  %v132 = vld [vmem:[%s0 + $0x18c] sm:$0xf]
  %v133 = vld [vmem:[%s0 + $0x190] sm:$0xf]
  %v134 = vld [vmem:[%s0 + $0x194] sm:$0xf]
  %v135 = vld [vmem:[%s0 + $0x198] sm:$0xf]
  %v136 = vld [vmem:[%s0 + $0x19c] sm:$0xf]
  %v137 = vld [vmem:[%s0 + $0x1a0] sm:$0xf]
  %v138 = vld [vmem:[%s0 + $0x1a4] sm:$0xf]
  %v139 = vld [vmem:[%s0 + $0x1a8] sm:$0xf]
  %v140 = vld [vmem:[%s0 + $0x1ac] sm:$0xf]
  %v141 = vld [vmem:[%s0 + $0x1b0] sm:$0xf]
  %v142 = vld [vmem:[%s0 + $0x1b4] sm:$0xf]
  %v143 = vld [vmem:[%s0 + $0x1b8] sm:$0xf]
  %v144 = vld [vmem:[%s0 + $0x1bc] sm:$0xf]
  %v145 = vld [vmem:[%s0 + $0x1c0] sm:$0xf]
  %v146 = vld [vmem:[%s0 + $0x1c4] sm:$0xf]
  %v147 = vld [vmem:[%s0 + $0x1c8] sm:$0xf]
  %v148 = vld [vmem:[%s0 + $0x1cc] sm:$0xf]
  %v149 = vld [vmem:[%s0 + $0x1d0] sm:$0xf]
  %v150 = vld [vmem:[%s0 + $0x1d4] sm:$0xf]
  %v151 = vld [vmem:[%s0 + $0x1d8] sm:$0xf]
  %v152 = vld [vmem:[%s0 + $0x1dc] sm:$0xf]
  %v153 = vld [vmem:[%s0 + $0x1e0] sm:$0xf]
  %v154 = vld [vmem:[%s0 + $0x1e4] sm:$0xf]
  %v155 = vld [vmem:[%s0 + $0x1e8] sm:$0xf]
  %v156 = vld [vmem:[%s0 + $0x1ec] sm:$0xf]
  %v157 = vld [vmem:[%s0 + $0x1f0] sm:$0xf]
  %v158 = vld [vmem:[%s0 + $0x1f4] sm:$0xf]
  %v159 = vld [vmem:[%s0 + $0x1f8] sm:$0xf]
  %v160 = vld [vmem:[%s0 + $0x1fc] sm:$0xf]
  %v161 = vld [vmem:[%s0 + $0x200] sm:$0xf]
  %v162 = vld [vmem:[%s0 + $0x204] sm:$0xf]
  %v163 = vld [vmem:[%s0 + $0x208] sm:$0xf]
  %v164 = vld [vmem:[%s0 + $0x20c] sm:$0xf]
  %v165 = vld [vmem:[%s0 + $0x210] sm:$0xf]
  %v166 = vld [vmem:[%s0 + $0x214] sm:$0xf]
  %v167 = vld [vmem:[%s0 + $0x218] sm:$0xf]
  %v168 = vld [vmem:[%s0 + $0x21c] sm:$0xf]
  %v169 = vld [vmem:[%s0 + $0x220] sm:$0xf]
  %v170 = vld [vmem:[%s0 + $0x224] sm:$0xf]
  %v171 = vld [vmem:[%s0 + $0x228] sm:$0xf]
  %v172 = vld [vmem:[%s0 + $0x22c] sm:$0xf]
  %v173 = vld [vmem:[%s0 + $0x230] sm:$0xf]
  %v174 = vld [vmem:[%s0 + $0x234] sm:$0xf]
  %v175 = vld [vmem:[%s0 + $0x238] sm:$0xf]
  %v176 = vld [vmem:[%s0 + $0x23c] sm:$0xf]
  %v177 = vld [vmem:[%s0 + $0x240] sm:$0xf]
  %v178 = vld [vmem:[%s0 + $0x244] sm:$0xf]
  %v179 = vld [vmem:[%s0 + $0x248] sm:$0xf]
  %v180 = vld [vmem:[%s0 + $0x24c] sm:$0xf]
  %v181 = vld [vmem:[%s0 + $0x250] sm:$0xf]
  %v182 = vld [vmem:[%s0 + $0x254] sm:$0xf]
  %v183 = vld [vmem:[%s0 + $0x258] sm:$0xf]
  %v184 = vld [vmem:[%s0 + $0x25c] sm:$0xf]
  %v185 = vld [vmem:[%s0 + $0x260] sm:$0xf]
  %v186 = vld [vmem:[%s0 + $0x264] sm:$0xf]
  %v187 = vld [vmem:[%s0 + $0x268] sm:$0xf]
  %v188 = vld [vmem:[%s0 + $0x26c] sm:$0xf]
  %v189 = vld [vmem:[%s0 + $0x270] sm:$0xf]
  %v190 = vld [vmem:[%s0 + $0x274] sm:$0xf]
  %v191 = vld [vmem:[%s0 + $0x278] sm:$0xf]
  %v192 = vld [vmem:[%s0 + $0x27c] sm:$0xf]
  %v193 = vld [vmem:[%s0 + $0x280] sm:$0xf]
  %v194 = vld [vmem:[%s0 + $0x284] sm:$0xf]
  %v195 = vld [vmem:[%s0 + $0x288] sm:$0xf]
  %v196 = vld [vmem:[%s0 + $0x28c] sm:$0xf]
  %v197 = vld [vmem:[%s0 + $0x290] sm:$0xf]
  %v198 = vld [vmem:[%s0 + $0x294] sm:$0xf]
  %v199 = vld [vmem:[%s0 + $0x298] sm:$0xf]
  %v200 = vld [vmem:[%s0 + $0x29c] sm:$0xf]
  %v201 = vld [vmem:[%s0 + $0x2a0] sm:$0xf]
  %v202 = vld [vmem:[%s0 + $0x2a4] sm:$0xf]
  %v203 = vld [vmem:[%s0 + $0x2a8] sm:$0xf]
  %v204 = vld [vmem:[%s0 + $0x2ac] sm:$0xf]
  %v205 = vld [vmem:[%s0 + $0x2b0] sm:$0xf]
  %v206 = vld [vmem:[%s0 + $0x2b4] sm:$0xf]
  %v207 = vld [vmem:[%s0 + $0x2b8] sm:$0xf]
  %v208 = vld [vmem:[%s0 + $0x2bc] sm:$0xf]
  %v209 = vld [vmem:[%s0 + $0x2c0] sm:$0xf]
  %v210 = vld [vmem:[%s0 + $0x2c4] sm:$0xf]
  %v211 = vld [vmem:[%s0 + $0x2c8] sm:$0xf]
  %v212 = vld [vmem:[%s0 + $0x2cc] sm:$0xf]
  %v213 = vld [vmem:[%s0 + $0x2d0] sm:$0xf]
  %v214 = vld [vmem:[%s0 + $0x2d4] sm:$0xf]
  %v215 = vld [vmem:[%s0 + $0x2d8] sm:$0xf]
  %v216 = vld [vmem:[%s0 + $0x2dc] sm:$0xf]
  %v217 = vld [vmem:[%s0 + $0x2e0] sm:$0xf]
  %v218 = vld [vmem:[%s0 + $0x2e4] sm:$0xf]
  %v219 = vld [vmem:[%s0 + $0x2e8] sm:$0xf]
  %v220 = vld [vmem:[%s0 + $0x2ec] sm:$0xf]
  %v221 = vld [vmem:[%s0 + $0x2f0] sm:$0xf]
  %v222 = vld [vmem:[%s0 + $0x2f4] sm:$0xf]
  %v223 = vld [vmem:[%s0 + $0x2f8] sm:$0xf]
  %v224 = vld [vmem:[%s0 + $0x2fc] sm:$0xf]
  %v225 = vld [vmem:[%s0 + $0x300] sm:$0xf]
  %v226 = vld [vmem:[%s0 + $0x304] sm:$0xf]
  %v227 = vld [vmem:[%s0 + $0x308] sm:$0xf]
  %v228 = vld [vmem:[%s0 + $0x30c] sm:$0xf]
  %v229 = vld [vmem:[%s0 + $0x310] sm:$0xf]
  %v230 = vld [vmem:[%s0 + $0x314] sm:$0xf]
  %v231 = vld [vmem:[%s0 + $0x318] sm:$0xf]
  %v232 = vld [vmem:[%s0 + $0x31c] sm:$0xf]
  %v233 = vld [vmem:[%s0 + $0x320] sm:$0xf]
  %v234 = vld [vmem:[%s0 + $0x324] sm:$0xf]
  %v235 = vld [vmem:[%s0 + $0x328] sm:$0xf]
  %v236 = vld [vmem:[%s0 + $0x32c] sm:$0xf]
  %v237 = vld [vmem:[%s0 + $0x330] sm:$0xf]
  %v238 = vld [vmem:[%s0 + $0x334] sm:$0xf]
  %v239 = vld [vmem:[%s0 + $0x338] sm:$0xf]
  %v240 = vld [vmem:[%s0 + $0x33c] sm:$0xf]
  %v241 = vld [vmem:[%s0 + $0x340] sm:$0xf]
  %v242 = vld [vmem:[%s0 + $0x344] sm:$0xf]
  %v243 = vld [vmem:[%s0 + $0x348] sm:$0xf]
  %v244 = vld [vmem:[%s0 + $0x34c] sm:$0xf]
  %v245 = vld [vmem:[%s0 + $0x350] sm:$0xf]
  %v246 = vld [vmem:[%s0 + $0x354] sm:$0xf]
  %v247 = vld [vmem:[%s0 + $0x358] sm:$0xf]
  %v248 = vld [vmem:[%s0 + $0x35c] sm:$0xf]
  %v249 = vld [vmem:[%s0 + $0x360] sm:$0xf]
  %v250 = vld [vmem:[%s0 + $0x364] sm:$0xf]
  %v251 = vld [vmem:[%s0 + $0x368] sm:$0xf]
  %v252 = vld [vmem:[%s0 + $0x36c] sm:$0xf]
  %v253 = vld [vmem:[%s0 + $0x370] sm:$0xf]
  %v254 = vld [vmem:[%s0 + $0x374] sm:$0xf]
  %v255 = vld [vmem:[%s0 + $0x378] sm:$0xf]
  %v256 = vld [vmem:[%s0 + $0x37c] sm:$0xf]
  %v257 = vld [vmem:[%s0 + $0x380] sm:$0xf]
  %v258 = vld [vmem:[%s0 + $0x384] sm:$0xf]
  %v259 = vld [vmem:[%s0 + $0x388] sm:$0xf]
  %v260 = vld [vmem:[%s0 + $0x38c] sm:$0xf]
  %v261 = vld [vmem:[%s0 + $0x390] sm:$0xf]
  %v262 = vld [vmem:[%s0 + $0x394] sm:$0xf]
  %v263 = vld [vmem:[%s0 + $0x398] sm:$0xf]
  %v264 = vld [vmem:[%s0 + $0x39c] sm:$0xf]
  %v265 = vld [vmem:[%s0 + $0x3a0] sm:$0xf]
  %v266 = vld [vmem:[%s0 + $0x3a4] sm:$0xf]
  %v267 = vld [vmem:[%s0 + $0x3a8] sm:$0xf]
  %v268 = vld [vmem:[%s0 + $0x3ac] sm:$0xf]
  %v269 = vld [vmem:[%s0 + $0x3b0] sm:$0xf]
  %v270 = vld [vmem:[%s0 + $0x3b4] sm:$0xf]
  %v271 = vld [vmem:[%s0 + $0x3b8] sm:$0xf]
  %v272 = vld [vmem:[%s0 + $0x3bc] sm:$0xf]
  %v273 = vld [vmem:[%s0 + $0x3c0] sm:$0xf]
  %v274 = vld [vmem:[%s0 + $0x3c4] sm:$0xf]
  %v275 = vld [vmem:[%s0 + $0x3c8] sm:$0xf]
  %v276 = vld [vmem:[%s0 + $0x3cc] sm:$0xf]
  %v277 = vld [vmem:[%s0 + $0x3d0] sm:$0xf]
  %v278 = vld [vmem:[%s0 + $0x3d4] sm:$0xf]
  %v279 = vld [vmem:[%s0 + $0x3d8] sm:$0xf]
  %v280 = vld [vmem:[%s0 + $0x3dc] sm:$0xf]
  %v281 = vld [vmem:[%s0 + $0x3e0] sm:$0xf]
  %v282 = vld [vmem:[%s0 + $0x3e4] sm:$0xf]
  %v283 = vld [vmem:[%s0 + $0x3e8] sm:$0xf]
  %v284 = vld [vmem:[%s0 + $0x3ec] sm:$0xf]
  %v285 = vld [vmem:[%s0 + $0x3f0] sm:$0xf]
  %v286 = vld [vmem:[%s0 + $0x3f4] sm:$0xf]
  %v287 = vld [vmem:[%s0 + $0x3f8] sm:$0xf]
  %v288 = vld [vmem:[%s0 + $0x3fc] sm:$0xf]
  %v289 = vld [vmem:[%s2] sm:$0xf]
  %v290 = vld [vmem:[%s2 + $0x4] sm:$0xf]
  %v291 = vld [vmem:[%s2 + $0x8] sm:$0xf]
  %v292 = vld [vmem:[%s2 + $0xc] sm:$0xf]
  %v293 = vld [vmem:[%s2 + $0x10] sm:$0xf]
  %v294 = vld [vmem:[%s2 + $0x14] sm:$0xf]
  %v295 = vld [vmem:[%s2 + $0x18] sm:$0xf]
  %v296 = vld [vmem:[%s2 + $0x1c] sm:$0xf]
  %v297 = vld [vmem:[%s2 + $0x20] sm:$0xf]
  %v298 = vld [vmem:[%s2 + $0x24] sm:$0xf]
  %v299 = vld [vmem:[%s2 + $0x28] sm:$0xf]
  %v300 = vld [vmem:[%s2 + $0x2c] sm:$0xf]
  %v301 = vld [vmem:[%s2 + $0x30] sm:$0xf]
  %v302 = vld [vmem:[%s2 + $0x34] sm:$0xf]
  %v303 = vld [vmem:[%s2 + $0x38] sm:$0xf]
  %v304 = vld [vmem:[%s2 + $0x3c] sm:$0xf]
  %v305 = vld [vmem:[%s3] sm:$0x1]
  %v307 = vlaneseq
  %v308 = vshrl.u32 %v307, 7
  %v309 = vsub.s32 0, %v308
  %v310 = vrot.slane %v305, %v309
  %v568 = vunpack.c.l.b16 %v33
  %v569 = vunpack.c.l.b16 %v34
  %v570 = vunpack.c.l.b16 %v35
  %v571 = vunpack.c.l.b16 %v36
  %v572 = vunpack.c.l.b16 %v37
  %v573 = vunpack.c.l.b16 %v38
  %v574 = vunpack.c.l.b16 %v39
  %v575 = vunpack.c.l.b16 %v40
  %v576 = vunpack.c.l.b16 %v41
  %v577 = vunpack.c.l.b16 %v42
  %v578 = vunpack.c.l.b16 %v43
  %v579 = vunpack.c.l.b16 %v44
  %v580 = vunpack.c.l.b16 %v45
  %v581 = vunpack.c.l.b16 %v46
  %v582 = vunpack.c.l.b16 %v47
  %v583 = vunpack.c.l.b16 %v48
  %v584 = vunpack.c.l.b16 %v49
  %v585 = vunpack.c.l.b16 %v50
  %v586 = vunpack.c.l.b16 %v51
  %v587 = vunpack.c.l.b16 %v52
  %v588 = vunpack.c.l.b16 %v53
  %v589 = vunpack.c.l.b16 %v54
  %v590 = vunpack.c.l.b16 %v55
  %v591 = vunpack.c.l.b16 %v56
  %v592 = vunpack.c.l.b16 %v57
  %v593 = vunpack.c.l.b16 %v58
  %v594 = vunpack.c.l.b16 %v59
  %v595 = vunpack.c.l.b16 %v60
  %v596 = vunpack.c.l.b16 %v61
  %v597 = vunpack.c.l.b16 %v62
  %v598 = vunpack.c.l.b16 %v63
  %v599 = vunpack.c.l.b16 %v64
  %v600 = vunpack.c.l.b16 %v65
  %v601 = vunpack.c.l.b16 %v66
  %v602 = vunpack.c.l.b16 %v67
  %v603 = vunpack.c.l.b16 %v68
  %v604 = vunpack.c.l.b16 %v69
  %v605 = vunpack.c.l.b16 %v70
  %v606 = vunpack.c.l.b16 %v71
  %v607 = vunpack.c.l.b16 %v72
  %v608 = vunpack.c.l.b16 %v73
  %v609 = vunpack.c.l.b16 %v74
  %v610 = vunpack.c.l.b16 %v75
  %v611 = vunpack.c.l.b16 %v76
  %v612 = vunpack.c.l.b16 %v77
  %v613 = vunpack.c.l.b16 %v78
  %v614 = vunpack.c.l.b16 %v79
  %v615 = vunpack.c.l.b16 %v80
  %v616 = vunpack.c.l.b16 %v81
  %v617 = vunpack.c.l.b16 %v82
  %v618 = vunpack.c.l.b16 %v83
  %v619 = vunpack.c.l.b16 %v84
  %v620 = vunpack.c.l.b16 %v85
  %v621 = vunpack.c.l.b16 %v86
  %v622 = vunpack.c.l.b16 %v87
  %v623 = vunpack.c.l.b16 %v88
  %v624 = vunpack.c.l.b16 %v89
  %v625 = vunpack.c.l.b16 %v90
  %v626 = vunpack.c.l.b16 %v91
  %v627 = vunpack.c.l.b16 %v92
  %v628 = vunpack.c.l.b16 %v93
  %v629 = vunpack.c.l.b16 %v94
  %v630 = vunpack.c.l.b16 %v95
  %v631 = vunpack.c.l.b16 %v96
  %v632 = vunpack.c.l.b16 %v97
  %v633 = vunpack.c.l.b16 %v98
  %v634 = vunpack.c.l.b16 %v99
  %v635 = vunpack.c.l.b16 %v100
  %v636 = vunpack.c.l.b16 %v101
  %v637 = vunpack.c.l.b16 %v102
  %v638 = vunpack.c.l.b16 %v103
  %v639 = vunpack.c.l.b16 %v104
  %v640 = vunpack.c.l.b16 %v105
  %v641 = vunpack.c.l.b16 %v106
  %v642 = vunpack.c.l.b16 %v107
  %v643 = vunpack.c.l.b16 %v108
  %v644 = vunpack.c.l.b16 %v109
  %v645 = vunpack.c.l.b16 %v110
  %v646 = vunpack.c.l.b16 %v111
  %v647 = vunpack.c.l.b16 %v112
  %v648 = vunpack.c.l.b16 %v113
  %v649 = vunpack.c.l.b16 %v114
  %v650 = vunpack.c.l.b16 %v115
  %v651 = vunpack.c.l.b16 %v116
  %v652 = vunpack.c.l.b16 %v117
  %v653 = vunpack.c.l.b16 %v118
  %v654 = vunpack.c.l.b16 %v119
  %v655 = vunpack.c.l.b16 %v120
  %v656 = vunpack.c.l.b16 %v121
  %v657 = vunpack.c.l.b16 %v122
  %v658 = vunpack.c.l.b16 %v123
  %v659 = vunpack.c.l.b16 %v124
  %v660 = vunpack.c.l.b16 %v125
  %v661 = vunpack.c.l.b16 %v126
  %v662 = vunpack.c.l.b16 %v127
  %v663 = vunpack.c.l.b16 %v128
  %v664 = vunpack.c.l.b16 %v129
  %v665 = vunpack.c.l.b16 %v130
  %v666 = vunpack.c.l.b16 %v131
  %v667 = vunpack.c.l.b16 %v132
  %v668 = vunpack.c.l.b16 %v133
  %v669 = vunpack.c.l.b16 %v134
  %v670 = vunpack.c.l.b16 %v135
  %v671 = vunpack.c.l.b16 %v136
  %v672 = vunpack.c.l.b16 %v137
  %v673 = vunpack.c.l.b16 %v138
  %v674 = vunpack.c.l.b16 %v139
  %v675 = vunpack.c.l.b16 %v140
  %v676 = vunpack.c.l.b16 %v141
  %v677 = vunpack.c.l.b16 %v142
  %v678 = vunpack.c.l.b16 %v143
  %v679 = vunpack.c.l.b16 %v144
  %v680 = vunpack.c.l.b16 %v145
  %v681 = vunpack.c.l.b16 %v146
  %v682 = vunpack.c.l.b16 %v147
  %v683 = vunpack.c.l.b16 %v148
  %v684 = vunpack.c.l.b16 %v149
  %v685 = vunpack.c.l.b16 %v150
  %v686 = vunpack.c.l.b16 %v151
  %v687 = vunpack.c.l.b16 %v152
  %v688 = vunpack.c.l.b16 %v153
  %v689 = vunpack.c.l.b16 %v154
  %v690 = vunpack.c.l.b16 %v155
  %v691 = vunpack.c.l.b16 %v156
  %v692 = vunpack.c.l.b16 %v157
  %v693 = vunpack.c.l.b16 %v158
  %v694 = vunpack.c.l.b16 %v159
  %v695 = vunpack.c.l.b16 %v160
  %v696 = vunpack.c.l.b16 %v161
  %v697 = vunpack.c.l.b16 %v162
  %v698 = vunpack.c.l.b16 %v163
  %v699 = vunpack.c.l.b16 %v164
  %v700 = vunpack.c.l.b16 %v165
  %v701 = vunpack.c.l.b16 %v166
  %v702 = vunpack.c.l.b16 %v167
  %v703 = vunpack.c.l.b16 %v168
  %v704 = vunpack.c.l.b16 %v169
  %v705 = vunpack.c.l.b16 %v170
  %v706 = vunpack.c.l.b16 %v171
  %v707 = vunpack.c.l.b16 %v172
  %v708 = vunpack.c.l.b16 %v173
  %v709 = vunpack.c.l.b16 %v174
  %v710 = vunpack.c.l.b16 %v175
  %v711 = vunpack.c.l.b16 %v176
  %v712 = vunpack.c.l.b16 %v177
  %v713 = vunpack.c.l.b16 %v178
  %v714 = vunpack.c.l.b16 %v179
  %v715 = vunpack.c.l.b16 %v180
  %v716 = vunpack.c.l.b16 %v181
  %v717 = vunpack.c.l.b16 %v182
  %v718 = vunpack.c.l.b16 %v183
  %v719 = vunpack.c.l.b16 %v184
  %v720 = vunpack.c.l.b16 %v185
  %v721 = vunpack.c.l.b16 %v186
  %v722 = vunpack.c.l.b16 %v187
  %v723 = vunpack.c.l.b16 %v188
  %v724 = vunpack.c.l.b16 %v189
  %v725 = vunpack.c.l.b16 %v190
  %v726 = vunpack.c.l.b16 %v191
  %v727 = vunpack.c.l.b16 %v192
  %v728 = vunpack.c.l.b16 %v193
  %v729 = vunpack.c.l.b16 %v194
  %v730 = vunpack.c.l.b16 %v195
  %v731 = vunpack.c.l.b16 %v196
  %v732 = vunpack.c.l.b16 %v197
  %v733 = vunpack.c.l.b16 %v198
  %v734 = vunpack.c.l.b16 %v199
  %v735 = vunpack.c.l.b16 %v200
  %v736 = vunpack.c.l.b16 %v201
  %v737 = vunpack.c.l.b16 %v202
  %v738 = vunpack.c.l.b16 %v203
  %v739 = vunpack.c.l.b16 %v204
  %v740 = vunpack.c.l.b16 %v205
  %v741 = vunpack.c.l.b16 %v206
  %v742 = vunpack.c.l.b16 %v207
  %v743 = vunpack.c.l.b16 %v208
  %v744 = vunpack.c.l.b16 %v209
  %v745 = vunpack.c.l.b16 %v210
  %v746 = vunpack.c.l.b16 %v211
  %v747 = vunpack.c.l.b16 %v212
  %v748 = vunpack.c.l.b16 %v213
  %v749 = vunpack.c.l.b16 %v214
  %v750 = vunpack.c.l.b16 %v215
  %v751 = vunpack.c.l.b16 %v216
  %v752 = vunpack.c.l.b16 %v217
  %v753 = vunpack.c.l.b16 %v218
  %v754 = vunpack.c.l.b16 %v219
  %v755 = vunpack.c.l.b16 %v220
  %v756 = vunpack.c.l.b16 %v221
  %v757 = vunpack.c.l.b16 %v222
  %v758 = vunpack.c.l.b16 %v223
  %v759 = vunpack.c.l.b16 %v224
  %v760 = vunpack.c.l.b16 %v225
  %v761 = vunpack.c.l.b16 %v226
  %v762 = vunpack.c.l.b16 %v227
  %v763 = vunpack.c.l.b16 %v228
  %v764 = vunpack.c.l.b16 %v229
  %v765 = vunpack.c.l.b16 %v230
  %v766 = vunpack.c.l.b16 %v231
  %v767 = vunpack.c.l.b16 %v232
  %v768 = vunpack.c.l.b16 %v233
  %v769 = vunpack.c.l.b16 %v234
  %v770 = vunpack.c.l.b16 %v235
  %v771 = vunpack.c.l.b16 %v236
  %v772 = vunpack.c.l.b16 %v237
  %v773 = vunpack.c.l.b16 %v238
  %v774 = vunpack.c.l.b16 %v239
  %v775 = vunpack.c.l.b16 %v240
  %v776 = vunpack.c.l.b16 %v241
  %v777 = vunpack.c.l.b16 %v242
  %v778 = vunpack.c.l.b16 %v243
  %v779 = vunpack.c.l.b16 %v244
  %v780 = vunpack.c.l.b16 %v245
  %v781 = vunpack.c.l.b16 %v246
  %v782 = vunpack.c.l.b16 %v247
  %v783 = vunpack.c.l.b16 %v248
  %v784 = vunpack.c.l.b16 %v249
  %v785 = vunpack.c.l.b16 %v250
  %v786 = vunpack.c.l.b16 %v251
  %v787 = vunpack.c.l.b16 %v252
  %v788 = vunpack.c.l.b16 %v253
  %v789 = vunpack.c.l.b16 %v254
  %v790 = vunpack.c.l.b16 %v255
  %v791 = vunpack.c.l.b16 %v256
  %v792 = vunpack.c.l.b16 %v257
  %v793 = vunpack.c.l.b16 %v258
  %v794 = vunpack.c.l.b16 %v259
  %v795 = vunpack.c.l.b16 %v260
  %v796 = vunpack.c.l.b16 %v261
  %v797 = vunpack.c.l.b16 %v262
  %v798 = vunpack.c.l.b16 %v263
  %v799 = vunpack.c.l.b16 %v264
  %v800 = vunpack.c.l.b16 %v265
  %v801 = vunpack.c.l.b16 %v266
  %v802 = vunpack.c.l.b16 %v267
  %v803 = vunpack.c.l.b16 %v268
  %v804 = vunpack.c.l.b16 %v269
  %v805 = vunpack.c.l.b16 %v270
  %v806 = vunpack.c.l.b16 %v271
  %v807 = vunpack.c.l.b16 %v272
  %v808 = vunpack.c.l.b16 %v273
  %v809 = vunpack.c.l.b16 %v274
  %v810 = vunpack.c.l.b16 %v275
  %v811 = vunpack.c.l.b16 %v276
  %v812 = vunpack.c.l.b16 %v277
  %v813 = vunpack.c.l.b16 %v278
  %v814 = vunpack.c.l.b16 %v279
  %v815 = vunpack.c.l.b16 %v280
  %v816 = vunpack.c.l.b16 %v281
  %v817 = vunpack.c.l.b16 %v282
  %v818 = vunpack.c.l.b16 %v283
  %v819 = vunpack.c.l.b16 %v284
  %v820 = vunpack.c.l.b16 %v285
  %v821 = vunpack.c.l.b16 %v286
  %v822 = vunpack.c.l.b16 %v287
  %v823 = vunpack.c.l.b16 %v288
  %v824 = vpack.c.b16 %v569, %v568
  %v825 = vpack.c.b16 %v571, %v570
  %v826 = vpack.c.b16 %v573, %v572
  %v827 = vpack.c.b16 %v575, %v574
  %v828 = vpack.c.b16 %v577, %v576
  %v829 = vpack.c.b16 %v579, %v578
  %v830 = vpack.c.b16 %v581, %v580
  %v831 = vpack.c.b16 %v583, %v582
  %v832 = vpack.c.b16 %v585, %v584
  %v833 = vpack.c.b16 %v587, %v586
  %v834 = vpack.c.b16 %v589, %v588
  %v835 = vpack.c.b16 %v591, %v590
  %v836 = vpack.c.b16 %v593, %v592
  %v837 = vpack.c.b16 %v595, %v594
  %v838 = vpack.c.b16 %v597, %v596
  %v839 = vpack.c.b16 %v599, %v598
  %v840 = vpack.c.b16 %v601, %v600
  %v841 = vpack.c.b16 %v603, %v602
  %v842 = vpack.c.b16 %v605, %v604
  %v843 = vpack.c.b16 %v607, %v606
  %v844 = vpack.c.b16 %v609, %v608
  %v845 = vpack.c.b16 %v611, %v610
  %v846 = vpack.c.b16 %v613, %v612
  %v847 = vpack.c.b16 %v615, %v614
  %v848 = vpack.c.b16 %v617, %v616
  %v849 = vpack.c.b16 %v619, %v618
  %v850 = vpack.c.b16 %v621, %v620
  %v851 = vpack.c.b16 %v623, %v622
  %v852 = vpack.c.b16 %v625, %v624
  %v853 = vpack.c.b16 %v627, %v626
  %v854 = vpack.c.b16 %v629, %v628
  %v855 = vpack.c.b16 %v631, %v630
  %v856 = vpack.c.b16 %v633, %v632
  %v857 = vpack.c.b16 %v635, %v634
  %v858 = vpack.c.b16 %v637, %v636
  %v859 = vpack.c.b16 %v639, %v638
  %v860 = vpack.c.b16 %v641, %v640
  %v861 = vpack.c.b16 %v643, %v642
  %v862 = vpack.c.b16 %v645, %v644
  %v863 = vpack.c.b16 %v647, %v646
  %v864 = vpack.c.b16 %v649, %v648
  %v865 = vpack.c.b16 %v651, %v650
  %v866 = vpack.c.b16 %v653, %v652
  %v867 = vpack.c.b16 %v655, %v654
  %v868 = vpack.c.b16 %v657, %v656
  %v869 = vpack.c.b16 %v659, %v658
  %v870 = vpack.c.b16 %v661, %v660
  %v871 = vpack.c.b16 %v663, %v662
  %v872 = vpack.c.b16 %v665, %v664
  %v873 = vpack.c.b16 %v667, %v666
  %v874 = vpack.c.b16 %v669, %v668
  %v875 = vpack.c.b16 %v671, %v670
  %v876 = vpack.c.b16 %v673, %v672
  %v877 = vpack.c.b16 %v675, %v674
  %v878 = vpack.c.b16 %v677, %v676
  %v879 = vpack.c.b16 %v679, %v678
  %v880 = vpack.c.b16 %v681, %v680
  %v881 = vpack.c.b16 %v683, %v682
  %v882 = vpack.c.b16 %v685, %v684
  %v883 = vpack.c.b16 %v687, %v686
  %v884 = vpack.c.b16 %v689, %v688
  %v885 = vpack.c.b16 %v691, %v690
  %v886 = vpack.c.b16 %v693, %v692
  %v887 = vpack.c.b16 %v695, %v694
  %v888 = vpack.c.b16 %v697, %v696
  %v889 = vpack.c.b16 %v699, %v698
  %v890 = vpack.c.b16 %v701, %v700
  %v891 = vpack.c.b16 %v703, %v702
  %v892 = vpack.c.b16 %v705, %v704
  %v893 = vpack.c.b16 %v707, %v706
  %v894 = vpack.c.b16 %v709, %v708
  %v895 = vpack.c.b16 %v711, %v710
  %v896 = vpack.c.b16 %v713, %v712
  %v897 = vpack.c.b16 %v715, %v714
  %v898 = vpack.c.b16 %v717, %v716
  %v899 = vpack.c.b16 %v719, %v718
  %v900 = vpack.c.b16 %v721, %v720
  %v901 = vpack.c.b16 %v723, %v722
  %v902 = vpack.c.b16 %v725, %v724
  %v903 = vpack.c.b16 %v727, %v726
  %v904 = vpack.c.b16 %v729, %v728
  %v905 = vpack.c.b16 %v731, %v730
  %v906 = vpack.c.b16 %v733, %v732
  %v907 = vpack.c.b16 %v735, %v734
  %v908 = vpack.c.b16 %v737, %v736
  %v909 = vpack.c.b16 %v739, %v738
  %v910 = vpack.c.b16 %v741, %v740
  %v911 = vpack.c.b16 %v743, %v742
  %v912 = vpack.c.b16 %v745, %v744
  %v913 = vpack.c.b16 %v747, %v746
  %v914 = vpack.c.b16 %v749, %v748
  %v915 = vpack.c.b16 %v751, %v750
  %v916 = vpack.c.b16 %v753, %v752
  %v917 = vpack.c.b16 %v755, %v754
  %v918 = vpack.c.b16 %v757, %v756
  %v919 = vpack.c.b16 %v759, %v758
  %v920 = vpack.c.b16 %v761, %v760
  %v921 = vpack.c.b16 %v763, %v762
  %v922 = vpack.c.b16 %v765, %v764
  %v923 = vpack.c.b16 %v767, %v766
  %v924 = vpack.c.b16 %v769, %v768
  %v925 = vpack.c.b16 %v771, %v770
  %v926 = vpack.c.b16 %v773, %v772
  %v927 = vpack.c.b16 %v775, %v774
  %v928 = vpack.c.b16 %v777, %v776
  %v929 = vpack.c.b16 %v779, %v778
  %v930 = vpack.c.b16 %v781, %v780
  %v931 = vpack.c.b16 %v783, %v782
  %v932 = vpack.c.b16 %v785, %v784
  %v933 = vpack.c.b16 %v787, %v786
  %v934 = vpack.c.b16 %v789, %v788
  %v935 = vpack.c.b16 %v791, %v790
  %v936 = vpack.c.b16 %v793, %v792
  %v937 = vpack.c.b16 %v795, %v794
  %v938 = vpack.c.b16 %v797, %v796
  %v939 = vpack.c.b16 %v799, %v798
  %v940 = vpack.c.b16 %v801, %v800
  %v941 = vpack.c.b16 %v803, %v802
  %v942 = vpack.c.b16 %v805, %v804
  %v943 = vpack.c.b16 %v807, %v806
  %v944 = vpack.c.b16 %v809, %v808
  %v945 = vpack.c.b16 %v811, %v810
  %v946 = vpack.c.b16 %v813, %v812
  %v947 = vpack.c.b16 %v815, %v814
  %v948 = vpack.c.b16 %v817, %v816
  %v949 = vpack.c.b16 %v819, %v818
  %v950 = vpack.c.b16 %v821, %v820
  %v951 = vpack.c.b16 %v823, %v822
  %v1096 = vunpack.c.l.b16 %v289
  %v1097 = vunpack.c.l.b16 %v290
  %v1098 = vunpack.c.l.b16 %v291
  %v1099 = vunpack.c.l.b16 %v292
  %v1100 = vunpack.c.l.b16 %v293
  %v1101 = vunpack.c.l.b16 %v294
  %v1102 = vunpack.c.l.b16 %v295
  %v1103 = vunpack.c.l.b16 %v296
  %v1104 = vunpack.c.l.b16 %v297
  %v1105 = vunpack.c.l.b16 %v298
  %v1106 = vunpack.c.l.b16 %v299
  %v1107 = vunpack.c.l.b16 %v300
  %v1108 = vunpack.c.l.b16 %v301
  %v1109 = vunpack.c.l.b16 %v302
  %v1110 = vunpack.c.l.b16 %v303
  %v1111 = vunpack.c.l.b16 %v304
  %v1112 = vpack.c.b16 %v1097, %v1096
  %v1113 = vpack.c.b16 %v1099, %v1098
  %v1114 = vpack.c.b16 %v1101, %v1100
  %v1115 = vpack.c.b16 %v1103, %v1102
  %v1116 = vpack.c.b16 %v1105, %v1104
  %v1117 = vpack.c.b16 %v1107, %v1106
  %v1118 = vpack.c.b16 %v1109, %v1108
  %v1119 = vpack.c.b16 %v1111, %v1110
  %1128 = vmatprep.subr.bf16.mxu0 0
  %1129 = vmatpush1.bf16.msra.mxu0 %v1112
  %1130 = vmatprep.subr.bf16.mxu0 0
  %1131 = vmatpush1.bf16.msra.mxu0 %v1113
  %1132 = vmatprep.subr.bf16.mxu0 0
  %1133 = vmatpush1.bf16.msra.mxu0 %v1114
  %1134 = vmatprep.subr.bf16.mxu0 0
  %1135 = vmatpush1.bf16.msra.mxu0 %v1115
  %1136 = vmatprep.subr.bf16.mxu0 0
  %1137 = vmatpush1.bf16.msra.mxu0 %v1116
  %1138 = vmatprep.subr.bf16.mxu0 0
  %1139 = vmatpush1.bf16.msra.mxu0 %v1117
  %1140 = vmatprep.subr.bf16.mxu0 0
  %1141 = vmatpush1.bf16.msra.mxu0 %v1118
  %1142 = vmatprep.subr.bf16.mxu0 0
  %1143 = vmatpush1.bf16.msra.mxu0 %v1119
  %1144 = vmatprep.subr.bf16.mxu0 0
  %1145 = vmatpush1.bf16.msra.mxu0 0
  %1146 = vmatprep.subr.bf16.mxu0 0
  %1147 = vmatpush1.bf16.msra.mxu0 0
  %1148 = vmatprep.subr.bf16.mxu0 0
  %1149 = vmatpush1.bf16.msra.mxu0 0
  %1150 = vmatprep.subr.bf16.mxu0 0
  %1151 = vmatpush1.bf16.msra.mxu0 0
  %1152 = vmatprep.subr.bf16.mxu0 0
  %1153 = vmatpush1.bf16.msra.mxu0 0
  %1154 = vmatprep.subr.bf16.mxu0 0
  %1155 = vmatpush1.bf16.msra.mxu0 0
  %1156 = vmatprep.subr.bf16.mxu0 0
  %1157 = vmatpush1.bf16.msra.mxu0 0
  %1158 = vmatprep.subr.bf16.mxu0 0
  %1159 = vmatpush1.bf16.msra.mxu0 0
  %1160 = vmatprep.mubr.bf16.mxu0 0
  %1161 = vmatmul.mubr.bf16.gmra.mrb[0].mxu0 %v824
  %v1162 = vpop.f32.mrb[0].mxu0
  %v1163 = vadd.f32 %v310, %v1162
  %v1164 = vpop.f32.mrb[0].mxu0
  %v1165 = vpop.f32.mrb[0].mxu0
  %v1166 = vadd.f32 %v310, %v1165
  %v1167 = vpop.f32.mrb[0].mxu0
  %1168 = vmatprep.mubr.bf16.mxu0 0
  %1169 = vmatmul.mubr.bf16.gmra.mrb[0].mxu0 %v825
  %v1170 = vpop.f32.mrb[0].mxu0
  %v1171 = vadd.f32 %v310, %v1170
  %v1172 = vpop.f32.mrb[0].mxu0
  %v1173 = vpop.f32.mrb[0].mxu0
  %v1174 = vadd.f32 %v310, %v1173
  %v1175 = vpop.f32.mrb[0].mxu0
  %1176 = vmatprep.mubr.bf16.mxu0 0
  %1177 = vmatmul.mubr.bf16.gmra.mrb[0].mxu0 %v826
  %v1178 = vpop.f32.mrb[0].mxu0
  %v1179 = vadd.f32 %v310, %v1178
  %v1180 = vpop.f32.mrb[0].mxu0
  %v1181 = vpop.f32.mrb[0].mxu0
  %v1182 = vadd.f32 %v310, %v1181
  %v1183 = vpop.f32.mrb[0].mxu0
  %1184 = vmatprep.mubr.bf16.mxu0 0
  %1185 = vmatmul.mubr.bf16.gmra.mrb[0].mxu0 %v827
  %v1186 = vpop.f32.mrb[0].mxu0
  %v1187 = vadd.f32 %v310, %v1186
  %v1188 = vpop.f32.mrb[0].mxu0
  %v1189 = vpop.f32.mrb[0].mxu0
  %v1190 = vadd.f32 %v310, %v1189
  %v1191 = vpop.f32.mrb[0].mxu0
  %1192 = vmatprep.mubr.bf16.mxu0 0
  %1193 = vmatmul.mubr.bf16.gmra.mrb[0].mxu0 %v828
  %v1194 = vpop.f32.mrb[0].mxu0
  %v1195 = vadd.f32 %v310, %v1194
  %v1196 = vpop.f32.mrb[0].mxu0
  %v1197 = vpop.f32.mrb[0].mxu0
  %v1198 = vadd.f32 %v310, %v1197
  %v1199 = vpop.f32.mrb[0].mxu0
  %1200 = vmatprep.mubr.bf16.mxu0 0
  %1201 = vmatmul.mubr.bf16.gmra.mrb[0].mxu0 %v829
  %v1202 = vpop.f32.mrb[0].mxu0
  %v1203 = vadd.f32 %v310, %v1202
  %v1204 = vpop.f32.mrb[0].mxu0
  %v1205 = vpop.f32.mrb[0].mxu0
  %v1206 = vadd.f32 %v310, %v1205
  %v1207 = vpop.f32.mrb[0].mxu0
  %1208 = vmatprep.mubr.bf16.mxu0 0
  %1209 = vmatmul.mubr.bf16.gmra.mrb[0].mxu0 %v830
  %v1210 = vpop.f32.mrb[0].mxu0
  %v1211 = vadd.f32 %v310, %v1210
  %v1212 = vpop.f32.mrb[0].mxu0
  %v1213 = vpop.f32.mrb[0].mxu0
  %v1214 = vadd.f32 %v310, %v1213
  %v1215 = vpop.f32.mrb[0].mxu0
  %1216 = vmatprep.mubr.bf16.mxu0 0
  %1217 = vmatmul.mubr.bf16.gmra.mrb[0].mxu0 %v831
  %v1218 = vpop.f32.mrb[0].mxu0
  %v1219 = vadd.f32 %v310, %v1218
  %v1220 = vpop.f32.mrb[0].mxu0
  %v1221 = vpop.f32.mrb[0].mxu0
  %v1222 = vadd.f32 %v310, %v1221
  %v1223 = vpop.f32.mrb[0].mxu0
  %1224 = vmatprep.mubr.bf16.mxu0 0
  %1225 = vmatmul.mubr.bf16.gmra.mrb[0].mxu0 %v832
  %v1226 = vpop.f32.mrb[0].mxu0
  %v1227 = vadd.f32 %v310, %v1226
  %v1228 = vpop.f32.mrb[0].mxu0
  %v1229 = vpop.f32.mrb[0].mxu0
  %v1230 = vadd.f32 %v310, %v1229
  %v1231 = vpop.f32.mrb[0].mxu0
  %1232 = vmatprep.mubr.bf16.mxu0 0
  %1233 = vmatmul.mubr.bf16.gmra.mrb[0].mxu0 %v833
  %v1234 = vpop.f32.mrb[0].mxu0
  %v1235 = vadd.f32 %v310, %v1234
  %v1236 = vpop.f32.mrb[0].mxu0
  %v1237 = vpop.f32.mrb[0].mxu0
  %v1238 = vadd.f32 %v310, %v1237
  %v1239 = vpop.f32.mrb[0].mxu0
  %1240 = vmatprep.mubr.bf16.mxu0 0
  %1241 = vmatmul.mubr.bf16.gmra.mrb[0].mxu0 %v834
  %v1242 = vpop.f32.mrb[0].mxu0
  %v1243 = vadd.f32 %v310, %v1242
  %v1244 = vpop.f32.mrb[0].mxu0
  %v1245 = vpop.f32.mrb[0].mxu0
  %v1246 = vadd.f32 %v310, %v1245
  %v1247 = vpop.f32.mrb[0].mxu0
  %1248 = vmatprep.mubr.bf16.mxu0 0
  %1249 = vmatmul.mubr.bf16.gmra.mrb[0].mxu0 %v835
  %v1250 = vpop.f32.mrb[0].mxu0
  %v1251 = vadd.f32 %v310, %v1250
  %v1252 = vpop.f32.mrb[0].mxu0
  %v1253 = vpop.f32.mrb[0].mxu0
  %v1254 = vadd.f32 %v310, %v1253
  %v1255 = vpop.f32.mrb[0].mxu0
  %1256 = vmatprep.mubr.bf16.mxu0 0
  %1257 = vmatmul.mubr.bf16.gmra.mrb[0].mxu0 %v836
  %v1258 = vpop.f32.mrb[0].mxu0
  %v1259 = vadd.f32 %v310, %v1258
  %v1260 = vpop.f32.mrb[0].mxu0
  %v1261 = vpop.f32.mrb[0].mxu0
  %v1262 = vadd.f32 %v310, %v1261
  %v1263 = vpop.f32.mrb[0].mxu0
  %1264 = vmatprep.mubr.bf16.mxu0 0
  %1265 = vmatmul.mubr.bf16.gmra.mrb[0].mxu0 %v837
  %v1266 = vpop.f32.mrb[0].mxu0
  %v1267 = vadd.f32 %v310, %v1266
  %v1268 = vpop.f32.mrb[0].mxu0
  %v1269 = vpop.f32.mrb[0].mxu0
  %v1270 = vadd.f32 %v310, %v1269
  %v1271 = vpop.f32.mrb[0].mxu0
  %1272 = vmatprep.mubr.bf16.mxu0 0
  %1273 = vmatmul.mubr.bf16.gmra.mrb[0].mxu0 %v838
  %v1274 = vpop.f32.mrb[0].mxu0
  %v1275 = vadd.f32 %v310, %v1274
  %v1276 = vpop.f32.mrb[0].mxu0
  %v1277 = vpop.f32.mrb[0].mxu0
  %v1278 = vadd.f32 %v310, %v1277
  %v1279 = vpop.f32.mrb[0].mxu0
  %1280 = vmatprep.mubr.bf16.mxu0 0
  %1281 = vmatmul.mubr.bf16.gmra.mrb[0].mxu0 %v839
  %v1282 = vpop.f32.mrb[0].mxu0
  %v1283 = vadd.f32 %v310, %v1282
  %v1284 = vpop.f32.mrb[0].mxu0
  %v1285 = vpop.f32.mrb[0].mxu0
  %v1286 = vadd.f32 %v310, %v1285
  %v1287 = vpop.f32.mrb[0].mxu0
  %1288 = vmatprep.mubr.bf16.mxu0 0
  %1289 = vmatmul.mubr.bf16.gmra.mrb[0].mxu0 %v840
  %v1290 = vpop.f32.mrb[0].mxu0
  %v1291 = vadd.f32 %v310, %v1290
  %v1292 = vpop.f32.mrb[0].mxu0
  %v1293 = vpop.f32.mrb[0].mxu0
  %v1294 = vadd.f32 %v310, %v1293
  %v1295 = vpop.f32.mrb[0].mxu0
  %1296 = vmatprep.mubr.bf16.mxu0 0
  %1297 = vmatmul.mubr.bf16.gmra.mrb[0].mxu0 %v841
  %v1298 = vpop.f32.mrb[0].mxu0
  %v1299 = vadd.f32 %v310, %v1298
  %v1300 = vpop.f32.mrb[0].mxu0
  %v1301 = vpop.f32.mrb[0].mxu0
  %v1302 = vadd.f32 %v310, %v1301
  %v1303 = vpop.f32.mrb[0].mxu0
  %1304 = vmatprep.mubr.bf16.mxu0 0
  %1305 = vmatmul.mubr.bf16.gmra.mrb[0].mxu0 %v842
  %v1306 = vpop.f32.mrb[0].mxu0
  %v1307 = vadd.f32 %v310, %v1306
  %v1308 = vpop.f32.mrb[0].mxu0
  %v1309 = vpop.f32.mrb[0].mxu0
  %v1310 = vadd.f32 %v310, %v1309
  %v1311 = vpop.f32.mrb[0].mxu0
  %1312 = vmatprep.mubr.bf16.mxu0 0
  %1313 = vmatmul.mubr.bf16.gmra.mrb[0].mxu0 %v843
  %v1314 = vpop.f32.mrb[0].mxu0
  %v1315 = vadd.f32 %v310, %v1314
  %v1316 = vpop.f32.mrb[0].mxu0
  %v1317 = vpop.f32.mrb[0].mxu0
  %v1318 = vadd.f32 %v310, %v1317
  %v1319 = vpop.f32.mrb[0].mxu0
  %1320 = vmatprep.mubr.bf16.mxu0 0
  %1321 = vmatmul.mubr.bf16.gmra.mrb[0].mxu0 %v844
  %v1322 = vpop.f32.mrb[0].mxu0
  %v1323 = vadd.f32 %v310, %v1322
  %v1324 = vpop.f32.mrb[0].mxu0
  %v1325 = vpop.f32.mrb[0].mxu0
  %v1326 = vadd.f32 %v310, %v1325
  %v1327 = vpop.f32.mrb[0].mxu0
  %1328 = vmatprep.mubr.bf16.mxu0 0
  %1329 = vmatmul.mubr.bf16.gmra.mrb[0].mxu0 %v845
  %v1330 = vpop.f32.mrb[0].mxu0
  %v1331 = vadd.f32 %v310, %v1330
  %v1332 = vpop.f32.mrb[0].mxu0
  %v1333 = vpop.f32.mrb[0].mxu0
  %v1334 = vadd.f32 %v310, %v1333
  %v1335 = vpop.f32.mrb[0].mxu0
  %1336 = vmatprep.mubr.bf16.mxu0 0
  %1337 = vmatmul.mubr.bf16.gmra.mrb[0].mxu0 %v846
  %v1338 = vpop.f32.mrb[0].mxu0
  %v1339 = vadd.f32 %v310, %v1338
  %v1340 = vpop.f32.mrb[0].mxu0
  %v1341 = vpop.f32.mrb[0].mxu0
  %v1342 = vadd.f32 %v310, %v1341
  %v1343 = vpop.f32.mrb[0].mxu0
  %1344 = vmatprep.mubr.bf16.mxu0 0
  %1345 = vmatmul.mubr.bf16.gmra.mrb[0].mxu0 %v847
  %v1346 = vpop.f32.mrb[0].mxu0
  %v1347 = vadd.f32 %v310, %v1346
  %v1348 = vpop.f32.mrb[0].mxu0
  %v1349 = vpop.f32.mrb[0].mxu0
  %v1350 = vadd.f32 %v310, %v1349
  %v1351 = vpop.f32.mrb[0].mxu0
  %1352 = vmatprep.mubr.bf16.mxu0 0
  %1353 = vmatmul.mubr.bf16.gmra.mrb[0].mxu0 %v848
  %v1354 = vpop.f32.mrb[0].mxu0
  %v1355 = vadd.f32 %v310, %v1354
  %v1356 = vpop.f32.mrb[0].mxu0
  %v1357 = vpop.f32.mrb[0].mxu0
  %v1358 = vadd.f32 %v310, %v1357
  %v1359 = vpop.f32.mrb[0].mxu0
  %1360 = vmatprep.mubr.bf16.mxu0 0
  %1361 = vmatmul.mubr.bf16.gmra.mrb[0].mxu0 %v849
  %v1362 = vpop.f32.mrb[0].mxu0
  %v1363 = vadd.f32 %v310, %v1362
  %v1364 = vpop.f32.mrb[0].mxu0
  %v1365 = vpop.f32.mrb[0].mxu0
  %v1366 = vadd.f32 %v310, %v1365
  %v1367 = vpop.f32.mrb[0].mxu0
  %1368 = vmatprep.mubr.bf16.mxu0 0
  %1369 = vmatmul.mubr.bf16.gmra.mrb[0].mxu0 %v850
  %v1370 = vpop.f32.mrb[0].mxu0
  %v1371 = vadd.f32 %v310, %v1370
  %v1372 = vpop.f32.mrb[0].mxu0
  %v1373 = vpop.f32.mrb[0].mxu0
  %v1374 = vadd.f32 %v310, %v1373
  %v1375 = vpop.f32.mrb[0].mxu0
  %1376 = vmatprep.mubr.bf16.mxu0 0
  %1377 = vmatmul.mubr.bf16.gmra.mrb[0].mxu0 %v851
  %v1378 = vpop.f32.mrb[0].mxu0
  %v1379 = vadd.f32 %v310, %v1378
  %v1380 = vpop.f32.mrb[0].mxu0
  %v1381 = vpop.f32.mrb[0].mxu0
  %v1382 = vadd.f32 %v310, %v1381
  %v1383 = vpop.f32.mrb[0].mxu0
  %1384 = vmatprep.mubr.bf16.mxu0 0
  %1385 = vmatmul.mubr.bf16.gmra.mrb[0].mxu0 %v852
  %v1386 = vpop.f32.mrb[0].mxu0
  %v1387 = vadd.f32 %v310, %v1386
  %v1388 = vpop.f32.mrb[0].mxu0
  %v1389 = vpop.f32.mrb[0].mxu0
  %v1390 = vadd.f32 %v310, %v1389
  %v1391 = vpop.f32.mrb[0].mxu0
  %1392 = vmatprep.mubr.bf16.mxu0 0
  %1393 = vmatmul.mubr.bf16.gmra.mrb[0].mxu0 %v853
  %v1394 = vpop.f32.mrb[0].mxu0
  %v1395 = vadd.f32 %v310, %v1394
  %v1396 = vpop.f32.mrb[0].mxu0
  %v1397 = vpop.f32.mrb[0].mxu0
  %v1398 = vadd.f32 %v310, %v1397
  %v1399 = vpop.f32.mrb[0].mxu0
  %1400 = vmatprep.mubr.bf16.mxu0 0
  %1401 = vmatmul.mubr.bf16.gmra.mrb[0].mxu0 %v854
  %v1402 = vpop.f32.mrb[0].mxu0
  %v1403 = vadd.f32 %v310, %v1402
  %v1404 = vpop.f32.mrb[0].mxu0
  %v1405 = vpop.f32.mrb[0].mxu0
  %v1406 = vadd.f32 %v310, %v1405
  %v1407 = vpop.f32.mrb[0].mxu0
  %1408 = vmatprep.mubr.bf16.mxu0 0
  %1409 = vmatmul.mubr.bf16.gmra.mrb[0].mxu0 %v855
  %v1410 = vpop.f32.mrb[0].mxu0
  %v1411 = vadd.f32 %v310, %v1410
  %v1412 = vpop.f32.mrb[0].mxu0
  %v1413 = vpop.f32.mrb[0].mxu0
  %v1414 = vadd.f32 %v310, %v1413
  %v1415 = vpop.f32.mrb[0].mxu0
  %1416 = vmatprep.mubr.bf16.mxu0 0
  %1417 = vmatmul.mubr.bf16.gmra.mrb[0].mxu0 %v856
  %v1418 = vpop.f32.mrb[0].mxu0
  %v1419 = vadd.f32 %v310, %v1418
  %v1420 = vpop.f32.mrb[0].mxu0
  %v1421 = vpop.f32.mrb[0].mxu0
  %v1422 = vadd.f32 %v310, %v1421
  %v1423 = vpop.f32.mrb[0].mxu0
  %1424 = vmatprep.mubr.bf16.mxu0 0
  %1425 = vmatmul.mubr.bf16.gmra.mrb[0].mxu0 %v857
  %v1426 = vpop.f32.mrb[0].mxu0
  %v1427 = vadd.f32 %v310, %v1426
  %v1428 = vpop.f32.mrb[0].mxu0
  %v1429 = vpop.f32.mrb[0].mxu0
  %v1430 = vadd.f32 %v310, %v1429
  %v1431 = vpop.f32.mrb[0].mxu0
  %1432 = vmatprep.mubr.bf16.mxu0 0
  %1433 = vmatmul.mubr.bf16.gmra.mrb[0].mxu0 %v858
  %v1434 = vpop.f32.mrb[0].mxu0
  %v1435 = vadd.f32 %v310, %v1434
  %v1436 = vpop.f32.mrb[0].mxu0
  %v1437 = vpop.f32.mrb[0].mxu0
  %v1438 = vadd.f32 %v310, %v1437
  %v1439 = vpop.f32.mrb[0].mxu0
  %1440 = vmatprep.mubr.bf16.mxu0 0
  %1441 = vmatmul.mubr.bf16.gmra.mrb[0].mxu0 %v859
  %v1442 = vpop.f32.mrb[0].mxu0
  %v1443 = vadd.f32 %v310, %v1442
  %v1444 = vpop.f32.mrb[0].mxu0
  %v1445 = vpop.f32.mrb[0].mxu0
  %v1446 = vadd.f32 %v310, %v1445
  %v1447 = vpop.f32.mrb[0].mxu0
  %1448 = vmatprep.mubr.bf16.mxu0 0
  %1449 = vmatmul.mubr.bf16.gmra.mrb[0].mxu0 %v860
  %v1450 = vpop.f32.mrb[0].mxu0
  %v1451 = vadd.f32 %v310, %v1450
  %v1452 = vpop.f32.mrb[0].mxu0
  %v1453 = vpop.f32.mrb[0].mxu0
  %v1454 = vadd.f32 %v310, %v1453
  %v1455 = vpop.f32.mrb[0].mxu0
  %1456 = vmatprep.mubr.bf16.mxu0 0
  %1457 = vmatmul.mubr.bf16.gmra.mrb[0].mxu0 %v861
  %v1458 = vpop.f32.mrb[0].mxu0
  %v1459 = vadd.f32 %v310, %v1458
  %v1460 = vpop.f32.mrb[0].mxu0
  %v1461 = vpop.f32.mrb[0].mxu0
  %v1462 = vadd.f32 %v310, %v1461
  %v1463 = vpop.f32.mrb[0].mxu0
  %1464 = vmatprep.mubr.bf16.mxu0 0
  %1465 = vmatmul.mubr.bf16.gmra.mrb[0].mxu0 %v862
  %v1466 = vpop.f32.mrb[0].mxu0
  %v1467 = vadd.f32 %v310, %v1466
  %v1468 = vpop.f32.mrb[0].mxu0
  %v1469 = vpop.f32.mrb[0].mxu0
  %v1470 = vadd.f32 %v310, %v1469
  %v1471 = vpop.f32.mrb[0].mxu0
  %1472 = vmatprep.mubr.bf16.mxu0 0
  %1473 = vmatmul.mubr.bf16.gmra.mrb[0].mxu0 %v863
  %v1474 = vpop.f32.mrb[0].mxu0
  %v1475 = vadd.f32 %v310, %v1474
  %v1476 = vpop.f32.mrb[0].mxu0
  %v1477 = vpop.f32.mrb[0].mxu0
  %v1478 = vadd.f32 %v310, %v1477
  %v1479 = vpop.f32.mrb[0].mxu0
  %1480 = vmatprep.mubr.bf16.mxu0 0
  %1481 = vmatmul.mubr.bf16.gmra.mrb[0].mxu0 %v864
  %v1482 = vpop.f32.mrb[0].mxu0
  %v1483 = vadd.f32 %v310, %v1482
  %v1484 = vpop.f32.mrb[0].mxu0
  %v1485 = vpop.f32.mrb[0].mxu0
  %v1486 = vadd.f32 %v310, %v1485
  %v1487 = vpop.f32.mrb[0].mxu0
  %1488 = vmatprep.mubr.bf16.mxu0 0
  %1489 = vmatmul.mubr.bf16.gmra.mrb[0].mxu0 %v865
  %v1490 = vpop.f32.mrb[0].mxu0
  %v1491 = vadd.f32 %v310, %v1490
  %v1492 = vpop.f32.mrb[0].mxu0
  %v1493 = vpop.f32.mrb[0].mxu0
  %v1494 = vadd.f32 %v310, %v1493
  %v1495 = vpop.f32.mrb[0].mxu0
  %1496 = vmatprep.mubr.bf16.mxu0 0
  %1497 = vmatmul.mubr.bf16.gmra.mrb[0].mxu0 %v866
  %v1498 = vpop.f32.mrb[0].mxu0
  %v1499 = vadd.f32 %v310, %v1498
  %v1500 = vpop.f32.mrb[0].mxu0
  %v1501 = vpop.f32.mrb[0].mxu0
  %v1502 = vadd.f32 %v310, %v1501
  %v1503 = vpop.f32.mrb[0].mxu0
  %1504 = vmatprep.mubr.bf16.mxu0 0
  %1505 = vmatmul.mubr.bf16.gmra.mrb[0].mxu0 %v867
  %v1506 = vpop.f32.mrb[0].mxu0
  %v1507 = vadd.f32 %v310, %v1506
  %v1508 = vpop.f32.mrb[0].mxu0
  %v1509 = vpop.f32.mrb[0].mxu0
  %v1510 = vadd.f32 %v310, %v1509
  %v1511 = vpop.f32.mrb[0].mxu0
  %1512 = vmatprep.mubr.bf16.mxu0 0
  %1513 = vmatmul.mubr.bf16.gmra.mrb[0].mxu0 %v868
  %v1514 = vpop.f32.mrb[0].mxu0
  %v1515 = vadd.f32 %v310, %v1514
  %v1516 = vpop.f32.mrb[0].mxu0
  %v1517 = vpop.f32.mrb[0].mxu0
  %v1518 = vadd.f32 %v310, %v1517
  %v1519 = vpop.f32.mrb[0].mxu0
  %1520 = vmatprep.mubr.bf16.mxu0 0
  %1521 = vmatmul.mubr.bf16.gmra.mrb[0].mxu0 %v869
  %v1522 = vpop.f32.mrb[0].mxu0
  %v1523 = vadd.f32 %v310, %v1522
  %v1524 = vpop.f32.mrb[0].mxu0
  %v1525 = vpop.f32.mrb[0].mxu0
  %v1526 = vadd.f32 %v310, %v1525
  %v1527 = vpop.f32.mrb[0].mxu0
  %1528 = vmatprep.mubr.bf16.mxu0 0
  %1529 = vmatmul.mubr.bf16.gmra.mrb[0].mxu0 %v870
  %v1530 = vpop.f32.mrb[0].mxu0
  %v1531 = vadd.f32 %v310, %v1530
  %v1532 = vpop.f32.mrb[0].mxu0
  %v1533 = vpop.f32.mrb[0].mxu0
  %v1534 = vadd.f32 %v310, %v1533
  %v1535 = vpop.f32.mrb[0].mxu0
  %1536 = vmatprep.mubr.bf16.mxu0 0
  %1537 = vmatmul.mubr.bf16.gmra.mrb[0].mxu0 %v871
  %v1538 = vpop.f32.mrb[0].mxu0
  %v1539 = vadd.f32 %v310, %v1538
  %v1540 = vpop.f32.mrb[0].mxu0
  %v1541 = vpop.f32.mrb[0].mxu0
  %v1542 = vadd.f32 %v310, %v1541
  %v1543 = vpop.f32.mrb[0].mxu0
  %1544 = vmatprep.mubr.bf16.mxu0 0
  %1545 = vmatmul.mubr.bf16.gmra.mrb[0].mxu0 %v872
  %v1546 = vpop.f32.mrb[0].mxu0
  %v1547 = vadd.f32 %v310, %v1546
  %v1548 = vpop.f32.mrb[0].mxu0
  %v1549 = vpop.f32.mrb[0].mxu0
  %v1550 = vadd.f32 %v310, %v1549
  %v1551 = vpop.f32.mrb[0].mxu0
  %1552 = vmatprep.mubr.bf16.mxu0 0
  %1553 = vmatmul.mubr.bf16.gmra.mrb[0].mxu0 %v873
  %v1554 = vpop.f32.mrb[0].mxu0
  %v1555 = vadd.f32 %v310, %v1554
  %v1556 = vpop.f32.mrb[0].mxu0
  %v1557 = vpop.f32.mrb[0].mxu0
  %v1558 = vadd.f32 %v310, %v1557
  %v1559 = vpop.f32.mrb[0].mxu0
  %1560 = vmatprep.mubr.bf16.mxu0 0
  %1561 = vmatmul.mubr.bf16.gmra.mrb[0].mxu0 %v874
  %v1562 = vpop.f32.mrb[0].mxu0
  %v1563 = vadd.f32 %v310, %v1562
  %v1564 = vpop.f32.mrb[0].mxu0
  %v1565 = vpop.f32.mrb[0].mxu0
  %v1566 = vadd.f32 %v310, %v1565
  %v1567 = vpop.f32.mrb[0].mxu0
  %1568 = vmatprep.mubr.bf16.mxu0 0
  %1569 = vmatmul.mubr.bf16.gmra.mrb[0].mxu0 %v875
  %v1570 = vpop.f32.mrb[0].mxu0
  %v1571 = vadd.f32 %v310, %v1570
  %v1572 = vpop.f32.mrb[0].mxu0
  %v1573 = vpop.f32.mrb[0].mxu0
  %v1574 = vadd.f32 %v310, %v1573
  %v1575 = vpop.f32.mrb[0].mxu0
  %1576 = vmatprep.mubr.bf16.mxu0 0
  %1577 = vmatmul.mubr.bf16.gmra.mrb[0].mxu0 %v876
  %v1578 = vpop.f32.mrb[0].mxu0
  %v1579 = vadd.f32 %v310, %v1578
  %v1580 = vpop.f32.mrb[0].mxu0
  %v1581 = vpop.f32.mrb[0].mxu0
  %v1582 = vadd.f32 %v310, %v1581
  %v1583 = vpop.f32.mrb[0].mxu0
  %1584 = vmatprep.mubr.bf16.mxu0 0
  %1585 = vmatmul.mubr.bf16.gmra.mrb[0].mxu0 %v877
  %v1586 = vpop.f32.mrb[0].mxu0
  %v1587 = vadd.f32 %v310, %v1586
  %v1588 = vpop.f32.mrb[0].mxu0
  %v1589 = vpop.f32.mrb[0].mxu0
  %v1590 = vadd.f32 %v310, %v1589
  %v1591 = vpop.f32.mrb[0].mxu0
  %1592 = vmatprep.mubr.bf16.mxu0 0
  %1593 = vmatmul.mubr.bf16.gmra.mrb[0].mxu0 %v878
  %v1594 = vpop.f32.mrb[0].mxu0
  %v1595 = vadd.f32 %v310, %v1594
  %v1596 = vpop.f32.mrb[0].mxu0
  %v1597 = vpop.f32.mrb[0].mxu0
  %v1598 = vadd.f32 %v310, %v1597
  %v1599 = vpop.f32.mrb[0].mxu0
  %1600 = vmatprep.mubr.bf16.mxu0 0
  %1601 = vmatmul.mubr.bf16.gmra.mrb[0].mxu0 %v879
  %v1602 = vpop.f32.mrb[0].mxu0
  %v1603 = vadd.f32 %v310, %v1602
  %v1604 = vpop.f32.mrb[0].mxu0
  %v1605 = vpop.f32.mrb[0].mxu0
  %v1606 = vadd.f32 %v310, %v1605
  %v1607 = vpop.f32.mrb[0].mxu0
  %1608 = vmatprep.mubr.bf16.mxu0 0
  %1609 = vmatmul.mubr.bf16.gmra.mrb[0].mxu0 %v880
  %v1610 = vpop.f32.mrb[0].mxu0
  %v1611 = vadd.f32 %v310, %v1610
  %v1612 = vpop.f32.mrb[0].mxu0
  %v1613 = vpop.f32.mrb[0].mxu0
  %v1614 = vadd.f32 %v310, %v1613
  %v1615 = vpop.f32.mrb[0].mxu0
  %1616 = vmatprep.mubr.bf16.mxu0 0
  %1617 = vmatmul.mubr.bf16.gmra.mrb[0].mxu0 %v881
  %v1618 = vpop.f32.mrb[0].mxu0
  %v1619 = vadd.f32 %v310, %v1618
  %v1620 = vpop.f32.mrb[0].mxu0
  %v1621 = vpop.f32.mrb[0].mxu0
  %v1622 = vadd.f32 %v310, %v1621
  %v1623 = vpop.f32.mrb[0].mxu0
  %1624 = vmatprep.mubr.bf16.mxu0 0
  %1625 = vmatmul.mubr.bf16.gmra.mrb[0].mxu0 %v882
  %v1626 = vpop.f32.mrb[0].mxu0
  %v1627 = vadd.f32 %v310, %v1626
  %v1628 = vpop.f32.mrb[0].mxu0
  %v1629 = vpop.f32.mrb[0].mxu0
  %v1630 = vadd.f32 %v310, %v1629
  %v1631 = vpop.f32.mrb[0].mxu0
  %1632 = vmatprep.mubr.bf16.mxu0 0
  %1633 = vmatmul.mubr.bf16.gmra.mrb[0].mxu0 %v883
  %v1634 = vpop.f32.mrb[0].mxu0
  %v1635 = vadd.f32 %v310, %v1634
  %v1636 = vpop.f32.mrb[0].mxu0
  %v1637 = vpop.f32.mrb[0].mxu0
  %v1638 = vadd.f32 %v310, %v1637
  %v1639 = vpop.f32.mrb[0].mxu0
  %1640 = vmatprep.mubr.bf16.mxu0 0
  %1641 = vmatmul.mubr.bf16.gmra.mrb[0].mxu0 %v884
  %v1642 = vpop.f32.mrb[0].mxu0
  %v1643 = vadd.f32 %v310, %v1642
  %v1644 = vpop.f32.mrb[0].mxu0
  %v1645 = vpop.f32.mrb[0].mxu0
  %v1646 = vadd.f32 %v310, %v1645
  %v1647 = vpop.f32.mrb[0].mxu0
  %1648 = vmatprep.mubr.bf16.mxu0 0
  %1649 = vmatmul.mubr.bf16.gmra.mrb[0].mxu0 %v885
  %v1650 = vpop.f32.mrb[0].mxu0
  %v1651 = vadd.f32 %v310, %v1650
  %v1652 = vpop.f32.mrb[0].mxu0
  %v1653 = vpop.f32.mrb[0].mxu0
  %v1654 = vadd.f32 %v310, %v1653
  %v1655 = vpop.f32.mrb[0].mxu0
  %1656 = vmatprep.mubr.bf16.mxu0 0
  %1657 = vmatmul.mubr.bf16.gmra.mrb[0].mxu0 %v886
  %v1658 = vpop.f32.mrb[0].mxu0
  %v1659 = vadd.f32 %v310, %v1658
  %v1660 = vpop.f32.mrb[0].mxu0
  %v1661 = vpop.f32.mrb[0].mxu0
  %v1662 = vadd.f32 %v310, %v1661
  %v1663 = vpop.f32.mrb[0].mxu0
  %1664 = vmatprep.mubr.bf16.mxu0 0
  %1665 = vmatmul.mubr.bf16.gmra.mrb[0].mxu0 %v887
  %v1666 = vpop.f32.mrb[0].mxu0
  %v1667 = vadd.f32 %v310, %v1666
  %v1668 = vpop.f32.mrb[0].mxu0
  %v1669 = vpop.f32.mrb[0].mxu0
  %v1670 = vadd.f32 %v310, %v1669
  %v1671 = vpop.f32.mrb[0].mxu0
  %1672 = vmatprep.mubr.bf16.mxu0 0
  %1673 = vmatmul.mubr.bf16.gmra.mrb[0].mxu0 %v888
  %v1674 = vpop.f32.mrb[0].mxu0
  %v1675 = vadd.f32 %v310, %v1674
  %v1676 = vpop.f32.mrb[0].mxu0
  %v1677 = vpop.f32.mrb[0].mxu0
  %v1678 = vadd.f32 %v310, %v1677
  %v1679 = vpop.f32.mrb[0].mxu0
  %1680 = vmatprep.mubr.bf16.mxu0 0
  %1681 = vmatmul.mubr.bf16.gmra.mrb[0].mxu0 %v889
  %v1682 = vpop.f32.mrb[0].mxu0
  %v1683 = vadd.f32 %v310, %v1682
  %v1684 = vpop.f32.mrb[0].mxu0
  %v1685 = vpop.f32.mrb[0].mxu0
  %v1686 = vadd.f32 %v310, %v1685
  %v1687 = vpop.f32.mrb[0].mxu0
  %1688 = vmatprep.mubr.bf16.mxu0 0
  %1689 = vmatmul.mubr.bf16.gmra.mrb[0].mxu0 %v890
  %v1690 = vpop.f32.mrb[0].mxu0
  %v1691 = vadd.f32 %v310, %v1690
  %v1692 = vpop.f32.mrb[0].mxu0
  %v1693 = vpop.f32.mrb[0].mxu0
  %v1694 = vadd.f32 %v310, %v1693
  %v1695 = vpop.f32.mrb[0].mxu0
  %1696 = vmatprep.mubr.bf16.mxu0 0
  %1697 = vmatmul.mubr.bf16.gmra.mrb[0].mxu0 %v891
  %v1698 = vpop.f32.mrb[0].mxu0
  %v1699 = vadd.f32 %v310, %v1698
  %v1700 = vpop.f32.mrb[0].mxu0
  %v1701 = vpop.f32.mrb[0].mxu0
  %v1702 = vadd.f32 %v310, %v1701
  %v1703 = vpop.f32.mrb[0].mxu0
  %1704 = vmatprep.mubr.bf16.mxu0 0
  %1705 = vmatmul.mubr.bf16.gmra.mrb[0].mxu0 %v892
  %v1706 = vpop.f32.mrb[0].mxu0
  %v1707 = vadd.f32 %v310, %v1706
  %v1708 = vpop.f32.mrb[0].mxu0
  %v1709 = vpop.f32.mrb[0].mxu0
  %v1710 = vadd.f32 %v310, %v1709
  %v1711 = vpop.f32.mrb[0].mxu0
  %1712 = vmatprep.mubr.bf16.mxu0 0
  %1713 = vmatmul.mubr.bf16.gmra.mrb[0].mxu0 %v893
  %v1714 = vpop.f32.mrb[0].mxu0
  %v1715 = vadd.f32 %v310, %v1714
  %v1716 = vpop.f32.mrb[0].mxu0
  %v1717 = vpop.f32.mrb[0].mxu0
  %v1718 = vadd.f32 %v310, %v1717
  %v1719 = vpop.f32.mrb[0].mxu0
  %1720 = vmatprep.mubr.bf16.mxu0 0
  %1721 = vmatmul.mubr.bf16.gmra.mrb[0].mxu0 %v894
  %v1722 = vpop.f32.mrb[0].mxu0
  %v1723 = vadd.f32 %v310, %v1722
  %v1724 = vpop.f32.mrb[0].mxu0
  %v1725 = vpop.f32.mrb[0].mxu0
  %v1726 = vadd.f32 %v310, %v1725
  %v1727 = vpop.f32.mrb[0].mxu0
  %1728 = vmatprep.mubr.bf16.mxu0 0
  %1729 = vmatmul.mubr.bf16.gmra.mrb[0].mxu0 %v895
  %v1730 = vpop.f32.mrb[0].mxu0
  %v1731 = vadd.f32 %v310, %v1730
  %v1732 = vpop.f32.mrb[0].mxu0
  %v1733 = vpop.f32.mrb[0].mxu0
  %v1734 = vadd.f32 %v310, %v1733
  %v1735 = vpop.f32.mrb[0].mxu0
  %1736 = vmatprep.mubr.bf16.mxu0 0
  %1737 = vmatmul.mubr.bf16.gmra.mrb[0].mxu0 %v896
  %v1738 = vpop.f32.mrb[0].mxu0
  %v1739 = vadd.f32 %v310, %v1738
  %v1740 = vpop.f32.mrb[0].mxu0
  %v1741 = vpop.f32.mrb[0].mxu0
  %v1742 = vadd.f32 %v310, %v1741
  %v1743 = vpop.f32.mrb[0].mxu0
  %1744 = vmatprep.mubr.bf16.mxu0 0
  %1745 = vmatmul.mubr.bf16.gmra.mrb[0].mxu0 %v897
  %v1746 = vpop.f32.mrb[0].mxu0
  %v1747 = vadd.f32 %v310, %v1746
  %v1748 = vpop.f32.mrb[0].mxu0
  %v1749 = vpop.f32.mrb[0].mxu0
  %v1750 = vadd.f32 %v310, %v1749
  %v1751 = vpop.f32.mrb[0].mxu0
  %1752 = vmatprep.mubr.bf16.mxu0 0
  %1753 = vmatmul.mubr.bf16.gmra.mrb[0].mxu0 %v898
  %v1754 = vpop.f32.mrb[0].mxu0
  %v1755 = vadd.f32 %v310, %v1754
  %v1756 = vpop.f32.mrb[0].mxu0
  %v1757 = vpop.f32.mrb[0].mxu0
  %v1758 = vadd.f32 %v310, %v1757
  %v1759 = vpop.f32.mrb[0].mxu0
  %1760 = vmatprep.mubr.bf16.mxu0 0
  %1761 = vmatmul.mubr.bf16.gmra.mrb[0].mxu0 %v899
  %v1762 = vpop.f32.mrb[0].mxu0
  %v1763 = vadd.f32 %v310, %v1762
  %v1764 = vpop.f32.mrb[0].mxu0
  %v1765 = vpop.f32.mrb[0].mxu0
  %v1766 = vadd.f32 %v310, %v1765
  %v1767 = vpop.f32.mrb[0].mxu0
  %1768 = vmatprep.mubr.bf16.mxu0 0
  %1769 = vmatmul.mubr.bf16.gmra.mrb[0].mxu0 %v900
  %v1770 = vpop.f32.mrb[0].mxu0
  %v1771 = vadd.f32 %v310, %v1770
  %v1772 = vpop.f32.mrb[0].mxu0
  %v1773 = vpop.f32.mrb[0].mxu0
  %v1774 = vadd.f32 %v310, %v1773
  %v1775 = vpop.f32.mrb[0].mxu0
  %1776 = vmatprep.mubr.bf16.mxu0 0
  %1777 = vmatmul.mubr.bf16.gmra.mrb[0].mxu0 %v901
  %v1778 = vpop.f32.mrb[0].mxu0
  %v1779 = vadd.f32 %v310, %v1778
  %v1780 = vpop.f32.mrb[0].mxu0
  %v1781 = vpop.f32.mrb[0].mxu0
  %v1782 = vadd.f32 %v310, %v1781
  %v1783 = vpop.f32.mrb[0].mxu0
  %1784 = vmatprep.mubr.bf16.mxu0 0
  %1785 = vmatmul.mubr.bf16.gmra.mrb[0].mxu0 %v902
  %v1786 = vpop.f32.mrb[0].mxu0
  %v1787 = vadd.f32 %v310, %v1786
  %v1788 = vpop.f32.mrb[0].mxu0
  %v1789 = vpop.f32.mrb[0].mxu0
  %v1790 = vadd.f32 %v310, %v1789
  %v1791 = vpop.f32.mrb[0].mxu0
  %1792 = vmatprep.mubr.bf16.mxu0 0
  %1793 = vmatmul.mubr.bf16.gmra.mrb[0].mxu0 %v903
  %v1794 = vpop.f32.mrb[0].mxu0
  %v1795 = vadd.f32 %v310, %v1794
  %v1796 = vpop.f32.mrb[0].mxu0
  %v1797 = vpop.f32.mrb[0].mxu0
  %v1798 = vadd.f32 %v310, %v1797
  %v1799 = vpop.f32.mrb[0].mxu0
  %1800 = vmatprep.mubr.bf16.mxu0 0
  %1801 = vmatmul.mubr.bf16.gmra.mrb[0].mxu0 %v904
  %v1802 = vpop.f32.mrb[0].mxu0
  %v1803 = vadd.f32 %v310, %v1802
  %v1804 = vpop.f32.mrb[0].mxu0
  %v1805 = vpop.f32.mrb[0].mxu0
  %v1806 = vadd.f32 %v310, %v1805
  %v1807 = vpop.f32.mrb[0].mxu0
  %1808 = vmatprep.mubr.bf16.mxu0 0
  %1809 = vmatmul.mubr.bf16.gmra.mrb[0].mxu0 %v905
  %v1810 = vpop.f32.mrb[0].mxu0
  %v1811 = vadd.f32 %v310, %v1810
  %v1812 = vpop.f32.mrb[0].mxu0
  %v1813 = vpop.f32.mrb[0].mxu0
  %v1814 = vadd.f32 %v310, %v1813
  %v1815 = vpop.f32.mrb[0].mxu0
  %1816 = vmatprep.mubr.bf16.mxu0 0
  %1817 = vmatmul.mubr.bf16.gmra.mrb[0].mxu0 %v906
  %v1818 = vpop.f32.mrb[0].mxu0
  %v1819 = vadd.f32 %v310, %v1818
  %v1820 = vpop.f32.mrb[0].mxu0
  %v1821 = vpop.f32.mrb[0].mxu0
  %v1822 = vadd.f32 %v310, %v1821
  %v1823 = vpop.f32.mrb[0].mxu0
  %1824 = vmatprep.mubr.bf16.mxu0 0
  %1825 = vmatmul.mubr.bf16.gmra.mrb[0].mxu0 %v907
  %v1826 = vpop.f32.mrb[0].mxu0
  %v1827 = vadd.f32 %v310, %v1826
  %v1828 = vpop.f32.mrb[0].mxu0
  %v1829 = vpop.f32.mrb[0].mxu0
  %v1830 = vadd.f32 %v310, %v1829
  %v1831 = vpop.f32.mrb[0].mxu0
  %1832 = vmatprep.mubr.bf16.mxu0 0
  %1833 = vmatmul.mubr.bf16.gmra.mrb[0].mxu0 %v908
  %v1834 = vpop.f32.mrb[0].mxu0
  %v1835 = vadd.f32 %v310, %v1834
  %v1836 = vpop.f32.mrb[0].mxu0
  %v1837 = vpop.f32.mrb[0].mxu0
  %v1838 = vadd.f32 %v310, %v1837
  %v1839 = vpop.f32.mrb[0].mxu0
  %1840 = vmatprep.mubr.bf16.mxu0 0
  %1841 = vmatmul.mubr.bf16.gmra.mrb[0].mxu0 %v909
  %v1842 = vpop.f32.mrb[0].mxu0
  %v1843 = vadd.f32 %v310, %v1842
  %v1844 = vpop.f32.mrb[0].mxu0
  %v1845 = vpop.f32.mrb[0].mxu0
  %v1846 = vadd.f32 %v310, %v1845
  %v1847 = vpop.f32.mrb[0].mxu0
  %1848 = vmatprep.mubr.bf16.mxu0 0
  %1849 = vmatmul.mubr.bf16.gmra.mrb[0].mxu0 %v910
  %v1850 = vpop.f32.mrb[0].mxu0
  %v1851 = vadd.f32 %v310, %v1850
  %v1852 = vpop.f32.mrb[0].mxu0
  %v1853 = vpop.f32.mrb[0].mxu0
  %v1854 = vadd.f32 %v310, %v1853
  %v1855 = vpop.f32.mrb[0].mxu0
  %1856 = vmatprep.mubr.bf16.mxu0 0
  %1857 = vmatmul.mubr.bf16.gmra.mrb[0].mxu0 %v911
  %v1858 = vpop.f32.mrb[0].mxu0
  %v1859 = vadd.f32 %v310, %v1858
  %v1860 = vpop.f32.mrb[0].mxu0
  %v1861 = vpop.f32.mrb[0].mxu0
  %v1862 = vadd.f32 %v310, %v1861
  %v1863 = vpop.f32.mrb[0].mxu0
  %1864 = vmatprep.mubr.bf16.mxu0 0
  %1865 = vmatmul.mubr.bf16.gmra.mrb[0].mxu0 %v912
  %v1866 = vpop.f32.mrb[0].mxu0
  %v1867 = vadd.f32 %v310, %v1866
  %v1868 = vpop.f32.mrb[0].mxu0
  %v1869 = vpop.f32.mrb[0].mxu0
  %v1870 = vadd.f32 %v310, %v1869
  %v1871 = vpop.f32.mrb[0].mxu0
  %1872 = vmatprep.mubr.bf16.mxu0 0
  %1873 = vmatmul.mubr.bf16.gmra.mrb[0].mxu0 %v913
  %v1874 = vpop.f32.mrb[0].mxu0
  %v1875 = vadd.f32 %v310, %v1874
  %v1876 = vpop.f32.mrb[0].mxu0
  %v1877 = vpop.f32.mrb[0].mxu0
  %v1878 = vadd.f32 %v310, %v1877
  %v1879 = vpop.f32.mrb[0].mxu0
  %1880 = vmatprep.mubr.bf16.mxu0 0
  %1881 = vmatmul.mubr.bf16.gmra.mrb[0].mxu0 %v914
  %v1882 = vpop.f32.mrb[0].mxu0
  %v1883 = vadd.f32 %v310, %v1882
  %v1884 = vpop.f32.mrb[0].mxu0
  %v1885 = vpop.f32.mrb[0].mxu0
  %v1886 = vadd.f32 %v310, %v1885
  %v1887 = vpop.f32.mrb[0].mxu0
  %1888 = vmatprep.mubr.bf16.mxu0 0
  %1889 = vmatmul.mubr.bf16.gmra.mrb[0].mxu0 %v915
  %v1890 = vpop.f32.mrb[0].mxu0
  %v1891 = vadd.f32 %v310, %v1890
  %v1892 = vpop.f32.mrb[0].mxu0
  %v1893 = vpop.f32.mrb[0].mxu0
  %v1894 = vadd.f32 %v310, %v1893
  %v1895 = vpop.f32.mrb[0].mxu0
  %1896 = vmatprep.mubr.bf16.mxu0 0
  %1897 = vmatmul.mubr.bf16.gmra.mrb[0].mxu0 %v916
  %v1898 = vpop.f32.mrb[0].mxu0
  %v1899 = vadd.f32 %v310, %v1898
  %v1900 = vpop.f32.mrb[0].mxu0
  %v1901 = vpop.f32.mrb[0].mxu0
  %v1902 = vadd.f32 %v310, %v1901
  %v1903 = vpop.f32.mrb[0].mxu0
  %1904 = vmatprep.mubr.bf16.mxu0 0
  %1905 = vmatmul.mubr.bf16.gmra.mrb[0].mxu0 %v917
  %v1906 = vpop.f32.mrb[0].mxu0
  %v1907 = vadd.f32 %v310, %v1906
  %v1908 = vpop.f32.mrb[0].mxu0
  %v1909 = vpop.f32.mrb[0].mxu0
  %v1910 = vadd.f32 %v310, %v1909
  %v1911 = vpop.f32.mrb[0].mxu0
  %1912 = vmatprep.mubr.bf16.mxu0 0
  %1913 = vmatmul.mubr.bf16.gmra.mrb[0].mxu0 %v918
  %v1914 = vpop.f32.mrb[0].mxu0
  %v1915 = vadd.f32 %v310, %v1914
  %v1916 = vpop.f32.mrb[0].mxu0
  %v1917 = vpop.f32.mrb[0].mxu0
  %v1918 = vadd.f32 %v310, %v1917
  %v1919 = vpop.f32.mrb[0].mxu0
  %1920 = vmatprep.mubr.bf16.mxu0 0
  %1921 = vmatmul.mubr.bf16.gmra.mrb[0].mxu0 %v919
  %v1922 = vpop.f32.mrb[0].mxu0
  %v1923 = vadd.f32 %v310, %v1922
  %v1924 = vpop.f32.mrb[0].mxu0
  %v1925 = vpop.f32.mrb[0].mxu0
  %v1926 = vadd.f32 %v310, %v1925
  %v1927 = vpop.f32.mrb[0].mxu0
  %1928 = vmatprep.mubr.bf16.mxu0 0
  %1929 = vmatmul.mubr.bf16.gmra.mrb[0].mxu0 %v920
  %v1930 = vpop.f32.mrb[0].mxu0
  %v1931 = vadd.f32 %v310, %v1930
  %v1932 = vpop.f32.mrb[0].mxu0
  %v1933 = vpop.f32.mrb[0].mxu0
  %v1934 = vadd.f32 %v310, %v1933
  %v1935 = vpop.f32.mrb[0].mxu0
  %1936 = vmatprep.mubr.bf16.mxu0 0
  %1937 = vmatmul.mubr.bf16.gmra.mrb[0].mxu0 %v921
  %v1938 = vpop.f32.mrb[0].mxu0
  %v1939 = vadd.f32 %v310, %v1938
  %v1940 = vpop.f32.mrb[0].mxu0
  %v1941 = vpop.f32.mrb[0].mxu0
  %v1942 = vadd.f32 %v310, %v1941
  %v1943 = vpop.f32.mrb[0].mxu0
  %1944 = vmatprep.mubr.bf16.mxu0 0
  %1945 = vmatmul.mubr.bf16.gmra.mrb[0].mxu0 %v922
  %v1946 = vpop.f32.mrb[0].mxu0
  %v1947 = vadd.f32 %v310, %v1946
  %v1948 = vpop.f32.mrb[0].mxu0
  %v1949 = vpop.f32.mrb[0].mxu0
  %v1950 = vadd.f32 %v310, %v1949
  %v1951 = vpop.f32.mrb[0].mxu0
  %1952 = vmatprep.mubr.bf16.mxu0 0
  %1953 = vmatmul.mubr.bf16.gmra.mrb[0].mxu0 %v923
  %v1954 = vpop.f32.mrb[0].mxu0
  %v1955 = vadd.f32 %v310, %v1954
  %v1956 = vpop.f32.mrb[0].mxu0
  %v1957 = vpop.f32.mrb[0].mxu0
  %v1958 = vadd.f32 %v310, %v1957
  %v1959 = vpop.f32.mrb[0].mxu0
  %1960 = vmatprep.mubr.bf16.mxu0 0
  %1961 = vmatmul.mubr.bf16.gmra.mrb[0].mxu0 %v924
  %v1962 = vpop.f32.mrb[0].mxu0
  %v1963 = vadd.f32 %v310, %v1962
  %v1964 = vpop.f32.mrb[0].mxu0
  %v1965 = vpop.f32.mrb[0].mxu0
  %v1966 = vadd.f32 %v310, %v1965
  %v1967 = vpop.f32.mrb[0].mxu0
  %1968 = vmatprep.mubr.bf16.mxu0 0
  %1969 = vmatmul.mubr.bf16.gmra.mrb[0].mxu0 %v925
  %v1970 = vpop.f32.mrb[0].mxu0
  %v1971 = vadd.f32 %v310, %v1970
  %v1972 = vpop.f32.mrb[0].mxu0
  %v1973 = vpop.f32.mrb[0].mxu0
  %v1974 = vadd.f32 %v310, %v1973
  %v1975 = vpop.f32.mrb[0].mxu0
  %1976 = vmatprep.mubr.bf16.mxu0 0
  %1977 = vmatmul.mubr.bf16.gmra.mrb[0].mxu0 %v926
  %v1978 = vpop.f32.mrb[0].mxu0
  %v1979 = vadd.f32 %v310, %v1978
  %v1980 = vpop.f32.mrb[0].mxu0
  %v1981 = vpop.f32.mrb[0].mxu0
  %v1982 = vadd.f32 %v310, %v1981
  %v1983 = vpop.f32.mrb[0].mxu0
  %1984 = vmatprep.mubr.bf16.mxu0 0
  %1985 = vmatmul.mubr.bf16.gmra.mrb[0].mxu0 %v927
  %v1986 = vpop.f32.mrb[0].mxu0
  %v1987 = vadd.f32 %v310, %v1986
  %v1988 = vpop.f32.mrb[0].mxu0
  %v1989 = vpop.f32.mrb[0].mxu0
  %v1990 = vadd.f32 %v310, %v1989
  %v1991 = vpop.f32.mrb[0].mxu0
  %1992 = vmatprep.mubr.bf16.mxu0 0
  %1993 = vmatmul.mubr.bf16.gmra.mrb[0].mxu0 %v928
  %v1994 = vpop.f32.mrb[0].mxu0
  %v1995 = vadd.f32 %v310, %v1994
  %v1996 = vpop.f32.mrb[0].mxu0
  %v1997 = vpop.f32.mrb[0].mxu0
  %v1998 = vadd.f32 %v310, %v1997
  %v1999 = vpop.f32.mrb[0].mxu0
  %2000 = vmatprep.mubr.bf16.mxu0 0
  %2001 = vmatmul.mubr.bf16.gmra.mrb[0].mxu0 %v929
  %v2002 = vpop.f32.mrb[0].mxu0
  %v2003 = vadd.f32 %v310, %v2002
  %v2004 = vpop.f32.mrb[0].mxu0
  %v2005 = vpop.f32.mrb[0].mxu0
  %v2006 = vadd.f32 %v310, %v2005
  %v2007 = vpop.f32.mrb[0].mxu0
  %2008 = vmatprep.mubr.bf16.mxu0 0
  %2009 = vmatmul.mubr.bf16.gmra.mrb[0].mxu0 %v930
  %v2010 = vpop.f32.mrb[0].mxu0
  %v2011 = vadd.f32 %v310, %v2010
  %v2012 = vpop.f32.mrb[0].mxu0
  %v2013 = vpop.f32.mrb[0].mxu0
  %v2014 = vadd.f32 %v310, %v2013
  %v2015 = vpop.f32.mrb[0].mxu0
  %2016 = vmatprep.mubr.bf16.mxu0 0
  %2017 = vmatmul.mubr.bf16.gmra.mrb[0].mxu0 %v931
  %v2018 = vpop.f32.mrb[0].mxu0
  %v2019 = vadd.f32 %v310, %v2018
  %v2020 = vpop.f32.mrb[0].mxu0
  %v2021 = vpop.f32.mrb[0].mxu0
  %v2022 = vadd.f32 %v310, %v2021
  %v2023 = vpop.f32.mrb[0].mxu0
  %2024 = vmatprep.mubr.bf16.mxu0 0
  %2025 = vmatmul.mubr.bf16.gmra.mrb[0].mxu0 %v932
  %v2026 = vpop.f32.mrb[0].mxu0
  %v2027 = vadd.f32 %v310, %v2026
  %v2028 = vpop.f32.mrb[0].mxu0
  %v2029 = vpop.f32.mrb[0].mxu0
  %v2030 = vadd.f32 %v310, %v2029
  %v2031 = vpop.f32.mrb[0].mxu0
  %2032 = vmatprep.mubr.bf16.mxu0 0
  %2033 = vmatmul.mubr.bf16.gmra.mrb[0].mxu0 %v933
  %v2034 = vpop.f32.mrb[0].mxu0
  %v2035 = vadd.f32 %v310, %v2034
  %v2036 = vpop.f32.mrb[0].mxu0
  %v2037 = vpop.f32.mrb[0].mxu0
  %v2038 = vadd.f32 %v310, %v2037
  %v2039 = vpop.f32.mrb[0].mxu0
  %2040 = vmatprep.mubr.bf16.mxu0 0
  %2041 = vmatmul.mubr.bf16.gmra.mrb[0].mxu0 %v934
  %v2042 = vpop.f32.mrb[0].mxu0
  %v2043 = vadd.f32 %v310, %v2042
  %v2044 = vpop.f32.mrb[0].mxu0
  %v2045 = vpop.f32.mrb[0].mxu0
  %v2046 = vadd.f32 %v310, %v2045
  %v2047 = vpop.f32.mrb[0].mxu0
  %2048 = vmatprep.mubr.bf16.mxu0 0
  %2049 = vmatmul.mubr.bf16.gmra.mrb[0].mxu0 %v935
  %v2050 = vpop.f32.mrb[0].mxu0
  %v2051 = vadd.f32 %v310, %v2050
  %v2052 = vpop.f32.mrb[0].mxu0
  %v2053 = vpop.f32.mrb[0].mxu0
  %v2054 = vadd.f32 %v310, %v2053
  %v2055 = vpop.f32.mrb[0].mxu0
  %2056 = vmatprep.mubr.bf16.mxu0 0
  %2057 = vmatmul.mubr.bf16.gmra.mrb[0].mxu0 %v936
  %v2058 = vpop.f32.mrb[0].mxu0
  %v2059 = vadd.f32 %v310, %v2058
  %v2060 = vpop.f32.mrb[0].mxu0
  %v2061 = vpop.f32.mrb[0].mxu0
  %v2062 = vadd.f32 %v310, %v2061
  %v2063 = vpop.f32.mrb[0].mxu0
  %2064 = vmatprep.mubr.bf16.mxu0 0
  %2065 = vmatmul.mubr.bf16.gmra.mrb[0].mxu0 %v937
  %v2066 = vpop.f32.mrb[0].mxu0
  %v2067 = vadd.f32 %v310, %v2066
  %v2068 = vpop.f32.mrb[0].mxu0
  %v2069 = vpop.f32.mrb[0].mxu0
  %v2070 = vadd.f32 %v310, %v2069
  %v2071 = vpop.f32.mrb[0].mxu0
  %2072 = vmatprep.mubr.bf16.mxu0 0
  %2073 = vmatmul.mubr.bf16.gmra.mrb[0].mxu0 %v938
  %v2074 = vpop.f32.mrb[0].mxu0
  %v2075 = vadd.f32 %v310, %v2074
  %v2076 = vpop.f32.mrb[0].mxu0
  %v2077 = vpop.f32.mrb[0].mxu0
  %v2078 = vadd.f32 %v310, %v2077
  %v2079 = vpop.f32.mrb[0].mxu0
  %2080 = vmatprep.mubr.bf16.mxu0 0
  %2081 = vmatmul.mubr.bf16.gmra.mrb[0].mxu0 %v939
  %v2082 = vpop.f32.mrb[0].mxu0
  %v2083 = vadd.f32 %v310, %v2082
  %v2084 = vpop.f32.mrb[0].mxu0
  %v2085 = vpop.f32.mrb[0].mxu0
  %v2086 = vadd.f32 %v310, %v2085
  %v2087 = vpop.f32.mrb[0].mxu0
  %2088 = vmatprep.mubr.bf16.mxu0 0
  %2089 = vmatmul.mubr.bf16.gmra.mrb[0].mxu0 %v940
  %v2090 = vpop.f32.mrb[0].mxu0
  %v2091 = vadd.f32 %v310, %v2090
  %v2092 = vpop.f32.mrb[0].mxu0
  %v2093 = vpop.f32.mrb[0].mxu0
  %v2094 = vadd.f32 %v310, %v2093
  %v2095 = vpop.f32.mrb[0].mxu0
  %2096 = vmatprep.mubr.bf16.mxu0 0
  %2097 = vmatmul.mubr.bf16.gmra.mrb[0].mxu0 %v941
  %v2098 = vpop.f32.mrb[0].mxu0
  %v2099 = vadd.f32 %v310, %v2098
  %v2100 = vpop.f32.mrb[0].mxu0
  %v2101 = vpop.f32.mrb[0].mxu0
  %v2102 = vadd.f32 %v310, %v2101
  %v2103 = vpop.f32.mrb[0].mxu0
  %2104 = vmatprep.mubr.bf16.mxu0 0
  %2105 = vmatmul.mubr.bf16.gmra.mrb[0].mxu0 %v942
  %v2106 = vpop.f32.mrb[0].mxu0
  %v2107 = vadd.f32 %v310, %v2106
  %v2108 = vpop.f32.mrb[0].mxu0
  %v2109 = vpop.f32.mrb[0].mxu0
  %v2110 = vadd.f32 %v310, %v2109
  %v2111 = vpop.f32.mrb[0].mxu0
  %2112 = vmatprep.mubr.bf16.mxu0 0
  %2113 = vmatmul.mubr.bf16.gmra.mrb[0].mxu0 %v943
  %v2114 = vpop.f32.mrb[0].mxu0
  %v2115 = vadd.f32 %v310, %v2114
  %v2116 = vpop.f32.mrb[0].mxu0
  %v2117 = vpop.f32.mrb[0].mxu0
  %v2118 = vadd.f32 %v310, %v2117
  %v2119 = vpop.f32.mrb[0].mxu0
  %2120 = vmatprep.mubr.bf16.mxu0 0
  %2121 = vmatmul.mubr.bf16.gmra.mrb[0].mxu0 %v944
  %v2122 = vpop.f32.mrb[0].mxu0
  %v2123 = vadd.f32 %v310, %v2122
  %v2124 = vpop.f32.mrb[0].mxu0
  %v2125 = vpop.f32.mrb[0].mxu0
  %v2126 = vadd.f32 %v310, %v2125
  %v2127 = vpop.f32.mrb[0].mxu0
  %2128 = vmatprep.mubr.bf16.mxu0 0
  %2129 = vmatmul.mubr.bf16.gmra.mrb[0].mxu0 %v945
  %v2130 = vpop.f32.mrb[0].mxu0
  %v2131 = vadd.f32 %v310, %v2130
  %v2132 = vpop.f32.mrb[0].mxu0
  %v2133 = vpop.f32.mrb[0].mxu0
  %v2134 = vadd.f32 %v310, %v2133
  %v2135 = vpop.f32.mrb[0].mxu0
  %2136 = vmatprep.mubr.bf16.mxu0 0
  %2137 = vmatmul.mubr.bf16.gmra.mrb[0].mxu0 %v946
  %v2138 = vpop.f32.mrb[0].mxu0
  %v2139 = vadd.f32 %v310, %v2138
  %v2140 = vpop.f32.mrb[0].mxu0
  %v2141 = vpop.f32.mrb[0].mxu0
  %v2142 = vadd.f32 %v310, %v2141
  %v2143 = vpop.f32.mrb[0].mxu0
  %2144 = vmatprep.mubr.bf16.mxu0 0
  %2145 = vmatmul.mubr.bf16.gmra.mrb[0].mxu0 %v947
  %v2146 = vpop.f32.mrb[0].mxu0
  %v2147 = vadd.f32 %v310, %v2146
  %v2148 = vpop.f32.mrb[0].mxu0
  %v2149 = vpop.f32.mrb[0].mxu0
  %v2150 = vadd.f32 %v310, %v2149
  %v2151 = vpop.f32.mrb[0].mxu0
  %2152 = vmatprep.mubr.bf16.mxu0 0
  %2153 = vmatmul.mubr.bf16.gmra.mrb[0].mxu0 %v948
  %v2154 = vpop.f32.mrb[0].mxu0
  %v2155 = vadd.f32 %v310, %v2154
  %v2156 = vpop.f32.mrb[0].mxu0
  %v2157 = vpop.f32.mrb[0].mxu0
  %v2158 = vadd.f32 %v310, %v2157
  %v2159 = vpop.f32.mrb[0].mxu0
  %2160 = vmatprep.mubr.bf16.mxu0 0
  %2161 = vmatmul.mubr.bf16.gmra.mrb[0].mxu0 %v949
  %v2162 = vpop.f32.mrb[0].mxu0
  %v2163 = vadd.f32 %v310, %v2162
  %v2164 = vpop.f32.mrb[0].mxu0
  %v2165 = vpop.f32.mrb[0].mxu0
  %v2166 = vadd.f32 %v310, %v2165
  %v2167 = vpop.f32.mrb[0].mxu0
  %2168 = vmatprep.mubr.bf16.mxu0 0
  %2169 = vmatmul.mubr.bf16.gmra.mrb[0].mxu0 %v950
  %v2170 = vpop.f32.mrb[0].mxu0
  %v2171 = vadd.f32 %v310, %v2170
  %v2172 = vpop.f32.mrb[0].mxu0
  %v2173 = vpop.f32.mrb[0].mxu0
  %v2174 = vadd.f32 %v310, %v2173
  %v2175 = vpop.f32.mrb[0].mxu0
  %2176 = vmatprep.mubr.bf16.mxu0 0
  %2177 = vmatmul.mubr.bf16.gmra.mrb[0].mxu0 %v951
  %v2178 = vpop.f32.mrb[0].mxu0
  %v2179 = vadd.f32 %v310, %v2178
  %v2180 = vpop.f32.mrb[0].mxu0
  %v2181 = vpop.f32.mrb[0].mxu0
  %v2182 = vadd.f32 %v310, %v2181
  %v2183 = vpop.f32.mrb[0].mxu0
  %2184 = vdwg.mxu0
  %v2185 = vmax.f32 %v1163, 0.0
  %v2186 = vmax.f32 %v1166, 0.0
  %v2187 = vmax.f32 %v1171, 0.0
  %v2188 = vmax.f32 %v1174, 0.0
  %v2189 = vmax.f32 %v1179, 0.0
  %v2190 = vmax.f32 %v1182, 0.0
  %v2191 = vmax.f32 %v1187, 0.0
  %v2192 = vmax.f32 %v1190, 0.0
  %v2193 = vmax.f32 %v1195, 0.0
  %v2194 = vmax.f32 %v1198, 0.0
  %v2195 = vmax.f32 %v1203, 0.0
  %v2196 = vmax.f32 %v1206, 0.0
  %v2197 = vmax.f32 %v1211, 0.0
  %v2198 = vmax.f32 %v1214, 0.0
  %v2199 = vmax.f32 %v1219, 0.0
  %v2200 = vmax.f32 %v1222, 0.0
  %v2201 = vmax.f32 %v1227, 0.0
  %v2202 = vmax.f32 %v1230, 0.0
  %v2203 = vmax.f32 %v1235, 0.0
  %v2204 = vmax.f32 %v1238, 0.0
  %v2205 = vmax.f32 %v1243, 0.0
  %v2206 = vmax.f32 %v1246, 0.0
  %v2207 = vmax.f32 %v1251, 0.0
  %v2208 = vmax.f32 %v1254, 0.0
  %v2209 = vmax.f32 %v1259, 0.0
  %v2210 = vmax.f32 %v1262, 0.0
  %v2211 = vmax.f32 %v1267, 0.0
  %v2212 = vmax.f32 %v1270, 0.0
  %v2213 = vmax.f32 %v1275, 0.0
  %v2214 = vmax.f32 %v1278, 0.0
  %v2215 = vmax.f32 %v1283, 0.0
  %v2216 = vmax.f32 %v1286, 0.0
  %v2217 = vmax.f32 %v1291, 0.0
  %v2218 = vmax.f32 %v1294, 0.0
  %v2219 = vmax.f32 %v1299, 0.0
  %v2220 = vmax.f32 %v1302, 0.0
  %v2221 = vmax.f32 %v1307, 0.0
  %v2222 = vmax.f32 %v1310, 0.0
  %v2223 = vmax.f32 %v1315, 0.0
  %v2224 = vmax.f32 %v1318, 0.0
  %v2225 = vmax.f32 %v1323, 0.0
  %v2226 = vmax.f32 %v1326, 0.0
  %v2227 = vmax.f32 %v1331, 0.0
  %v2228 = vmax.f32 %v1334, 0.0
  %v2229 = vmax.f32 %v1339, 0.0
  %v2230 = vmax.f32 %v1342, 0.0
  %v2231 = vmax.f32 %v1347, 0.0
  %v2232 = vmax.f32 %v1350, 0.0
  %v2233 = vmax.f32 %v1355, 0.0
  %v2234 = vmax.f32 %v1358, 0.0
  %v2235 = vmax.f32 %v1363, 0.0
  %v2236 = vmax.f32 %v1366, 0.0
  %v2237 = vmax.f32 %v1371, 0.0
  %v2238 = vmax.f32 %v1374, 0.0
  %v2239 = vmax.f32 %v1379, 0.0
  %v2240 = vmax.f32 %v1382, 0.0
  %v2241 = vmax.f32 %v1387, 0.0
  %v2242 = vmax.f32 %v1390, 0.0
  %v2243 = vmax.f32 %v1395, 0.0
  %v2244 = vmax.f32 %v1398, 0.0
  %v2245 = vmax.f32 %v1403, 0.0
  %v2246 = vmax.f32 %v1406, 0.0
  %v2247 = vmax.f32 %v1411, 0.0
  %v2248 = vmax.f32 %v1414, 0.0
  %v2249 = vmax.f32 %v1419, 0.0
  %v2250 = vmax.f32 %v1422, 0.0
  %v2251 = vmax.f32 %v1427, 0.0
  %v2252 = vmax.f32 %v1430, 0.0
  %v2253 = vmax.f32 %v1435, 0.0
  %v2254 = vmax.f32 %v1438, 0.0
  %v2255 = vmax.f32 %v1443, 0.0
  %v2256 = vmax.f32 %v1446, 0.0
  %v2257 = vmax.f32 %v1451, 0.0
  %v2258 = vmax.f32 %v1454, 0.0
  %v2259 = vmax.f32 %v1459, 0.0
  %v2260 = vmax.f32 %v1462, 0.0
  %v2261 = vmax.f32 %v1467, 0.0
  %v2262 = vmax.f32 %v1470, 0.0
  %v2263 = vmax.f32 %v1475, 0.0
  %v2264 = vmax.f32 %v1478, 0.0
  %v2265 = vmax.f32 %v1483, 0.0
  %v2266 = vmax.f32 %v1486, 0.0
  %v2267 = vmax.f32 %v1491, 0.0
  %v2268 = vmax.f32 %v1494, 0.0
  %v2269 = vmax.f32 %v1499, 0.0
  %v2270 = vmax.f32 %v1502, 0.0
  %v2271 = vmax.f32 %v1507, 0.0
  %v2272 = vmax.f32 %v1510, 0.0
  %v2273 = vmax.f32 %v1515, 0.0
  %v2274 = vmax.f32 %v1518, 0.0
  %v2275 = vmax.f32 %v1523, 0.0
  %v2276 = vmax.f32 %v1526, 0.0
  %v2277 = vmax.f32 %v1531, 0.0
  %v2278 = vmax.f32 %v1534, 0.0
  %v2279 = vmax.f32 %v1539, 0.0
  %v2280 = vmax.f32 %v1542, 0.0
  %v2281 = vmax.f32 %v1547, 0.0
  %v2282 = vmax.f32 %v1550, 0.0
  %v2283 = vmax.f32 %v1555, 0.0
  %v2284 = vmax.f32 %v1558, 0.0
  %v2285 = vmax.f32 %v1563, 0.0
  %v2286 = vmax.f32 %v1566, 0.0
  %v2287 = vmax.f32 %v1571, 0.0
  %v2288 = vmax.f32 %v1574, 0.0
  %v2289 = vmax.f32 %v1579, 0.0
  %v2290 = vmax.f32 %v1582, 0.0
  %v2291 = vmax.f32 %v1587, 0.0
  %v2292 = vmax.f32 %v1590, 0.0
  %v2293 = vmax.f32 %v1595, 0.0
  %v2294 = vmax.f32 %v1598, 0.0
  %v2295 = vmax.f32 %v1603, 0.0
  %v2296 = vmax.f32 %v1606, 0.0
  %v2297 = vmax.f32 %v1611, 0.0
  %v2298 = vmax.f32 %v1614, 0.0
  %v2299 = vmax.f32 %v1619, 0.0
  %v2300 = vmax.f32 %v1622, 0.0
  %v2301 = vmax.f32 %v1627, 0.0
  %v2302 = vmax.f32 %v1630, 0.0
  %v2303 = vmax.f32 %v1635, 0.0
  %v2304 = vmax.f32 %v1638, 0.0
  %v2305 = vmax.f32 %v1643, 0.0
  %v2306 = vmax.f32 %v1646, 0.0
  %v2307 = vmax.f32 %v1651, 0.0
  %v2308 = vmax.f32 %v1654, 0.0
  %v2309 = vmax.f32 %v1659, 0.0
  %v2310 = vmax.f32 %v1662, 0.0
  %v2311 = vmax.f32 %v1667, 0.0
  %v2312 = vmax.f32 %v1670, 0.0
  %v2313 = vmax.f32 %v1675, 0.0
  %v2314 = vmax.f32 %v1678, 0.0
  %v2315 = vmax.f32 %v1683, 0.0
  %v2316 = vmax.f32 %v1686, 0.0
  %v2317 = vmax.f32 %v1691, 0.0
  %v2318 = vmax.f32 %v1694, 0.0
  %v2319 = vmax.f32 %v1699, 0.0
  %v2320 = vmax.f32 %v1702, 0.0
  %v2321 = vmax.f32 %v1707, 0.0
  %v2322 = vmax.f32 %v1710, 0.0
  %v2323 = vmax.f32 %v1715, 0.0
  %v2324 = vmax.f32 %v1718, 0.0
  %v2325 = vmax.f32 %v1723, 0.0
  %v2326 = vmax.f32 %v1726, 0.0
  %v2327 = vmax.f32 %v1731, 0.0
  %v2328 = vmax.f32 %v1734, 0.0
  %v2329 = vmax.f32 %v1739, 0.0
  %v2330 = vmax.f32 %v1742, 0.0
  %v2331 = vmax.f32 %v1747, 0.0
  %v2332 = vmax.f32 %v1750, 0.0
  %v2333 = vmax.f32 %v1755, 0.0
  %v2334 = vmax.f32 %v1758, 0.0
  %v2335 = vmax.f32 %v1763, 0.0
  %v2336 = vmax.f32 %v1766, 0.0
  %v2337 = vmax.f32 %v1771, 0.0
  %v2338 = vmax.f32 %v1774, 0.0
  %v2339 = vmax.f32 %v1779, 0.0
  %v2340 = vmax.f32 %v1782, 0.0
  %v2341 = vmax.f32 %v1787, 0.0
  %v2342 = vmax.f32 %v1790, 0.0
  %v2343 = vmax.f32 %v1795, 0.0
  %v2344 = vmax.f32 %v1798, 0.0
  %v2345 = vmax.f32 %v1803, 0.0
  %v2346 = vmax.f32 %v1806, 0.0
  %v2347 = vmax.f32 %v1811, 0.0
  %v2348 = vmax.f32 %v1814, 0.0
  %v2349 = vmax.f32 %v1819, 0.0
  %v2350 = vmax.f32 %v1822, 0.0
  %v2351 = vmax.f32 %v1827, 0.0
  %v2352 = vmax.f32 %v1830, 0.0
  %v2353 = vmax.f32 %v1835, 0.0
  %v2354 = vmax.f32 %v1838, 0.0
  %v2355 = vmax.f32 %v1843, 0.0
  %v2356 = vmax.f32 %v1846, 0.0
  %v2357 = vmax.f32 %v1851, 0.0
  %v2358 = vmax.f32 %v1854, 0.0
  %v2359 = vmax.f32 %v1859, 0.0
  %v2360 = vmax.f32 %v1862, 0.0
  %v2361 = vmax.f32 %v1867, 0.0
  %v2362 = vmax.f32 %v1870, 0.0
  %v2363 = vmax.f32 %v1875, 0.0
  %v2364 = vmax.f32 %v1878, 0.0
  %v2365 = vmax.f32 %v1883, 0.0
  %v2366 = vmax.f32 %v1886, 0.0
  %v2367 = vmax.f32 %v1891, 0.0
  %v2368 = vmax.f32 %v1894, 0.0
  %v2369 = vmax.f32 %v1899, 0.0
  %v2370 = vmax.f32 %v1902, 0.0
  %v2371 = vmax.f32 %v1907, 0.0
  %v2372 = vmax.f32 %v1910, 0.0
  %v2373 = vmax.f32 %v1915, 0.0
  %v2374 = vmax.f32 %v1918, 0.0
  %v2375 = vmax.f32 %v1923, 0.0
  %v2376 = vmax.f32 %v1926, 0.0
  %v2377 = vmax.f32 %v1931, 0.0
  %v2378 = vmax.f32 %v1934, 0.0
  %v2379 = vmax.f32 %v1939, 0.0
  %v2380 = vmax.f32 %v1942, 0.0
  %v2381 = vmax.f32 %v1947, 0.0
  %v2382 = vmax.f32 %v1950, 0.0
  %v2383 = vmax.f32 %v1955, 0.0
  %v2384 = vmax.f32 %v1958, 0.0
  %v2385 = vmax.f32 %v1963, 0.0
  %v2386 = vmax.f32 %v1966, 0.0
  %v2387 = vmax.f32 %v1971, 0.0
  %v2388 = vmax.f32 %v1974, 0.0
  %v2389 = vmax.f32 %v1979, 0.0
  %v2390 = vmax.f32 %v1982, 0.0
  %v2391 = vmax.f32 %v1987, 0.0
  %v2392 = vmax.f32 %v1990, 0.0
  %v2393 = vmax.f32 %v1995, 0.0
  %v2394 = vmax.f32 %v1998, 0.0
  %v2395 = vmax.f32 %v2003, 0.0
  %v2396 = vmax.f32 %v2006, 0.0
  %v2397 = vmax.f32 %v2011, 0.0
  %v2398 = vmax.f32 %v2014, 0.0
  %v2399 = vmax.f32 %v2019, 0.0
  %v2400 = vmax.f32 %v2022, 0.0
  %v2401 = vmax.f32 %v2027, 0.0
  %v2402 = vmax.f32 %v2030, 0.0
  %v2403 = vmax.f32 %v2035, 0.0
  %v2404 = vmax.f32 %v2038, 0.0
  %v2405 = vmax.f32 %v2043, 0.0
  %v2406 = vmax.f32 %v2046, 0.0
  %v2407 = vmax.f32 %v2051, 0.0
  %v2408 = vmax.f32 %v2054, 0.0
  %v2409 = vmax.f32 %v2059, 0.0
  %v2410 = vmax.f32 %v2062, 0.0
  %v2411 = vmax.f32 %v2067, 0.0
  %v2412 = vmax.f32 %v2070, 0.0
  %v2413 = vmax.f32 %v2075, 0.0
  %v2414 = vmax.f32 %v2078, 0.0
  %v2415 = vmax.f32 %v2083, 0.0
  %v2416 = vmax.f32 %v2086, 0.0
  %v2417 = vmax.f32 %v2091, 0.0
  %v2418 = vmax.f32 %v2094, 0.0
  %v2419 = vmax.f32 %v2099, 0.0
  %v2420 = vmax.f32 %v2102, 0.0
  %v2421 = vmax.f32 %v2107, 0.0
  %v2422 = vmax.f32 %v2110, 0.0
  %v2423 = vmax.f32 %v2115, 0.0
  %v2424 = vmax.f32 %v2118, 0.0
  %v2425 = vmax.f32 %v2123, 0.0
  %v2426 = vmax.f32 %v2126, 0.0
  %v2427 = vmax.f32 %v2131, 0.0
  %v2428 = vmax.f32 %v2134, 0.0
  %v2429 = vmax.f32 %v2139, 0.0
  %v2430 = vmax.f32 %v2142, 0.0
  %v2431 = vmax.f32 %v2147, 0.0
  %v2432 = vmax.f32 %v2150, 0.0
  %v2433 = vmax.f32 %v2155, 0.0
  %v2434 = vmax.f32 %v2158, 0.0
  %v2435 = vmax.f32 %v2163, 0.0
  %v2436 = vmax.f32 %v2166, 0.0
  %v2437 = vmax.f32 %v2171, 0.0
  %v2438 = vmax.f32 %v2174, 0.0
  %v2439 = vmax.f32 %v2179, 0.0
  %v2440 = vmax.f32 %v2182, 0.0
  %v2441 = vld [vmem:[%s1] sm:$0xff]
  %v2442 = vld [vmem:[%s1 + $0x8] sm:$0xff]
  %v2443 = vld [vmem:[%s1 + $0x10] sm:$0xff]
  %v2444 = vld [vmem:[%s1 + $0x18] sm:$0xff]
  %v2445 = vld [vmem:[%s1 + $0x20] sm:$0xff]
  %v2446 = vld [vmem:[%s1 + $0x28] sm:$0xff]
  %v2447 = vld [vmem:[%s1 + $0x30] sm:$0xff]
  %v2448 = vld [vmem:[%s1 + $0x38] sm:$0xff]
  %v2449 = vld [vmem:[%s1 + $0x40] sm:$0xff]
  %v2450 = vld [vmem:[%s1 + $0x48] sm:$0xff]
  %v2451 = vld [vmem:[%s1 + $0x50] sm:$0xff]
  %v2452 = vld [vmem:[%s1 + $0x58] sm:$0xff]
  %v2453 = vld [vmem:[%s1 + $0x60] sm:$0xff]
  %v2454 = vld [vmem:[%s1 + $0x68] sm:$0xff]
  %v2455 = vld [vmem:[%s1 + $0x70] sm:$0xff]
  %v2456 = vld [vmem:[%s1 + $0x78] sm:$0xff]
  %2457 = vmatprep.subr.mxu0 0.0
  %2458 = vmatpush1.msra.mxu0 %v2185
  %2459 = vmatprep.subr.mxu0 0.0
  %2460 = vmatpush1.msra.mxu0 %v2186
  %2461 = vmatprep.subr.mxu0 0.0
  %2462 = vmatpush1.msra.mxu0 %v2187
  %2463 = vmatprep.subr.mxu0 0.0
  %2464 = vmatpush1.msra.mxu0 %v2188
  %2465 = vmatprep.subr.mxu0 0.0
  %2466 = vmatpush1.msra.mxu0 %v2189
  %2467 = vmatprep.subr.mxu0 0.0
  %2468 = vmatpush1.msra.mxu0 %v2190
  %2469 = vmatprep.subr.mxu0 0.0
  %2470 = vmatpush1.msra.mxu0 %v2191
  %2471 = vmatprep.subr.mxu0 0.0
  %2472 = vmatpush1.msra.mxu0 %v2192
  %2473 = vmatprep.subr.mxu0 0.0
  %2474 = vmatpush1.msra.mxu0 %v2193
  %2475 = vmatprep.subr.mxu0 0.0
  %2476 = vmatpush1.msra.mxu0 %v2194
  %2477 = vmatprep.subr.mxu0 0.0
  %2478 = vmatpush1.msra.mxu0 %v2195
  %2479 = vmatprep.subr.mxu0 0.0
  %2480 = vmatpush1.msra.mxu0 %v2196
  %2481 = vmatprep.subr.mxu0 0.0
  %2482 = vmatpush1.msra.mxu0 %v2197
  %2483 = vmatprep.subr.mxu0 0.0
  %2484 = vmatpush1.msra.mxu0 %v2198
  %2485 = vmatprep.subr.mxu0 0.0
  %2486 = vmatpush1.msra.mxu0 %v2199
  %2487 = vmatprep.subr.mxu0 0.0
  %2488 = vmatpush1.msra.mxu0 %v2200
  %2489 = vmatprep.subr.mxu0 0.0
  %2490 = vmatpush1.msra.mxu0 %v2201
  %2491 = vmatprep.subr.mxu0 0.0
  %2492 = vmatpush1.msra.mxu0 %v2202
  %2493 = vmatprep.subr.mxu0 0.0
  %2494 = vmatpush1.msra.mxu0 %v2203
  %2495 = vmatprep.subr.mxu0 0.0
  %2496 = vmatpush1.msra.mxu0 %v2204
  %2497 = vmatprep.subr.mxu0 0.0
  %2498 = vmatpush1.msra.mxu0 %v2205
  %2499 = vmatprep.subr.mxu0 0.0
  %2500 = vmatpush1.msra.mxu0 %v2206
  %2501 = vmatprep.subr.mxu0 0.0
  %2502 = vmatpush1.msra.mxu0 %v2207
  %2503 = vmatprep.subr.mxu0 0.0
  %2504 = vmatpush1.msra.mxu0 %v2208
  %2505 = vmatprep.subr.mxu0 0.0
  %2506 = vmatpush1.msra.mxu0 %v2209
  %2507 = vmatprep.subr.mxu0 0.0
  %2508 = vmatpush1.msra.mxu0 %v2210
  %2509 = vmatprep.subr.mxu0 0.0
  %2510 = vmatpush1.msra.mxu0 %v2211
  %2511 = vmatprep.subr.mxu0 0.0
  %2512 = vmatpush1.msra.mxu0 %v2212
  %2513 = vmatprep.subr.mxu0 0.0
  %2514 = vmatpush1.msra.mxu0 %v2213
  %2515 = vmatprep.subr.mxu0 0.0
  %2516 = vmatpush1.msra.mxu0 %v2214
  %2517 = vmatprep.subr.mxu0 0.0
  %2518 = vmatpush1.msra.mxu0 %v2215
  %2519 = vmatprep.subr.mxu0 0.0
  %2520 = vmatpush1.msra.mxu0 %v2216
  %2521 = vmatprep.mubr.f32.mxu0 %v2442
  %2522 = vmatmul.mubr.f32.gmra.mrb[0].mxu0 %v2441
  %v2523 = vpop.f32.mrb[0].mxu0
  %v2524 = vadd.f32 0.0, %v2523
  %v2525 = vpop.f32.mrb[0].mxu0
  %2526 = vdwg.mxu0
  %2527 = vmatprep.subr.mxu0 0.0
  %2528 = vmatpush1.msra.mxu0 %v2217
  %2529 = vmatprep.subr.mxu0 0.0
  %2530 = vmatpush1.msra.mxu0 %v2218
  %2531 = vmatprep.subr.mxu0 0.0
  %2532 = vmatpush1.msra.mxu0 %v2219
  %2533 = vmatprep.subr.mxu0 0.0
  %2534 = vmatpush1.msra.mxu0 %v2220
  %2535 = vmatprep.subr.mxu0 0.0
  %2536 = vmatpush1.msra.mxu0 %v2221
  %2537 = vmatprep.subr.mxu0 0.0
  %2538 = vmatpush1.msra.mxu0 %v2222
  %2539 = vmatprep.subr.mxu0 0.0
  %2540 = vmatpush1.msra.mxu0 %v2223
  %2541 = vmatprep.subr.mxu0 0.0
  %2542 = vmatpush1.msra.mxu0 %v2224
  %2543 = vmatprep.subr.mxu0 0.0
  %2544 = vmatpush1.msra.mxu0 %v2225
  %2545 = vmatprep.subr.mxu0 0.0
  %2546 = vmatpush1.msra.mxu0 %v2226
  %2547 = vmatprep.subr.mxu0 0.0
  %2548 = vmatpush1.msra.mxu0 %v2227
  %2549 = vmatprep.subr.mxu0 0.0
  %2550 = vmatpush1.msra.mxu0 %v2228
  %2551 = vmatprep.subr.mxu0 0.0
  %2552 = vmatpush1.msra.mxu0 %v2229
  %2553 = vmatprep.subr.mxu0 0.0
  %2554 = vmatpush1.msra.mxu0 %v2230
  %2555 = vmatprep.subr.mxu0 0.0
  %2556 = vmatpush1.msra.mxu0 %v2231
  %2557 = vmatprep.subr.mxu0 0.0
  %2558 = vmatpush1.msra.mxu0 %v2232
  %2559 = vmatprep.subr.mxu0 0.0
  %2560 = vmatpush1.msra.mxu0 %v2233
  %2561 = vmatprep.subr.mxu0 0.0
  %2562 = vmatpush1.msra.mxu0 %v2234
  %2563 = vmatprep.subr.mxu0 0.0
  %2564 = vmatpush1.msra.mxu0 %v2235
  %2565 = vmatprep.subr.mxu0 0.0
  %2566 = vmatpush1.msra.mxu0 %v2236
  %2567 = vmatprep.subr.mxu0 0.0
  %2568 = vmatpush1.msra.mxu0 %v2237
  %2569 = vmatprep.subr.mxu0 0.0
  %2570 = vmatpush1.msra.mxu0 %v2238
  %2571 = vmatprep.subr.mxu0 0.0
  %2572 = vmatpush1.msra.mxu0 %v2239
  %2573 = vmatprep.subr.mxu0 0.0
  %2574 = vmatpush1.msra.mxu0 %v2240
  %2575 = vmatprep.subr.mxu0 0.0
  %2576 = vmatpush1.msra.mxu0 %v2241
  %2577 = vmatprep.subr.mxu0 0.0
  %2578 = vmatpush1.msra.mxu0 %v2242
  %2579 = vmatprep.subr.mxu0 0.0
  %2580 = vmatpush1.msra.mxu0 %v2243
  %2581 = vmatprep.subr.mxu0 0.0
  %2582 = vmatpush1.msra.mxu0 %v2244
  %2583 = vmatprep.subr.mxu0 0.0
  %2584 = vmatpush1.msra.mxu0 %v2245
  %2585 = vmatprep.subr.mxu0 0.0
  %2586 = vmatpush1.msra.mxu0 %v2246
  %2587 = vmatprep.subr.mxu0 0.0
  %2588 = vmatpush1.msra.mxu0 %v2247
  %2589 = vmatprep.subr.mxu0 0.0
  %2590 = vmatpush1.msra.mxu0 %v2248
  %2591 = vmatprep.mubr.f32.mxu0 %v2444
  %2592 = vmatmul.mubr.f32.gmra.mrb[0].mxu0 %v2443
  %v2593 = vpop.f32.mrb[0].mxu0
  %v2594 = vadd.f32 %v2524, %v2593
  %v2595 = vpop.f32.mrb[0].mxu0
  %2596 = vdwg.mxu0
  %2597 = vmatprep.subr.mxu0 0.0
  %2598 = vmatpush1.msra.mxu0 %v2249
  %2599 = vmatprep.subr.mxu0 0.0
  %2600 = vmatpush1.msra.mxu0 %v2250
  %2601 = vmatprep.subr.mxu0 0.0
  %2602 = vmatpush1.msra.mxu0 %v2251
  %2603 = vmatprep.subr.mxu0 0.0
  %2604 = vmatpush1.msra.mxu0 %v2252
  %2605 = vmatprep.subr.mxu0 0.0
  %2606 = vmatpush1.msra.mxu0 %v2253
  %2607 = vmatprep.subr.mxu0 0.0
  %2608 = vmatpush1.msra.mxu0 %v2254
  %2609 = vmatprep.subr.mxu0 0.0
  %2610 = vmatpush1.msra.mxu0 %v2255
  %2611 = vmatprep.subr.mxu0 0.0
  %2612 = vmatpush1.msra.mxu0 %v2256
  %2613 = vmatprep.subr.mxu0 0.0
  %2614 = vmatpush1.msra.mxu0 %v2257
  %2615 = vmatprep.subr.mxu0 0.0
  %2616 = vmatpush1.msra.mxu0 %v2258
  %2617 = vmatprep.subr.mxu0 0.0
  %2618 = vmatpush1.msra.mxu0 %v2259
  %2619 = vmatprep.subr.mxu0 0.0
  %2620 = vmatpush1.msra.mxu0 %v2260
  %2621 = vmatprep.subr.mxu0 0.0
  %2622 = vmatpush1.msra.mxu0 %v2261
  %2623 = vmatprep.subr.mxu0 0.0
  %2624 = vmatpush1.msra.mxu0 %v2262
  %2625 = vmatprep.subr.mxu0 0.0
  %2626 = vmatpush1.msra.mxu0 %v2263
  %2627 = vmatprep.subr.mxu0 0.0
  %2628 = vmatpush1.msra.mxu0 %v2264
  %2629 = vmatprep.subr.mxu0 0.0
  %2630 = vmatpush1.msra.mxu0 %v2265
  %2631 = vmatprep.subr.mxu0 0.0
  %2632 = vmatpush1.msra.mxu0 %v2266
  %2633 = vmatprep.subr.mxu0 0.0
  %2634 = vmatpush1.msra.mxu0 %v2267
  %2635 = vmatprep.subr.mxu0 0.0
  %2636 = vmatpush1.msra.mxu0 %v2268
  %2637 = vmatprep.subr.mxu0 0.0
  %2638 = vmatpush1.msra.mxu0 %v2269
  %2639 = vmatprep.subr.mxu0 0.0
  %2640 = vmatpush1.msra.mxu0 %v2270
  %2641 = vmatprep.subr.mxu0 0.0
  %2642 = vmatpush1.msra.mxu0 %v2271
  %2643 = vmatprep.subr.mxu0 0.0
  %2644 = vmatpush1.msra.mxu0 %v2272
  %2645 = vmatprep.subr.mxu0 0.0
  %2646 = vmatpush1.msra.mxu0 %v2273
  %2647 = vmatprep.subr.mxu0 0.0
  %2648 = vmatpush1.msra.mxu0 %v2274
  %2649 = vmatprep.subr.mxu0 0.0
  %2650 = vmatpush1.msra.mxu0 %v2275
  %2651 = vmatprep.subr.mxu0 0.0
  %2652 = vmatpush1.msra.mxu0 %v2276
  %2653 = vmatprep.subr.mxu0 0.0
  %2654 = vmatpush1.msra.mxu0 %v2277
  %2655 = vmatprep.subr.mxu0 0.0
  %2656 = vmatpush1.msra.mxu0 %v2278
  %2657 = vmatprep.subr.mxu0 0.0
  %2658 = vmatpush1.msra.mxu0 %v2279
  %2659 = vmatprep.subr.mxu0 0.0
  %2660 = vmatpush1.msra.mxu0 %v2280
  %2661 = vmatprep.mubr.f32.mxu0 %v2446
  %2662 = vmatmul.mubr.f32.gmra.mrb[0].mxu0 %v2445
  %v2663 = vpop.f32.mrb[0].mxu0
  %v2664 = vadd.f32 %v2594, %v2663
  %v2665 = vpop.f32.mrb[0].mxu0
  %2666 = vdwg.mxu0
  %2667 = vmatprep.subr.mxu0 0.0
  %2668 = vmatpush1.msra.mxu0 %v2281
  %2669 = vmatprep.subr.mxu0 0.0
  %2670 = vmatpush1.msra.mxu0 %v2282
  %2671 = vmatprep.subr.mxu0 0.0
  %2672 = vmatpush1.msra.mxu0 %v2283
  %2673 = vmatprep.subr.mxu0 0.0
  %2674 = vmatpush1.msra.mxu0 %v2284
  %2675 = vmatprep.subr.mxu0 0.0
  %2676 = vmatpush1.msra.mxu0 %v2285
  %2677 = vmatprep.subr.mxu0 0.0
  %2678 = vmatpush1.msra.mxu0 %v2286
  %2679 = vmatprep.subr.mxu0 0.0
  %2680 = vmatpush1.msra.mxu0 %v2287
  %2681 = vmatprep.subr.mxu0 0.0
  %2682 = vmatpush1.msra.mxu0 %v2288
  %2683 = vmatprep.subr.mxu0 0.0
  %2684 = vmatpush1.msra.mxu0 %v2289
  %2685 = vmatprep.subr.mxu0 0.0
  %2686 = vmatpush1.msra.mxu0 %v2290
  %2687 = vmatprep.subr.mxu0 0.0
  %2688 = vmatpush1.msra.mxu0 %v2291
  %2689 = vmatprep.subr.mxu0 0.0
  %2690 = vmatpush1.msra.mxu0 %v2292
  %2691 = vmatprep.subr.mxu0 0.0
  %2692 = vmatpush1.msra.mxu0 %v2293
  %2693 = vmatprep.subr.mxu0 0.0
  %2694 = vmatpush1.msra.mxu0 %v2294
  %2695 = vmatprep.subr.mxu0 0.0
  %2696 = vmatpush1.msra.mxu0 %v2295
  %2697 = vmatprep.subr.mxu0 0.0
  %2698 = vmatpush1.msra.mxu0 %v2296
  %2699 = vmatprep.subr.mxu0 0.0
  %2700 = vmatpush1.msra.mxu0 %v2297
  %2701 = vmatprep.subr.mxu0 0.0
  %2702 = vmatpush1.msra.mxu0 %v2298
  %2703 = vmatprep.subr.mxu0 0.0
  %2704 = vmatpush1.msra.mxu0 %v2299
  %2705 = vmatprep.subr.mxu0 0.0
  %2706 = vmatpush1.msra.mxu0 %v2300
  %2707 = vmatprep.subr.mxu0 0.0
  %2708 = vmatpush1.msra.mxu0 %v2301
  %2709 = vmatprep.subr.mxu0 0.0
  %2710 = vmatpush1.msra.mxu0 %v2302
  %2711 = vmatprep.subr.mxu0 0.0
  %2712 = vmatpush1.msra.mxu0 %v2303
  %2713 = vmatprep.subr.mxu0 0.0
  %2714 = vmatpush1.msra.mxu0 %v2304
  %2715 = vmatprep.subr.mxu0 0.0
  %2716 = vmatpush1.msra.mxu0 %v2305
  %2717 = vmatprep.subr.mxu0 0.0
  %2718 = vmatpush1.msra.mxu0 %v2306
  %2719 = vmatprep.subr.mxu0 0.0
  %2720 = vmatpush1.msra.mxu0 %v2307
  %2721 = vmatprep.subr.mxu0 0.0
  %2722 = vmatpush1.msra.mxu0 %v2308
  %2723 = vmatprep.subr.mxu0 0.0
  %2724 = vmatpush1.msra.mxu0 %v2309
  %2725 = vmatprep.subr.mxu0 0.0
  %2726 = vmatpush1.msra.mxu0 %v2310
  %2727 = vmatprep.subr.mxu0 0.0
  %2728 = vmatpush1.msra.mxu0 %v2311
  %2729 = vmatprep.subr.mxu0 0.0
  %2730 = vmatpush1.msra.mxu0 %v2312
  %2731 = vmatprep.mubr.f32.mxu0 %v2448
  %2732 = vmatmul.mubr.f32.gmra.mrb[0].mxu0 %v2447
  %v2733 = vpop.f32.mrb[0].mxu0
  %v2734 = vadd.f32 %v2664, %v2733
  %v2735 = vpop.f32.mrb[0].mxu0
  %2736 = vdwg.mxu0
  %2737 = vmatprep.subr.mxu0 0.0
  %2738 = vmatpush1.msra.mxu0 %v2313
  %2739 = vmatprep.subr.mxu0 0.0
  %2740 = vmatpush1.msra.mxu0 %v2314
  %2741 = vmatprep.subr.mxu0 0.0
  %2742 = vmatpush1.msra.mxu0 %v2315
  %2743 = vmatprep.subr.mxu0 0.0
  %2744 = vmatpush1.msra.mxu0 %v2316
  %2745 = vmatprep.subr.mxu0 0.0
  %2746 = vmatpush1.msra.mxu0 %v2317
  %2747 = vmatprep.subr.mxu0 0.0
  %2748 = vmatpush1.msra.mxu0 %v2318
  %2749 = vmatprep.subr.mxu0 0.0
  %2750 = vmatpush1.msra.mxu0 %v2319
  %2751 = vmatprep.subr.mxu0 0.0
  %2752 = vmatpush1.msra.mxu0 %v2320
  %2753 = vmatprep.subr.mxu0 0.0
  %2754 = vmatpush1.msra.mxu0 %v2321
  %2755 = vmatprep.subr.mxu0 0.0
  %2756 = vmatpush1.msra.mxu0 %v2322
  %2757 = vmatprep.subr.mxu0 0.0
  %2758 = vmatpush1.msra.mxu0 %v2323
  %2759 = vmatprep.subr.mxu0 0.0
  %2760 = vmatpush1.msra.mxu0 %v2324
  %2761 = vmatprep.subr.mxu0 0.0
  %2762 = vmatpush1.msra.mxu0 %v2325
  %2763 = vmatprep.subr.mxu0 0.0
  %2764 = vmatpush1.msra.mxu0 %v2326
  %2765 = vmatprep.subr.mxu0 0.0
  %2766 = vmatpush1.msra.mxu0 %v2327
  %2767 = vmatprep.subr.mxu0 0.0
  %2768 = vmatpush1.msra.mxu0 %v2328
  %2769 = vmatprep.subr.mxu0 0.0
  %2770 = vmatpush1.msra.mxu0 %v2329
  %2771 = vmatprep.subr.mxu0 0.0
  %2772 = vmatpush1.msra.mxu0 %v2330
  %2773 = vmatprep.subr.mxu0 0.0
  %2774 = vmatpush1.msra.mxu0 %v2331
  %2775 = vmatprep.subr.mxu0 0.0
  %2776 = vmatpush1.msra.mxu0 %v2332
  %2777 = vmatprep.subr.mxu0 0.0
  %2778 = vmatpush1.msra.mxu0 %v2333
  %2779 = vmatprep.subr.mxu0 0.0
  %2780 = vmatpush1.msra.mxu0 %v2334
  %2781 = vmatprep.subr.mxu0 0.0
  %2782 = vmatpush1.msra.mxu0 %v2335
  %2783 = vmatprep.subr.mxu0 0.0
  %2784 = vmatpush1.msra.mxu0 %v2336
  %2785 = vmatprep.subr.mxu0 0.0
  %2786 = vmatpush1.msra.mxu0 %v2337
  %2787 = vmatprep.subr.mxu0 0.0
  %2788 = vmatpush1.msra.mxu0 %v2338
  %2789 = vmatprep.subr.mxu0 0.0
  %2790 = vmatpush1.msra.mxu0 %v2339
  %2791 = vmatprep.subr.mxu0 0.0
  %2792 = vmatpush1.msra.mxu0 %v2340
  %2793 = vmatprep.subr.mxu0 0.0
  %2794 = vmatpush1.msra.mxu0 %v2341
  %2795 = vmatprep.subr.mxu0 0.0
  %2796 = vmatpush1.msra.mxu0 %v2342
  %2797 = vmatprep.subr.mxu0 0.0
  %2798 = vmatpush1.msra.mxu0 %v2343
  %2799 = vmatprep.subr.mxu0 0.0
  %2800 = vmatpush1.msra.mxu0 %v2344
  %2801 = vmatprep.mubr.f32.mxu0 %v2450
  %2802 = vmatmul.mubr.f32.gmra.mrb[0].mxu0 %v2449
  %v2803 = vpop.f32.mrb[0].mxu0
  %v2804 = vadd.f32 %v2734, %v2803
  %v2805 = vpop.f32.mrb[0].mxu0
  %2806 = vdwg.mxu0
  %2807 = vmatprep.subr.mxu0 0.0
  %2808 = vmatpush1.msra.mxu0 %v2345
  %2809 = vmatprep.subr.mxu0 0.0
  %2810 = vmatpush1.msra.mxu0 %v2346
  %2811 = vmatprep.subr.mxu0 0.0
  %2812 = vmatpush1.msra.mxu0 %v2347
  %2813 = vmatprep.subr.mxu0 0.0
  %2814 = vmatpush1.msra.mxu0 %v2348
  %2815 = vmatprep.subr.mxu0 0.0
  %2816 = vmatpush1.msra.mxu0 %v2349
  %2817 = vmatprep.subr.mxu0 0.0
  %2818 = vmatpush1.msra.mxu0 %v2350
  %2819 = vmatprep.subr.mxu0 0.0
  %2820 = vmatpush1.msra.mxu0 %v2351
  %2821 = vmatprep.subr.mxu0 0.0
  %2822 = vmatpush1.msra.mxu0 %v2352
  %2823 = vmatprep.subr.mxu0 0.0
  %2824 = vmatpush1.msra.mxu0 %v2353
  %2825 = vmatprep.subr.mxu0 0.0
  %2826 = vmatpush1.msra.mxu0 %v2354
  %2827 = vmatprep.subr.mxu0 0.0
  %2828 = vmatpush1.msra.mxu0 %v2355
  %2829 = vmatprep.subr.mxu0 0.0
  %2830 = vmatpush1.msra.mxu0 %v2356
  %2831 = vmatprep.subr.mxu0 0.0
  %2832 = vmatpush1.msra.mxu0 %v2357
  %2833 = vmatprep.subr.mxu0 0.0
  %2834 = vmatpush1.msra.mxu0 %v2358
  %2835 = vmatprep.subr.mxu0 0.0
  %2836 = vmatpush1.msra.mxu0 %v2359
  %2837 = vmatprep.subr.mxu0 0.0
  %2838 = vmatpush1.msra.mxu0 %v2360
  %2839 = vmatprep.subr.mxu0 0.0
  %2840 = vmatpush1.msra.mxu0 %v2361
  %2841 = vmatprep.subr.mxu0 0.0
  %2842 = vmatpush1.msra.mxu0 %v2362
  %2843 = vmatprep.subr.mxu0 0.0
  %2844 = vmatpush1.msra.mxu0 %v2363
  %2845 = vmatprep.subr.mxu0 0.0
  %2846 = vmatpush1.msra.mxu0 %v2364
  %2847 = vmatprep.subr.mxu0 0.0
  %2848 = vmatpush1.msra.mxu0 %v2365
  %2849 = vmatprep.subr.mxu0 0.0
  %2850 = vmatpush1.msra.mxu0 %v2366
  %2851 = vmatprep.subr.mxu0 0.0
  %2852 = vmatpush1.msra.mxu0 %v2367
  %2853 = vmatprep.subr.mxu0 0.0
  %2854 = vmatpush1.msra.mxu0 %v2368
  %2855 = vmatprep.subr.mxu0 0.0
  %2856 = vmatpush1.msra.mxu0 %v2369
  %2857 = vmatprep.subr.mxu0 0.0
  %2858 = vmatpush1.msra.mxu0 %v2370
  %2859 = vmatprep.subr.mxu0 0.0
  %2860 = vmatpush1.msra.mxu0 %v2371
  %2861 = vmatprep.subr.mxu0 0.0
  %2862 = vmatpush1.msra.mxu0 %v2372
  %2863 = vmatprep.subr.mxu0 0.0
  %2864 = vmatpush1.msra.mxu0 %v2373
  %2865 = vmatprep.subr.mxu0 0.0
  %2866 = vmatpush1.msra.mxu0 %v2374
  %2867 = vmatprep.subr.mxu0 0.0
  %2868 = vmatpush1.msra.mxu0 %v2375
  %2869 = vmatprep.subr.mxu0 0.0
  %2870 = vmatpush1.msra.mxu0 %v2376
  %2871 = vmatprep.mubr.f32.mxu0 %v2452
  %2872 = vmatmul.mubr.f32.gmra.mrb[0].mxu0 %v2451
  %v2873 = vpop.f32.mrb[0].mxu0
  %v2874 = vadd.f32 %v2804, %v2873
  %v2875 = vpop.f32.mrb[0].mxu0
  %2876 = vdwg.mxu0
  %2877 = vmatprep.subr.mxu0 0.0
  %2878 = vmatpush1.msra.mxu0 %v2377
  %2879 = vmatprep.subr.mxu0 0.0
  %2880 = vmatpush1.msra.mxu0 %v2378
  %2881 = vmatprep.subr.mxu0 0.0
  %2882 = vmatpush1.msra.mxu0 %v2379
  %2883 = vmatprep.subr.mxu0 0.0
  %2884 = vmatpush1.msra.mxu0 %v2380
  %2885 = vmatprep.subr.mxu0 0.0
  %2886 = vmatpush1.msra.mxu0 %v2381
  %2887 = vmatprep.subr.mxu0 0.0
  %2888 = vmatpush1.msra.mxu0 %v2382
  %2889 = vmatprep.subr.mxu0 0.0
  %2890 = vmatpush1.msra.mxu0 %v2383
  %2891 = vmatprep.subr.mxu0 0.0
  %2892 = vmatpush1.msra.mxu0 %v2384
  %2893 = vmatprep.subr.mxu0 0.0
  %2894 = vmatpush1.msra.mxu0 %v2385
  %2895 = vmatprep.subr.mxu0 0.0
  %2896 = vmatpush1.msra.mxu0 %v2386
  %2897 = vmatprep.subr.mxu0 0.0
  %2898 = vmatpush1.msra.mxu0 %v2387
  %2899 = vmatprep.subr.mxu0 0.0
  %2900 = vmatpush1.msra.mxu0 %v2388
  %2901 = vmatprep.subr.mxu0 0.0
  %2902 = vmatpush1.msra.mxu0 %v2389
  %2903 = vmatprep.subr.mxu0 0.0
  %2904 = vmatpush1.msra.mxu0 %v2390
  %2905 = vmatprep.subr.mxu0 0.0
  %2906 = vmatpush1.msra.mxu0 %v2391
  %2907 = vmatprep.subr.mxu0 0.0
  %2908 = vmatpush1.msra.mxu0 %v2392
  %2909 = vmatprep.subr.mxu0 0.0
  %2910 = vmatpush1.msra.mxu0 %v2393
  %2911 = vmatprep.subr.mxu0 0.0
  %2912 = vmatpush1.msra.mxu0 %v2394
  %2913 = vmatprep.subr.mxu0 0.0
  %2914 = vmatpush1.msra.mxu0 %v2395
  %2915 = vmatprep.subr.mxu0 0.0
  %2916 = vmatpush1.msra.mxu0 %v2396
  %2917 = vmatprep.subr.mxu0 0.0
  %2918 = vmatpush1.msra.mxu0 %v2397
  %2919 = vmatprep.subr.mxu0 0.0
  %2920 = vmatpush1.msra.mxu0 %v2398
  %2921 = vmatprep.subr.mxu0 0.0
  %2922 = vmatpush1.msra.mxu0 %v2399
  %2923 = vmatprep.subr.mxu0 0.0
  %2924 = vmatpush1.msra.mxu0 %v2400
  %2925 = vmatprep.subr.mxu0 0.0
  %2926 = vmatpush1.msra.mxu0 %v2401
  %2927 = vmatprep.subr.mxu0 0.0
  %2928 = vmatpush1.msra.mxu0 %v2402
  %2929 = vmatprep.subr.mxu0 0.0
  %2930 = vmatpush1.msra.mxu0 %v2403
  %2931 = vmatprep.subr.mxu0 0.0
  %2932 = vmatpush1.msra.mxu0 %v2404
  %2933 = vmatprep.subr.mxu0 0.0
  %2934 = vmatpush1.msra.mxu0 %v2405
  %2935 = vmatprep.subr.mxu0 0.0
  %2936 = vmatpush1.msra.mxu0 %v2406
  %2937 = vmatprep.subr.mxu0 0.0
  %2938 = vmatpush1.msra.mxu0 %v2407
  %2939 = vmatprep.subr.mxu0 0.0
  %2940 = vmatpush1.msra.mxu0 %v2408
  %2941 = vmatprep.mubr.f32.mxu0 %v2454
  %2942 = vmatmul.mubr.f32.gmra.mrb[0].mxu0 %v2453
  %v2943 = vpop.f32.mrb[0].mxu0
  %v2944 = vadd.f32 %v2874, %v2943
  %v2945 = vpop.f32.mrb[0].mxu0
  %2946 = vdwg.mxu0
  %2947 = vmatprep.subr.mxu0 0.0
  %2948 = vmatpush1.msra.mxu0 %v2409
  %2949 = vmatprep.subr.mxu0 0.0
  %2950 = vmatpush1.msra.mxu0 %v2410
  %2951 = vmatprep.subr.mxu0 0.0
  %2952 = vmatpush1.msra.mxu0 %v2411
  %2953 = vmatprep.subr.mxu0 0.0
  %2954 = vmatpush1.msra.mxu0 %v2412
  %2955 = vmatprep.subr.mxu0 0.0
  %2956 = vmatpush1.msra.mxu0 %v2413
  %2957 = vmatprep.subr.mxu0 0.0
  %2958 = vmatpush1.msra.mxu0 %v2414
  %2959 = vmatprep.subr.mxu0 0.0
  %2960 = vmatpush1.msra.mxu0 %v2415
  %2961 = vmatprep.subr.mxu0 0.0
  %2962 = vmatpush1.msra.mxu0 %v2416
  %2963 = vmatprep.subr.mxu0 0.0
  %2964 = vmatpush1.msra.mxu0 %v2417
  %2965 = vmatprep.subr.mxu0 0.0
  %2966 = vmatpush1.msra.mxu0 %v2418
  %2967 = vmatprep.subr.mxu0 0.0
  %2968 = vmatpush1.msra.mxu0 %v2419
  %2969 = vmatprep.subr.mxu0 0.0
  %2970 = vmatpush1.msra.mxu0 %v2420
  %2971 = vmatprep.subr.mxu0 0.0
  %2972 = vmatpush1.msra.mxu0 %v2421
  %2973 = vmatprep.subr.mxu0 0.0
  %2974 = vmatpush1.msra.mxu0 %v2422
  %2975 = vmatprep.subr.mxu0 0.0
  %2976 = vmatpush1.msra.mxu0 %v2423
  %2977 = vmatprep.subr.mxu0 0.0
  %2978 = vmatpush1.msra.mxu0 %v2424
  %2979 = vmatprep.subr.mxu0 0.0
  %2980 = vmatpush1.msra.mxu0 %v2425
  %2981 = vmatprep.subr.mxu0 0.0
  %2982 = vmatpush1.msra.mxu0 %v2426
  %2983 = vmatprep.subr.mxu0 0.0
  %2984 = vmatpush1.msra.mxu0 %v2427
  %2985 = vmatprep.subr.mxu0 0.0
  %2986 = vmatpush1.msra.mxu0 %v2428
  %2987 = vmatprep.subr.mxu0 0.0
  %2988 = vmatpush1.msra.mxu0 %v2429
  %2989 = vmatprep.subr.mxu0 0.0
  %2990 = vmatpush1.msra.mxu0 %v2430
  %2991 = vmatprep.subr.mxu0 0.0
  %2992 = vmatpush1.msra.mxu0 %v2431
  %2993 = vmatprep.subr.mxu0 0.0
  %2994 = vmatpush1.msra.mxu0 %v2432
  %2995 = vmatprep.subr.mxu0 0.0
  %2996 = vmatpush1.msra.mxu0 %v2433
  %2997 = vmatprep.subr.mxu0 0.0
  %2998 = vmatpush1.msra.mxu0 %v2434
  %2999 = vmatprep.subr.mxu0 0.0
  %3000 = vmatpush1.msra.mxu0 %v2435
  %3001 = vmatprep.subr.mxu0 0.0
  %3002 = vmatpush1.msra.mxu0 %v2436
  %3003 = vmatprep.subr.mxu0 0.0
  %3004 = vmatpush1.msra.mxu0 %v2437
  %3005 = vmatprep.subr.mxu0 0.0
  %3006 = vmatpush1.msra.mxu0 %v2438
  %3007 = vmatprep.subr.mxu0 0.0
  %3008 = vmatpush1.msra.mxu0 %v2439
  %3009 = vmatprep.subr.mxu0 0.0
  %3010 = vmatpush1.msra.mxu0 %v2440
  %3011 = vmatprep.mubr.f32.mxu0 %v2456
  %3012 = vmatmul.mubr.f32.gmra.mrb[0].mxu0 %v2455
  %v3013 = vpop.f32.mrb[0].mxu0
  %v3014 = vadd.f32 %v2944, %v3013
  %v3015 = vpop.f32.mrb[0].mxu0
  %3016 = vdwg.mxu0
  %v3017 = vmul.f32 %v3014, 0.00390625
  %v3018 = vld [vmem:[%s3 + $0x1] sm:$0xff]
  %v3019 = vpack.c.bf16 %v3017, %v3017
  %v3020 = vld [vmem:[%s4] sm:$0xff]
  %v3021 = vld [vmem:[%s4 + $0x8] sm:$0xff]
  %v3022 = vld [vmem:[%s4 + $0x10] sm:$0xff]
  %v3023 = vld [vmem:[%s4 + $0x18] sm:$0xff]
  %v3024 = vld [vmem:[%s4 + $0x20] sm:$0xff]
  %v3025 = vld [vmem:[%s4 + $0x28] sm:$0xff]
  %v3026 = vld [vmem:[%s4 + $0x30] sm:$0xff]
  %v3027 = vld [vmem:[%s4 + $0x38] sm:$0xff]
  %v3028 = vld [vmem:[%s4 + $0x40] sm:$0xff]
  %v3029 = vld [vmem:[%s4 + $0x48] sm:$0xff]
  %v3030 = vld [vmem:[%s4 + $0x50] sm:$0xff]
  %v3031 = vld [vmem:[%s4 + $0x58] sm:$0xff]
  %v3032 = vld [vmem:[%s4 + $0x60] sm:$0xff]
  %v3033 = vld [vmem:[%s4 + $0x68] sm:$0xff]
  %v3034 = vld [vmem:[%s4 + $0x70] sm:$0xff]
  %v3035 = vld [vmem:[%s4 + $0x78] sm:$0xff]
  %v3036 = vld [vmem:[%s4 + $0x80] sm:$0xff]
  %v3037 = vld [vmem:[%s4 + $0x88] sm:$0xff]
  %v3038 = vld [vmem:[%s4 + $0x90] sm:$0xff]
  %v3039 = vld [vmem:[%s4 + $0x98] sm:$0xff]
  %v3040 = vld [vmem:[%s4 + $0xa0] sm:$0xff]
  %v3041 = vld [vmem:[%s4 + $0xa8] sm:$0xff]
  %v3042 = vld [vmem:[%s4 + $0xb0] sm:$0xff]
  %v3043 = vld [vmem:[%s4 + $0xb8] sm:$0xff]
  %v3044 = vld [vmem:[%s4 + $0xc0] sm:$0xff]
  %v3045 = vld [vmem:[%s4 + $0xc8] sm:$0xff]
  %v3046 = vld [vmem:[%s4 + $0xd0] sm:$0xff]
  %v3047 = vld [vmem:[%s4 + $0xd8] sm:$0xff]
  %v3048 = vld [vmem:[%s4 + $0xe0] sm:$0xff]
  %v3049 = vld [vmem:[%s4 + $0xe8] sm:$0xff]
  %v3050 = vld [vmem:[%s4 + $0xf0] sm:$0xff]
  %v3051 = vld [vmem:[%s4 + $0xf8] sm:$0xff]
  %v3052 = vld [vmem:[%s4 + $0x100] sm:$0xff]
  %v3053 = vld [vmem:[%s4 + $0x108] sm:$0xff]
  %v3054 = vld [vmem:[%s4 + $0x110] sm:$0xff]
  %v3055 = vld [vmem:[%s4 + $0x118] sm:$0xff]
  %v3056 = vld [vmem:[%s4 + $0x120] sm:$0xff]
  %v3057 = vld [vmem:[%s4 + $0x128] sm:$0xff]
  %v3058 = vld [vmem:[%s4 + $0x130] sm:$0xff]
  %v3059 = vld [vmem:[%s4 + $0x138] sm:$0xff]
  %v3060 = vld [vmem:[%s4 + $0x140] sm:$0xff]
  %v3061 = vld [vmem:[%s4 + $0x148] sm:$0xff]
  %v3062 = vld [vmem:[%s4 + $0x150] sm:$0xff]
  %v3063 = vld [vmem:[%s4 + $0x158] sm:$0xff]
  %v3064 = vld [vmem:[%s4 + $0x160] sm:$0xff]
  %v3065 = vld [vmem:[%s4 + $0x168] sm:$0xff]
  %v3066 = vld [vmem:[%s4 + $0x170] sm:$0xff]
  %v3067 = vld [vmem:[%s4 + $0x178] sm:$0xff]
  %v3068 = vld [vmem:[%s4 + $0x180] sm:$0xff]
  %v3069 = vld [vmem:[%s4 + $0x188] sm:$0xff]
  %v3070 = vld [vmem:[%s4 + $0x190] sm:$0xff]
  %v3071 = vld [vmem:[%s4 + $0x198] sm:$0xff]
  %v3072 = vld [vmem:[%s4 + $0x1a0] sm:$0xff]
  %v3073 = vld [vmem:[%s4 + $0x1a8] sm:$0xff]
  %v3074 = vld [vmem:[%s4 + $0x1b0] sm:$0xff]
  %v3075 = vld [vmem:[%s4 + $0x1b8] sm:$0xff]
  %v3076 = vld [vmem:[%s4 + $0x1c0] sm:$0xff]
  %v3077 = vld [vmem:[%s4 + $0x1c8] sm:$0xff]
  %v3078 = vld [vmem:[%s4 + $0x1d0] sm:$0xff]
  %v3079 = vld [vmem:[%s4 + $0x1d8] sm:$0xff]
  %v3080 = vld [vmem:[%s4 + $0x1e0] sm:$0xff]
  %v3081 = vld [vmem:[%s4 + $0x1e8] sm:$0xff]
  %v3082 = vld [vmem:[%s4 + $0x1f0] sm:$0xff]
  %v3083 = vld [vmem:[%s4 + $0x1f8] sm:$0xff]
  %v3085 = vlaneseq
  %v3086 = vshrl.u32 %v3085, 7
  %v3087 = vsub.s32 0, %v3086
  %v3088 = vrot.slane %v3018, %v3087
  %v3089 = vlaneseq
  %v3090 = vshrl.u32 %v3089, 7
  %v3091 = vsub.s32 1, %v3090
  %v3092 = vrot.slane %v3018, %v3091
  %v3093 = vlaneseq
  %v3094 = vshrl.u32 %v3093, 7
  %v3095 = vsub.s32 2, %v3094
  %v3096 = vrot.slane %v3018, %v3095
  %v3097 = vlaneseq
  %v3098 = vshrl.u32 %v3097, 7
  %v3099 = vsub.s32 3, %v3098
  %v3100 = vrot.slane %v3018, %v3099
  %v3101 = vlaneseq
  %v3102 = vshrl.u32 %v3101, 7
  %v3103 = vsub.s32 4, %v3102
  %v3104 = vrot.slane %v3018, %v3103
  %v3105 = vlaneseq
  %v3106 = vshrl.u32 %v3105, 7
  %v3107 = vsub.s32 5, %v3106
  %v3108 = vrot.slane %v3018, %v3107
  %v3109 = vlaneseq
  %v3110 = vshrl.u32 %v3109, 7
  %v3111 = vsub.s32 6, %v3110
  %v3112 = vrot.slane %v3018, %v3111
  %v3113 = vlaneseq
  %v3114 = vshrl.u32 %v3113, 7
  %v3115 = vsub.s32 7, %v3114
  %v3116 = vrot.slane %v3018, %v3115
  %v3189 = vunpack.c.l.b16 %v3020
  %v3190 = vunpack.c.h.b16 %v3020
  %v3191 = vunpack.c.l.b16 %v3021
  %v3192 = vunpack.c.h.b16 %v3021
  %v3193 = vunpack.c.l.b16 %v3022
  %v3194 = vunpack.c.h.b16 %v3022
  %v3195 = vunpack.c.l.b16 %v3023
  %v3196 = vunpack.c.h.b16 %v3023
  %v3197 = vunpack.c.l.b16 %v3024
  %v3198 = vunpack.c.h.b16 %v3024
  %v3199 = vunpack.c.l.b16 %v3025
  %v3200 = vunpack.c.h.b16 %v3025
  %v3201 = vunpack.c.l.b16 %v3026
  %v3202 = vunpack.c.h.b16 %v3026
  %v3203 = vunpack.c.l.b16 %v3027
  %v3204 = vunpack.c.h.b16 %v3027
  %v3205 = vunpack.c.l.b16 %v3028
  %v3206 = vunpack.c.h.b16 %v3028
  %v3207 = vunpack.c.l.b16 %v3029
  %v3208 = vunpack.c.h.b16 %v3029
  %v3209 = vunpack.c.l.b16 %v3030
  %v3210 = vunpack.c.h.b16 %v3030
  %v3211 = vunpack.c.l.b16 %v3031
  %v3212 = vunpack.c.h.b16 %v3031
  %v3213 = vunpack.c.l.b16 %v3032
  %v3214 = vunpack.c.h.b16 %v3032
  %v3215 = vunpack.c.l.b16 %v3033
  %v3216 = vunpack.c.h.b16 %v3033
  %v3217 = vunpack.c.l.b16 %v3034
  %v3218 = vunpack.c.h.b16 %v3034
  %v3219 = vunpack.c.l.b16 %v3035
  %v3220 = vunpack.c.h.b16 %v3035
  %v3221 = vunpack.c.l.b16 %v3036
  %v3222 = vunpack.c.h.b16 %v3036
  %v3223 = vunpack.c.l.b16 %v3037
  %v3224 = vunpack.c.h.b16 %v3037
  %v3225 = vunpack.c.l.b16 %v3038
  %v3226 = vunpack.c.h.b16 %v3038
  %v3227 = vunpack.c.l.b16 %v3039
  %v3228 = vunpack.c.h.b16 %v3039
  %v3229 = vunpack.c.l.b16 %v3040
  %v3230 = vunpack.c.h.b16 %v3040
  %v3231 = vunpack.c.l.b16 %v3041
  %v3232 = vunpack.c.h.b16 %v3041
  %v3233 = vunpack.c.l.b16 %v3042
  %v3234 = vunpack.c.h.b16 %v3042
  %v3235 = vunpack.c.l.b16 %v3043
  %v3236 = vunpack.c.h.b16 %v3043
  %v3237 = vunpack.c.l.b16 %v3044
  %v3238 = vunpack.c.h.b16 %v3044
  %v3239 = vunpack.c.l.b16 %v3045
  %v3240 = vunpack.c.h.b16 %v3045
  %v3241 = vunpack.c.l.b16 %v3046
  %v3242 = vunpack.c.h.b16 %v3046
  %v3243 = vunpack.c.l.b16 %v3047
  %v3244 = vunpack.c.h.b16 %v3047
  %v3245 = vunpack.c.l.b16 %v3048
  %v3246 = vunpack.c.h.b16 %v3048
  %v3247 = vunpack.c.l.b16 %v3049
  %v3248 = vunpack.c.h.b16 %v3049
  %v3249 = vunpack.c.l.b16 %v3050
  %v3250 = vunpack.c.h.b16 %v3050
  %v3251 = vunpack.c.l.b16 %v3051
  %v3252 = vunpack.c.h.b16 %v3051
  %v3253 = vunpack.c.l.b16 %v3052
  %v3254 = vunpack.c.h.b16 %v3052
  %v3255 = vunpack.c.l.b16 %v3053
  %v3256 = vunpack.c.h.b16 %v3053
  %v3257 = vunpack.c.l.b16 %v3054
  %v3258 = vunpack.c.h.b16 %v3054
  %v3259 = vunpack.c.l.b16 %v3055
  %v3260 = vunpack.c.h.b16 %v3055
  %v3261 = vunpack.c.l.b16 %v3056
  %v3262 = vunpack.c.h.b16 %v3056
  %v3263 = vunpack.c.l.b16 %v3057
  %v3264 = vunpack.c.h.b16 %v3057
  %v3265 = vunpack.c.l.b16 %v3058
  %v3266 = vunpack.c.h.b16 %v3058
  %v3267 = vunpack.c.l.b16 %v3059
  %v3268 = vunpack.c.h.b16 %v3059
  %v3269 = vunpack.c.l.b16 %v3060
  %v3270 = vunpack.c.h.b16 %v3060
  %v3271 = vunpack.c.l.b16 %v3061
  %v3272 = vunpack.c.h.b16 %v3061
  %v3273 = vunpack.c.l.b16 %v3062
  %v3274 = vunpack.c.h.b16 %v3062
  %v3275 = vunpack.c.l.b16 %v3063
  %v3276 = vunpack.c.h.b16 %v3063
  %v3277 = vunpack.c.l.b16 %v3064
  %v3278 = vunpack.c.h.b16 %v3064
  %v3279 = vunpack.c.l.b16 %v3065
  %v3280 = vunpack.c.h.b16 %v3065
  %v3281 = vunpack.c.l.b16 %v3066
  %v3282 = vunpack.c.h.b16 %v3066
  %v3283 = vunpack.c.l.b16 %v3067
  %v3284 = vunpack.c.h.b16 %v3067
  %v3285 = vunpack.c.l.b16 %v3068
  %v3286 = vunpack.c.h.b16 %v3068
  %v3287 = vunpack.c.l.b16 %v3069
  %v3288 = vunpack.c.h.b16 %v3069
  %v3289 = vunpack.c.l.b16 %v3070
  %v3290 = vunpack.c.h.b16 %v3070
  %v3291 = vunpack.c.l.b16 %v3071
  %v3292 = vunpack.c.h.b16 %v3071
  %v3293 = vunpack.c.l.b16 %v3072
  %v3294 = vunpack.c.h.b16 %v3072
  %v3295 = vunpack.c.l.b16 %v3073
  %v3296 = vunpack.c.h.b16 %v3073
  %v3297 = vunpack.c.l.b16 %v3074
  %v3298 = vunpack.c.h.b16 %v3074
  %v3299 = vunpack.c.l.b16 %v3075
  %v3300 = vunpack.c.h.b16 %v3075
  %v3301 = vunpack.c.l.b16 %v3076
  %v3302 = vunpack.c.h.b16 %v3076
  %v3303 = vunpack.c.l.b16 %v3077
  %v3304 = vunpack.c.h.b16 %v3077
  %v3305 = vunpack.c.l.b16 %v3078
  %v3306 = vunpack.c.h.b16 %v3078
  %v3307 = vunpack.c.l.b16 %v3079
  %v3308 = vunpack.c.h.b16 %v3079
  %v3309 = vunpack.c.l.b16 %v3080
  %v3310 = vunpack.c.h.b16 %v3080
  %v3311 = vunpack.c.l.b16 %v3081
  %v3312 = vunpack.c.h.b16 %v3081
  %v3313 = vunpack.c.l.b16 %v3082
  %v3314 = vunpack.c.h.b16 %v3082
  %v3315 = vunpack.c.l.b16 %v3083
  %v3316 = vunpack.c.h.b16 %v3083
  %v3317 = vpack.c.b16 %v3197, %v3189
  %v3318 = vpack.c.b16 %v3198, %v3190
  %v3319 = vpack.c.b16 %v3199, %v3191
  %v3320 = vpack.c.b16 %v3200, %v3192
  %v3321 = vpack.c.b16 %v3201, %v3193
  %v3322 = vpack.c.b16 %v3202, %v3194
  %v3323 = vpack.c.b16 %v3203, %v3195
  %v3324 = vpack.c.b16 %v3204, %v3196
  %v3325 = vpack.c.b16 %v3213, %v3205
  %v3326 = vpack.c.b16 %v3214, %v3206
  %v3327 = vpack.c.b16 %v3215, %v3207
  %v3328 = vpack.c.b16 %v3216, %v3208
  %v3329 = vpack.c.b16 %v3217, %v3209
  %v3330 = vpack.c.b16 %v3218, %v3210
  %v3331 = vpack.c.b16 %v3219, %v3211
  %v3332 = vpack.c.b16 %v3220, %v3212
  %v3333 = vpack.c.b16 %v3229, %v3221
  %v3334 = vpack.c.b16 %v3230, %v3222
  %v3335 = vpack.c.b16 %v3231, %v3223
  %v3336 = vpack.c.b16 %v3232, %v3224
  %v3337 = vpack.c.b16 %v3233, %v3225
  %v3338 = vpack.c.b16 %v3234, %v3226
  %v3339 = vpack.c.b16 %v3235, %v3227
  %v3340 = vpack.c.b16 %v3236, %v3228
  %v3341 = vpack.c.b16 %v3245, %v3237
  %v3342 = vpack.c.b16 %v3246, %v3238
  %v3343 = vpack.c.b16 %v3247, %v3239
  %v3344 = vpack.c.b16 %v3248, %v3240
  %v3345 = vpack.c.b16 %v3249, %v3241
  %v3346 = vpack.c.b16 %v3250, %v3242
  %v3347 = vpack.c.b16 %v3251, %v3243
  %v3348 = vpack.c.b16 %v3252, %v3244
  %v3349 = vpack.c.b16 %v3261, %v3253
  %v3350 = vpack.c.b16 %v3262, %v3254
  %v3351 = vpack.c.b16 %v3263, %v3255
  %v3352 = vpack.c.b16 %v3264, %v3256
  %v3353 = vpack.c.b16 %v3265, %v3257
  %v3354 = vpack.c.b16 %v3266, %v3258
  %v3355 = vpack.c.b16 %v3267, %v3259
  %v3356 = vpack.c.b16 %v3268, %v3260
  %v3357 = vpack.c.b16 %v3277, %v3269
  %v3358 = vpack.c.b16 %v3278, %v3270
  %v3359 = vpack.c.b16 %v3279, %v3271
  %v3360 = vpack.c.b16 %v3280, %v3272
  %v3361 = vpack.c.b16 %v3281, %v3273
  %v3362 = vpack.c.b16 %v3282, %v3274
  %v3363 = vpack.c.b16 %v3283, %v3275
  %v3364 = vpack.c.b16 %v3284, %v3276
  %v3365 = vpack.c.b16 %v3293, %v3285
  %v3366 = vpack.c.b16 %v3294, %v3286
  %v3367 = vpack.c.b16 %v3295, %v3287
  %v3368 = vpack.c.b16 %v3296, %v3288
  %v3369 = vpack.c.b16 %v3297, %v3289
  %v3370 = vpack.c.b16 %v3298, %v3290
  %v3371 = vpack.c.b16 %v3299, %v3291
  %v3372 = vpack.c.b16 %v3300, %v3292
  %v3373 = vpack.c.b16 %v3309, %v3301
  %v3374 = vpack.c.b16 %v3310, %v3302
  %v3375 = vpack.c.b16 %v3311, %v3303
  %v3376 = vpack.c.b16 %v3312, %v3304
  %v3377 = vpack.c.b16 %v3313, %v3305
  %v3378 = vpack.c.b16 %v3314, %v3306
  %v3379 = vpack.c.b16 %v3315, %v3307
  %v3380 = vpack.c.b16 %v3316, %v3308
  %3445 = vmatprep.subr.bf16.mxu0 %v3318
  %3446 = vmatpush1.bf16.msra.mxu0 %v3317
  %3447 = vmatprep.subr.bf16.mxu0 %v3326
  %3448 = vmatpush1.bf16.msra.mxu0 %v3325
  %3449 = vmatprep.subr.bf16.mxu0 %v3334
  %3450 = vmatpush1.bf16.msra.mxu0 %v3333
  %3451 = vmatprep.subr.bf16.mxu0 %v3342
  %3452 = vmatpush1.bf16.msra.mxu0 %v3341
  %3453 = vmatprep.subr.bf16.mxu0 %v3350
  %3454 = vmatpush1.bf16.msra.mxu0 %v3349
  %3455 = vmatprep.subr.bf16.mxu0 %v3358
  %3456 = vmatpush1.bf16.msra.mxu0 %v3357
  %3457 = vmatprep.subr.bf16.mxu0 %v3366
  %3458 = vmatpush1.bf16.msra.mxu0 %v3365
  %3459 = vmatprep.subr.bf16.mxu0 %v3374
  %3460 = vmatpush1.bf16.msra.mxu0 %v3373
  %3461 = vmatprep.subr.bf16.mxu0 0
  %3462 = vmatpush1.bf16.msra.mxu0 0
  %3463 = vmatprep.subr.bf16.mxu0 0
  %3464 = vmatpush1.bf16.msra.mxu0 0
  %3465 = vmatprep.subr.bf16.mxu0 0
  %3466 = vmatpush1.bf16.msra.mxu0 0
  %3467 = vmatprep.subr.bf16.mxu0 0
  %3468 = vmatpush1.bf16.msra.mxu0 0
  %3469 = vmatprep.subr.bf16.mxu0 0
  %3470 = vmatpush1.bf16.msra.mxu0 0
  %3471 = vmatprep.subr.bf16.mxu0 0
  %3472 = vmatpush1.bf16.msra.mxu0 0
  %3473 = vmatprep.subr.bf16.mxu0 0
  %3474 = vmatpush1.bf16.msra.mxu0 0
  %3475 = vmatprep.subr.bf16.mxu0 0
  %3476 = vmatpush1.bf16.msra.mxu0 0
  %3477 = vmatprep.mubr.bf16.mxu0 0
  %3478 = vmatmul.mubr.bf16.gmra.mrb[0].mxu0 %v3019
  %v3479 = vpop.f32.mrb[0].mxu0
  %v3480 = vadd.f32 %v3088, %v3479
  %v3481 = vpop.f32.mrb[0].mxu0
  %v3482 = vadd.f32 %v3092, %v3481
  %v3483 = vpop.f32.mrb[0].mxu0
  %v3484 = vpop.f32.mrb[0].mxu0
  %3485 = vdwg.mxu0
  %3486 = vmatprep.subr.bf16.mxu0 %v3320
  %3487 = vmatpush1.bf16.msra.mxu0 %v3319
  %3488 = vmatprep.subr.bf16.mxu0 %v3328
  %3489 = vmatpush1.bf16.msra.mxu0 %v3327
  %3490 = vmatprep.subr.bf16.mxu0 %v3336
  %3491 = vmatpush1.bf16.msra.mxu0 %v3335
  %3492 = vmatprep.subr.bf16.mxu0 %v3344
  %3493 = vmatpush1.bf16.msra.mxu0 %v3343
  %3494 = vmatprep.subr.bf16.mxu0 %v3352
  %3495 = vmatpush1.bf16.msra.mxu0 %v3351
  %3496 = vmatprep.subr.bf16.mxu0 %v3360
  %3497 = vmatpush1.bf16.msra.mxu0 %v3359
  %3498 = vmatprep.subr.bf16.mxu0 %v3368
  %3499 = vmatpush1.bf16.msra.mxu0 %v3367
  %3500 = vmatprep.subr.bf16.mxu0 %v3376
  %3501 = vmatpush1.bf16.msra.mxu0 %v3375
  %3502 = vmatprep.subr.bf16.mxu0 0
  %3503 = vmatpush1.bf16.msra.mxu0 0
  %3504 = vmatprep.subr.bf16.mxu0 0
  %3505 = vmatpush1.bf16.msra.mxu0 0
  %3506 = vmatprep.subr.bf16.mxu0 0
  %3507 = vmatpush1.bf16.msra.mxu0 0
  %3508 = vmatprep.subr.bf16.mxu0 0
  %3509 = vmatpush1.bf16.msra.mxu0 0
  %3510 = vmatprep.subr.bf16.mxu0 0
  %3511 = vmatpush1.bf16.msra.mxu0 0
  %3512 = vmatprep.subr.bf16.mxu0 0
  %3513 = vmatpush1.bf16.msra.mxu0 0
  %3514 = vmatprep.subr.bf16.mxu0 0
  %3515 = vmatpush1.bf16.msra.mxu0 0
  %3516 = vmatprep.subr.bf16.mxu0 0
  %3517 = vmatpush1.bf16.msra.mxu0 0
  %3518 = vmatprep.mubr.bf16.mxu0 0
  %3519 = vmatmul.mubr.bf16.gmra.mrb[0].mxu0 %v3019
  %v3520 = vpop.f32.mrb[0].mxu0
  %v3521 = vadd.f32 %v3096, %v3520
  %v3522 = vpop.f32.mrb[0].mxu0
  %v3523 = vadd.f32 %v3100, %v3522
  %v3524 = vpop.f32.mrb[0].mxu0
  %v3525 = vpop.f32.mrb[0].mxu0
  %3526 = vdwg.mxu0
  %3527 = vmatprep.subr.bf16.mxu0 %v3322
  %3528 = vmatpush1.bf16.msra.mxu0 %v3321
  %3529 = vmatprep.subr.bf16.mxu0 %v3330
  %3530 = vmatpush1.bf16.msra.mxu0 %v3329
  %3531 = vmatprep.subr.bf16.mxu0 %v3338
  %3532 = vmatpush1.bf16.msra.mxu0 %v3337
  %3533 = vmatprep.subr.bf16.mxu0 %v3346
  %3534 = vmatpush1.bf16.msra.mxu0 %v3345
  %3535 = vmatprep.subr.bf16.mxu0 %v3354
  %3536 = vmatpush1.bf16.msra.mxu0 %v3353
  %3537 = vmatprep.subr.bf16.mxu0 %v3362
  %3538 = vmatpush1.bf16.msra.mxu0 %v3361
  %3539 = vmatprep.subr.bf16.mxu0 %v3370
  %3540 = vmatpush1.bf16.msra.mxu0 %v3369
  %3541 = vmatprep.subr.bf16.mxu0 %v3378
  %3542 = vmatpush1.bf16.msra.mxu0 %v3377
  %3543 = vmatprep.subr.bf16.mxu0 0
  %3544 = vmatpush1.bf16.msra.mxu0 0
  %3545 = vmatprep.subr.bf16.mxu0 0
  %3546 = vmatpush1.bf16.msra.mxu0 0
  %3547 = vmatprep.subr.bf16.mxu0 0
  %3548 = vmatpush1.bf16.msra.mxu0 0
  %3549 = vmatprep.subr.bf16.mxu0 0
  %3550 = vmatpush1.bf16.msra.mxu0 0
  %3551 = vmatprep.subr.bf16.mxu0 0
  %3552 = vmatpush1.bf16.msra.mxu0 0
  %3553 = vmatprep.subr.bf16.mxu0 0
  %3554 = vmatpush1.bf16.msra.mxu0 0
  %3555 = vmatprep.subr.bf16.mxu0 0
  %3556 = vmatpush1.bf16.msra.mxu0 0
  %3557 = vmatprep.subr.bf16.mxu0 0
  %3558 = vmatpush1.bf16.msra.mxu0 0
  %3559 = vmatprep.mubr.bf16.mxu0 0
  %3560 = vmatmul.mubr.bf16.gmra.mrb[0].mxu0 %v3019
  %v3561 = vpop.f32.mrb[0].mxu0
  %v3562 = vadd.f32 %v3104, %v3561
  %v3563 = vpop.f32.mrb[0].mxu0
  %v3564 = vadd.f32 %v3108, %v3563
  %v3565 = vpop.f32.mrb[0].mxu0
  %v3566 = vpop.f32.mrb[0].mxu0
  %3567 = vdwg.mxu0
  %3568 = vmatprep.subr.bf16.mxu0 %v3324
  %3569 = vmatpush1.bf16.msra.mxu0 %v3323
  %3570 = vmatprep.subr.bf16.mxu0 %v3332
  %3571 = vmatpush1.bf16.msra.mxu0 %v3331
  %3572 = vmatprep.subr.bf16.mxu0 %v3340
  %3573 = vmatpush1.bf16.msra.mxu0 %v3339
  %3574 = vmatprep.subr.bf16.mxu0 %v3348
  %3575 = vmatpush1.bf16.msra.mxu0 %v3347
  %3576 = vmatprep.subr.bf16.mxu0 %v3356
  %3577 = vmatpush1.bf16.msra.mxu0 %v3355
  %3578 = vmatprep.subr.bf16.mxu0 %v3364
  %3579 = vmatpush1.bf16.msra.mxu0 %v3363
  %3580 = vmatprep.subr.bf16.mxu0 %v3372
  %3581 = vmatpush1.bf16.msra.mxu0 %v3371
  %3582 = vmatprep.subr.bf16.mxu0 %v3380
  %3583 = vmatpush1.bf16.msra.mxu0 %v3379
  %3584 = vmatprep.subr.bf16.mxu0 0
  %3585 = vmatpush1.bf16.msra.mxu0 0
  %3586 = vmatprep.subr.bf16.mxu0 0
  %3587 = vmatpush1.bf16.msra.mxu0 0
  %3588 = vmatprep.subr.bf16.mxu0 0
  %3589 = vmatpush1.bf16.msra.mxu0 0
  %3590 = vmatprep.subr.bf16.mxu0 0
  %3591 = vmatpush1.bf16.msra.mxu0 0
  %3592 = vmatprep.subr.bf16.mxu0 0
  %3593 = vmatpush1.bf16.msra.mxu0 0
  %3594 = vmatprep.subr.bf16.mxu0 0
  %3595 = vmatpush1.bf16.msra.mxu0 0
  %3596 = vmatprep.subr.bf16.mxu0 0
  %3597 = vmatpush1.bf16.msra.mxu0 0
  %3598 = vmatprep.subr.bf16.mxu0 0
  %3599 = vmatpush1.bf16.msra.mxu0 0
  %3600 = vmatprep.mubr.bf16.mxu0 0
  %3601 = vmatmul.mubr.bf16.gmra.mrb[0].mxu0 %v3019
  %v3602 = vpop.f32.mrb[0].mxu0
  %v3603 = vadd.f32 %v3112, %v3602
  %v3604 = vpop.f32.mrb[0].mxu0
  %v3605 = vadd.f32 %v3116, %v3604
  %v3606 = vpop.f32.mrb[0].mxu0
  %v3607 = vpop.f32.mrb[0].mxu0
  %3608 = vdwg.mxu0
  %v3609 = vld [vmem:[%s3 + $0x9] sm:$0x3]
  %v3610 = vpack.c.bf16 %v3480, %v3480
  %v3611 = vpack.c.bf16 %v3482, %v3482
  %v3612 = vpack.c.bf16 %v3521, %v3521
  %v3613 = vpack.c.bf16 %v3523, %v3523
  %v3614 = vpack.c.bf16 %v3562, %v3562
  %v3615 = vpack.c.bf16 %v3564, %v3564
  %v3616 = vpack.c.bf16 %v3603, %v3603
  %v3617 = vpack.c.bf16 %v3605, %v3605
  %v3618 = vld [vmem:[%s5] sm:$0xff]
  %v3619 = vld [vmem:[%s5 + $0x8] sm:$0xff]
  %v3620 = vld [vmem:[%s5 + $0x10] sm:$0xff]
  %v3621 = vld [vmem:[%s5 + $0x18] sm:$0xff]
  %v3622 = vld [vmem:[%s5 + $0x20] sm:$0xff]
  %v3623 = vld [vmem:[%s5 + $0x28] sm:$0xff]
  %v3624 = vld [vmem:[%s5 + $0x30] sm:$0xff]
  %v3625 = vld [vmem:[%s5 + $0x38] sm:$0xff]
  %v3626 = vld [vmem:[%s5 + $0x40] sm:$0xff]
  %v3627 = vld [vmem:[%s5 + $0x48] sm:$0xff]
  %v3628 = vld [vmem:[%s5 + $0x50] sm:$0xff]
  %v3629 = vld [vmem:[%s5 + $0x58] sm:$0xff]
  %v3630 = vld [vmem:[%s5 + $0x60] sm:$0xff]
  %v3631 = vld [vmem:[%s5 + $0x68] sm:$0xff]
  %v3632 = vld [vmem:[%s5 + $0x70] sm:$0xff]
  %v3633 = vld [vmem:[%s5 + $0x78] sm:$0xff]
  %v3634 = vld [vmem:[%s5 + $0x80] sm:$0xff]
  %v3635 = vld [vmem:[%s5 + $0x88] sm:$0xff]
  %v3636 = vld [vmem:[%s5 + $0x90] sm:$0xff]
  %v3637 = vld [vmem:[%s5 + $0x98] sm:$0xff]
  %v3638 = vld [vmem:[%s5 + $0xa0] sm:$0xff]
  %v3639 = vld [vmem:[%s5 + $0xa8] sm:$0xff]
  %v3640 = vld [vmem:[%s5 + $0xb0] sm:$0xff]
  %v3641 = vld [vmem:[%s5 + $0xb8] sm:$0xff]
  %v3642 = vld [vmem:[%s5 + $0xc0] sm:$0xff]
  %v3643 = vld [vmem:[%s5 + $0xc8] sm:$0xff]
  %v3644 = vld [vmem:[%s5 + $0xd0] sm:$0xff]
  %v3645 = vld [vmem:[%s5 + $0xd8] sm:$0xff]
  %v3646 = vld [vmem:[%s5 + $0xe0] sm:$0xff]
  %v3647 = vld [vmem:[%s5 + $0xe8] sm:$0xff]
  %v3648 = vld [vmem:[%s5 + $0xf0] sm:$0xff]
  %v3649 = vld [vmem:[%s5 + $0xf8] sm:$0xff]
  %v3650 = vld [vmem:[%s5 + $0x100] sm:$0xff]
  %v3651 = vld [vmem:[%s5 + $0x108] sm:$0xff]
  %v3652 = vld [vmem:[%s5 + $0x110] sm:$0xff]
  %v3653 = vld [vmem:[%s5 + $0x118] sm:$0xff]
  %v3654 = vld [vmem:[%s5 + $0x120] sm:$0xff]
  %v3655 = vld [vmem:[%s5 + $0x128] sm:$0xff]
  %v3656 = vld [vmem:[%s5 + $0x130] sm:$0xff]
  %v3657 = vld [vmem:[%s5 + $0x138] sm:$0xff]
  %v3658 = vld [vmem:[%s5 + $0x140] sm:$0xff]
  %v3659 = vld [vmem:[%s5 + $0x148] sm:$0xff]
  %v3660 = vld [vmem:[%s5 + $0x150] sm:$0xff]
  %v3661 = vld [vmem:[%s5 + $0x158] sm:$0xff]
  %v3662 = vld [vmem:[%s5 + $0x160] sm:$0xff]
  %v3663 = vld [vmem:[%s5 + $0x168] sm:$0xff]
  %v3664 = vld [vmem:[%s5 + $0x170] sm:$0xff]
  %v3665 = vld [vmem:[%s5 + $0x178] sm:$0xff]
  %v3666 = vld [vmem:[%s5 + $0x180] sm:$0xff]
  %v3667 = vld [vmem:[%s5 + $0x188] sm:$0xff]
  %v3668 = vld [vmem:[%s5 + $0x190] sm:$0xff]
  %v3669 = vld [vmem:[%s5 + $0x198] sm:$0xff]
  %v3670 = vld [vmem:[%s5 + $0x1a0] sm:$0xff]
  %v3671 = vld [vmem:[%s5 + $0x1a8] sm:$0xff]
  %v3672 = vld [vmem:[%s5 + $0x1b0] sm:$0xff]
  %v3673 = vld [vmem:[%s5 + $0x1b8] sm:$0xff]
  %v3674 = vld [vmem:[%s5 + $0x1c0] sm:$0xff]
  %v3675 = vld [vmem:[%s5 + $0x1c8] sm:$0xff]
  %v3676 = vld [vmem:[%s5 + $0x1d0] sm:$0xff]
  %v3677 = vld [vmem:[%s5 + $0x1d8] sm:$0xff]
  %v3678 = vld [vmem:[%s5 + $0x1e0] sm:$0xff]
  %v3679 = vld [vmem:[%s5 + $0x1e8] sm:$0xff]
  %v3680 = vld [vmem:[%s5 + $0x1f0] sm:$0xff]
  %v3681 = vld [vmem:[%s5 + $0x1f8] sm:$0xff]
  %v3682 = vld [vmem:[%s5 + $0x200] sm:$0xff]
  %v3683 = vld [vmem:[%s5 + $0x208] sm:$0xff]
  %v3684 = vld [vmem:[%s5 + $0x210] sm:$0xff]
  %v3685 = vld [vmem:[%s5 + $0x218] sm:$0xff]
  %v3686 = vld [vmem:[%s5 + $0x220] sm:$0xff]
  %v3687 = vld [vmem:[%s5 + $0x228] sm:$0xff]
  %v3688 = vld [vmem:[%s5 + $0x230] sm:$0xff]
  %v3689 = vld [vmem:[%s5 + $0x238] sm:$0xff]
  %v3690 = vld [vmem:[%s5 + $0x240] sm:$0xff]
  %v3691 = vld [vmem:[%s5 + $0x248] sm:$0xff]
  %v3692 = vld [vmem:[%s5 + $0x250] sm:$0xff]
  %v3693 = vld [vmem:[%s5 + $0x258] sm:$0xff]
  %v3694 = vld [vmem:[%s5 + $0x260] sm:$0xff]
  %v3695 = vld [vmem:[%s5 + $0x268] sm:$0xff]
  %v3696 = vld [vmem:[%s5 + $0x270] sm:$0xff]
  %v3697 = vld [vmem:[%s5 + $0x278] sm:$0xff]
  %v3698 = vld [vmem:[%s5 + $0x280] sm:$0xff]
  %v3699 = vld [vmem:[%s5 + $0x288] sm:$0xff]
  %v3700 = vld [vmem:[%s5 + $0x290] sm:$0xff]
  %v3701 = vld [vmem:[%s5 + $0x298] sm:$0xff]
  %v3702 = vld [vmem:[%s5 + $0x2a0] sm:$0xff]
  %v3703 = vld [vmem:[%s5 + $0x2a8] sm:$0xff]
  %v3704 = vld [vmem:[%s5 + $0x2b0] sm:$0xff]
  %v3705 = vld [vmem:[%s5 + $0x2b8] sm:$0xff]
  %v3706 = vld [vmem:[%s5 + $0x2c0] sm:$0xff]
  %v3707 = vld [vmem:[%s5 + $0x2c8] sm:$0xff]
  %v3708 = vld [vmem:[%s5 + $0x2d0] sm:$0xff]
  %v3709 = vld [vmem:[%s5 + $0x2d8] sm:$0xff]
  %v3710 = vld [vmem:[%s5 + $0x2e0] sm:$0xff]
  %v3711 = vld [vmem:[%s5 + $0x2e8] sm:$0xff]
  %v3712 = vld [vmem:[%s5 + $0x2f0] sm:$0xff]
  %v3713 = vld [vmem:[%s5 + $0x2f8] sm:$0xff]
  %v3714 = vld [vmem:[%s5 + $0x300] sm:$0xff]
  %v3715 = vld [vmem:[%s5 + $0x308] sm:$0xff]
  %v3716 = vld [vmem:[%s5 + $0x310] sm:$0xff]
  %v3717 = vld [vmem:[%s5 + $0x318] sm:$0xff]
  %v3718 = vld [vmem:[%s5 + $0x320] sm:$0xff]
  %v3719 = vld [vmem:[%s5 + $0x328] sm:$0xff]
  %v3720 = vld [vmem:[%s5 + $0x330] sm:$0xff]
  %v3721 = vld [vmem:[%s5 + $0x338] sm:$0xff]
  %v3722 = vld [vmem:[%s5 + $0x340] sm:$0xff]
  %v3723 = vld [vmem:[%s5 + $0x348] sm:$0xff]
  %v3724 = vld [vmem:[%s5 + $0x350] sm:$0xff]
  %v3725 = vld [vmem:[%s5 + $0x358] sm:$0xff]
  %v3726 = vld [vmem:[%s5 + $0x360] sm:$0xff]
  %v3727 = vld [vmem:[%s5 + $0x368] sm:$0xff]
  %v3728 = vld [vmem:[%s5 + $0x370] sm:$0xff]
  %v3729 = vld [vmem:[%s5 + $0x378] sm:$0xff]
  %v3730 = vld [vmem:[%s5 + $0x380] sm:$0xff]
  %v3731 = vld [vmem:[%s5 + $0x388] sm:$0xff]
  %v3732 = vld [vmem:[%s5 + $0x390] sm:$0xff]
  %v3733 = vld [vmem:[%s5 + $0x398] sm:$0xff]
  %v3734 = vld [vmem:[%s5 + $0x3a0] sm:$0xff]
  %v3735 = vld [vmem:[%s5 + $0x3a8] sm:$0xff]
  %v3736 = vld [vmem:[%s5 + $0x3b0] sm:$0xff]
  %v3737 = vld [vmem:[%s5 + $0x3b8] sm:$0xff]
  %v3738 = vld [vmem:[%s5 + $0x3c0] sm:$0xff]
  %v3739 = vld [vmem:[%s5 + $0x3c8] sm:$0xff]
  %v3740 = vld [vmem:[%s5 + $0x3d0] sm:$0xff]
  %v3741 = vld [vmem:[%s5 + $0x3d8] sm:$0xff]
  %v3742 = vld [vmem:[%s5 + $0x3e0] sm:$0xff]
  %v3743 = vld [vmem:[%s5 + $0x3e8] sm:$0xff]
  %v3744 = vld [vmem:[%s5 + $0x3f0] sm:$0xff]
  %v3745 = vld [vmem:[%s5 + $0x3f8] sm:$0xff]
  %v3747 = vlaneseq
  %v3748 = vshrl.u32 %v3747, 7
  %v3749 = vsub.s32 0, %v3748
  %v3750 = vrot.slane %v3609, %v3749
  %v3751 = vlaneseq
  %v3752 = vshrl.u32 %v3751, 7
  %v3753 = vsub.s32 1, %v3752
  %v3754 = vrot.slane %v3609, %v3753
  %v3885 = vunpack.c.l.b16 %v3618
  %v3886 = vunpack.c.h.b16 %v3618
  %v3887 = vunpack.c.l.b16 %v3619
  %v3888 = vunpack.c.h.b16 %v3619
  %v3889 = vunpack.c.l.b16 %v3620
  %v3890 = vunpack.c.h.b16 %v3620
  %v3891 = vunpack.c.l.b16 %v3621
  %v3892 = vunpack.c.h.b16 %v3621
  %v3893 = vunpack.c.l.b16 %v3622
  %v3894 = vunpack.c.h.b16 %v3622
  %v3895 = vunpack.c.l.b16 %v3623
  %v3896 = vunpack.c.h.b16 %v3623
  %v3897 = vunpack.c.l.b16 %v3624
  %v3898 = vunpack.c.h.b16 %v3624
  %v3899 = vunpack.c.l.b16 %v3625
  %v3900 = vunpack.c.h.b16 %v3625
  %v3901 = vunpack.c.l.b16 %v3626
  %v3902 = vunpack.c.h.b16 %v3626
  %v3903 = vunpack.c.l.b16 %v3627
  %v3904 = vunpack.c.h.b16 %v3627
  %v3905 = vunpack.c.l.b16 %v3628
  %v3906 = vunpack.c.h.b16 %v3628
  %v3907 = vunpack.c.l.b16 %v3629
  %v3908 = vunpack.c.h.b16 %v3629
  %v3909 = vunpack.c.l.b16 %v3630
  %v3910 = vunpack.c.h.b16 %v3630
  %v3911 = vunpack.c.l.b16 %v3631
  %v3912 = vunpack.c.h.b16 %v3631
  %v3913 = vunpack.c.l.b16 %v3632
  %v3914 = vunpack.c.h.b16 %v3632
  %v3915 = vunpack.c.l.b16 %v3633
  %v3916 = vunpack.c.h.b16 %v3633
  %v3917 = vunpack.c.l.b16 %v3634
  %v3918 = vunpack.c.h.b16 %v3634
  %v3919 = vunpack.c.l.b16 %v3635
  %v3920 = vunpack.c.h.b16 %v3635
  %v3921 = vunpack.c.l.b16 %v3636
  %v3922 = vunpack.c.h.b16 %v3636
  %v3923 = vunpack.c.l.b16 %v3637
  %v3924 = vunpack.c.h.b16 %v3637
  %v3925 = vunpack.c.l.b16 %v3638
  %v3926 = vunpack.c.h.b16 %v3638
  %v3927 = vunpack.c.l.b16 %v3639
  %v3928 = vunpack.c.h.b16 %v3639
  %v3929 = vunpack.c.l.b16 %v3640
  %v3930 = vunpack.c.h.b16 %v3640
  %v3931 = vunpack.c.l.b16 %v3641
  %v3932 = vunpack.c.h.b16 %v3641
  %v3933 = vunpack.c.l.b16 %v3642
  %v3934 = vunpack.c.h.b16 %v3642
  %v3935 = vunpack.c.l.b16 %v3643
  %v3936 = vunpack.c.h.b16 %v3643
  %v3937 = vunpack.c.l.b16 %v3644
  %v3938 = vunpack.c.h.b16 %v3644
  %v3939 = vunpack.c.l.b16 %v3645
  %v3940 = vunpack.c.h.b16 %v3645
  %v3941 = vunpack.c.l.b16 %v3646
  %v3942 = vunpack.c.h.b16 %v3646
  %v3943 = vunpack.c.l.b16 %v3647
  %v3944 = vunpack.c.h.b16 %v3647
  %v3945 = vunpack.c.l.b16 %v3648
  %v3946 = vunpack.c.h.b16 %v3648
  %v3947 = vunpack.c.l.b16 %v3649
  %v3948 = vunpack.c.h.b16 %v3649
  %v3949 = vunpack.c.l.b16 %v3650
  %v3950 = vunpack.c.h.b16 %v3650
  %v3951 = vunpack.c.l.b16 %v3651
  %v3952 = vunpack.c.h.b16 %v3651
  %v3953 = vunpack.c.l.b16 %v3652
  %v3954 = vunpack.c.h.b16 %v3652
  %v3955 = vunpack.c.l.b16 %v3653
  %v3956 = vunpack.c.h.b16 %v3653
  %v3957 = vunpack.c.l.b16 %v3654
  %v3958 = vunpack.c.h.b16 %v3654
  %v3959 = vunpack.c.l.b16 %v3655
  %v3960 = vunpack.c.h.b16 %v3655
  %v3961 = vunpack.c.l.b16 %v3656
  %v3962 = vunpack.c.h.b16 %v3656
  %v3963 = vunpack.c.l.b16 %v3657
  %v3964 = vunpack.c.h.b16 %v3657
  %v3965 = vunpack.c.l.b16 %v3658
  %v3966 = vunpack.c.h.b16 %v3658
  %v3967 = vunpack.c.l.b16 %v3659
  %v3968 = vunpack.c.h.b16 %v3659
  %v3969 = vunpack.c.l.b16 %v3660
  %v3970 = vunpack.c.h.b16 %v3660
  %v3971 = vunpack.c.l.b16 %v3661
  %v3972 = vunpack.c.h.b16 %v3661
  %v3973 = vunpack.c.l.b16 %v3662
  %v3974 = vunpack.c.h.b16 %v3662
  %v3975 = vunpack.c.l.b16 %v3663
  %v3976 = vunpack.c.h.b16 %v3663
  %v3977 = vunpack.c.l.b16 %v3664
  %v3978 = vunpack.c.h.b16 %v3664
  %v3979 = vunpack.c.l.b16 %v3665
  %v3980 = vunpack.c.h.b16 %v3665
  %v3981 = vunpack.c.l.b16 %v3666
  %v3982 = vunpack.c.h.b16 %v3666
  %v3983 = vunpack.c.l.b16 %v3667
  %v3984 = vunpack.c.h.b16 %v3667
  %v3985 = vunpack.c.l.b16 %v3668
  %v3986 = vunpack.c.h.b16 %v3668
  %v3987 = vunpack.c.l.b16 %v3669
  %v3988 = vunpack.c.h.b16 %v3669
  %v3989 = vunpack.c.l.b16 %v3670
  %v3990 = vunpack.c.h.b16 %v3670
  %v3991 = vunpack.c.l.b16 %v3671
  %v3992 = vunpack.c.h.b16 %v3671
  %v3993 = vunpack.c.l.b16 %v3672
  %v3994 = vunpack.c.h.b16 %v3672
  %v3995 = vunpack.c.l.b16 %v3673
  %v3996 = vunpack.c.h.b16 %v3673
  %v3997 = vunpack.c.l.b16 %v3674
  %v3998 = vunpack.c.h.b16 %v3674
  %v3999 = vunpack.c.l.b16 %v3675
  %v4000 = vunpack.c.h.b16 %v3675
  %v4001 = vunpack.c.l.b16 %v3676
  %v4002 = vunpack.c.h.b16 %v3676
  %v4003 = vunpack.c.l.b16 %v3677
  %v4004 = vunpack.c.h.b16 %v3677
  %v4005 = vunpack.c.l.b16 %v3678
  %v4006 = vunpack.c.h.b16 %v3678
  %v4007 = vunpack.c.l.b16 %v3679
  %v4008 = vunpack.c.h.b16 %v3679
  %v4009 = vunpack.c.l.b16 %v3680
  %v4010 = vunpack.c.h.b16 %v3680
  %v4011 = vunpack.c.l.b16 %v3681
  %v4012 = vunpack.c.h.b16 %v3681
  %v4013 = vunpack.c.l.b16 %v3682
  %v4014 = vunpack.c.h.b16 %v3682
  %v4015 = vunpack.c.l.b16 %v3683
  %v4016 = vunpack.c.h.b16 %v3683
  %v4017 = vunpack.c.l.b16 %v3684
  %v4018 = vunpack.c.h.b16 %v3684
  %v4019 = vunpack.c.l.b16 %v3685
  %v4020 = vunpack.c.h.b16 %v3685
  %v4021 = vunpack.c.l.b16 %v3686
  %v4022 = vunpack.c.h.b16 %v3686
  %v4023 = vunpack.c.l.b16 %v3687
  %v4024 = vunpack.c.h.b16 %v3687
  %v4025 = vunpack.c.l.b16 %v3688
  %v4026 = vunpack.c.h.b16 %v3688
  %v4027 = vunpack.c.l.b16 %v3689
  %v4028 = vunpack.c.h.b16 %v3689
  %v4029 = vunpack.c.l.b16 %v3690
  %v4030 = vunpack.c.h.b16 %v3690
  %v4031 = vunpack.c.l.b16 %v3691
  %v4032 = vunpack.c.h.b16 %v3691
  %v4033 = vunpack.c.l.b16 %v3692
  %v4034 = vunpack.c.h.b16 %v3692
  %v4035 = vunpack.c.l.b16 %v3693
  %v4036 = vunpack.c.h.b16 %v3693
  %v4037 = vunpack.c.l.b16 %v3694
  %v4038 = vunpack.c.h.b16 %v3694
  %v4039 = vunpack.c.l.b16 %v3695
  %v4040 = vunpack.c.h.b16 %v3695
  %v4041 = vunpack.c.l.b16 %v3696
  %v4042 = vunpack.c.h.b16 %v3696
  %v4043 = vunpack.c.l.b16 %v3697
  %v4044 = vunpack.c.h.b16 %v3697
  %v4045 = vunpack.c.l.b16 %v3698
  %v4046 = vunpack.c.h.b16 %v3698
  %v4047 = vunpack.c.l.b16 %v3699
  %v4048 = vunpack.c.h.b16 %v3699
  %v4049 = vunpack.c.l.b16 %v3700
  %v4050 = vunpack.c.h.b16 %v3700
  %v4051 = vunpack.c.l.b16 %v3701
  %v4052 = vunpack.c.h.b16 %v3701
  %v4053 = vunpack.c.l.b16 %v3702
  %v4054 = vunpack.c.h.b16 %v3702
  %v4055 = vunpack.c.l.b16 %v3703
  %v4056 = vunpack.c.h.b16 %v3703
  %v4057 = vunpack.c.l.b16 %v3704
  %v4058 = vunpack.c.h.b16 %v3704
  %v4059 = vunpack.c.l.b16 %v3705
  %v4060 = vunpack.c.h.b16 %v3705
  %v4061 = vunpack.c.l.b16 %v3706
  %v4062 = vunpack.c.h.b16 %v3706
  %v4063 = vunpack.c.l.b16 %v3707
  %v4064 = vunpack.c.h.b16 %v3707
  %v4065 = vunpack.c.l.b16 %v3708
  %v4066 = vunpack.c.h.b16 %v3708
  %v4067 = vunpack.c.l.b16 %v3709
  %v4068 = vunpack.c.h.b16 %v3709
  %v4069 = vunpack.c.l.b16 %v3710
  %v4070 = vunpack.c.h.b16 %v3710
  %v4071 = vunpack.c.l.b16 %v3711
  %v4072 = vunpack.c.h.b16 %v3711
  %v4073 = vunpack.c.l.b16 %v3712
  %v4074 = vunpack.c.h.b16 %v3712
  %v4075 = vunpack.c.l.b16 %v3713
  %v4076 = vunpack.c.h.b16 %v3713
  %v4077 = vunpack.c.l.b16 %v3714
  %v4078 = vunpack.c.h.b16 %v3714
  %v4079 = vunpack.c.l.b16 %v3715
  %v4080 = vunpack.c.h.b16 %v3715
  %v4081 = vunpack.c.l.b16 %v3716
  %v4082 = vunpack.c.h.b16 %v3716
  %v4083 = vunpack.c.l.b16 %v3717
  %v4084 = vunpack.c.h.b16 %v3717
  %v4085 = vunpack.c.l.b16 %v3718
  %v4086 = vunpack.c.h.b16 %v3718
  %v4087 = vunpack.c.l.b16 %v3719
  %v4088 = vunpack.c.h.b16 %v3719
  %v4089 = vunpack.c.l.b16 %v3720
  %v4090 = vunpack.c.h.b16 %v3720
  %v4091 = vunpack.c.l.b16 %v3721
  %v4092 = vunpack.c.h.b16 %v3721
  %v4093 = vunpack.c.l.b16 %v3722
  %v4094 = vunpack.c.h.b16 %v3722
  %v4095 = vunpack.c.l.b16 %v3723
  %v4096 = vunpack.c.h.b16 %v3723
  %v4097 = vunpack.c.l.b16 %v3724
  %v4098 = vunpack.c.h.b16 %v3724
  %v4099 = vunpack.c.l.b16 %v3725
  %v4100 = vunpack.c.h.b16 %v3725
  %v4101 = vunpack.c.l.b16 %v3726
  %v4102 = vunpack.c.h.b16 %v3726
  %v4103 = vunpack.c.l.b16 %v3727
  %v4104 = vunpack.c.h.b16 %v3727
  %v4105 = vunpack.c.l.b16 %v3728
  %v4106 = vunpack.c.h.b16 %v3728
  %v4107 = vunpack.c.l.b16 %v3729
  %v4108 = vunpack.c.h.b16 %v3729
  %v4109 = vunpack.c.l.b16 %v3730
  %v4110 = vunpack.c.h.b16 %v3730
  %v4111 = vunpack.c.l.b16 %v3731
  %v4112 = vunpack.c.h.b16 %v3731
  %v4113 = vunpack.c.l.b16 %v3732
  %v4114 = vunpack.c.h.b16 %v3732
  %v4115 = vunpack.c.l.b16 %v3733
  %v4116 = vunpack.c.h.b16 %v3733
  %v4117 = vunpack.c.l.b16 %v3734
  %v4118 = vunpack.c.h.b16 %v3734
  %v4119 = vunpack.c.l.b16 %v3735
  %v4120 = vunpack.c.h.b16 %v3735
  %v4121 = vunpack.c.l.b16 %v3736
  %v4122 = vunpack.c.h.b16 %v3736
  %v4123 = vunpack.c.l.b16 %v3737
  %v4124 = vunpack.c.h.b16 %v3737
  %v4125 = vunpack.c.l.b16 %v3738
  %v4126 = vunpack.c.h.b16 %v3738
  %v4127 = vunpack.c.l.b16 %v3739
  %v4128 = vunpack.c.h.b16 %v3739
  %v4129 = vunpack.c.l.b16 %v3740
  %v4130 = vunpack.c.h.b16 %v3740
  %v4131 = vunpack.c.l.b16 %v3741
  %v4132 = vunpack.c.h.b16 %v3741
  %v4133 = vunpack.c.l.b16 %v3742
  %v4134 = vunpack.c.h.b16 %v3742
  %v4135 = vunpack.c.l.b16 %v3743
  %v4136 = vunpack.c.h.b16 %v3743
  %v4137 = vunpack.c.l.b16 %v3744
  %v4138 = vunpack.c.h.b16 %v3744
  %v4139 = vunpack.c.l.b16 %v3745
  %v4140 = vunpack.c.h.b16 %v3745
  %v4141 = vpack.c.b16 %v3887, %v3885
  %v4142 = vpack.c.b16 %v3888, %v3886
  %v4143 = vpack.c.b16 %v3891, %v3889
  %v4144 = vpack.c.b16 %v3892, %v3890
  %v4145 = vpack.c.b16 %v3895, %v3893
  %v4146 = vpack.c.b16 %v3896, %v3894
  %v4147 = vpack.c.b16 %v3899, %v3897
  %v4148 = vpack.c.b16 %v3900, %v3898
  %v4149 = vpack.c.b16 %v3903, %v3901
  %v4150 = vpack.c.b16 %v3904, %v3902
  %v4151 = vpack.c.b16 %v3907, %v3905
  %v4152 = vpack.c.b16 %v3908, %v3906
  %v4153 = vpack.c.b16 %v3911, %v3909
  %v4154 = vpack.c.b16 %v3912, %v3910
  %v4155 = vpack.c.b16 %v3915, %v3913
  %v4156 = vpack.c.b16 %v3916, %v3914
  %v4157 = vpack.c.b16 %v3919, %v3917
  %v4158 = vpack.c.b16 %v3920, %v3918
  %v4159 = vpack.c.b16 %v3923, %v3921
  %v4160 = vpack.c.b16 %v3924, %v3922
  %v4161 = vpack.c.b16 %v3927, %v3925
  %v4162 = vpack.c.b16 %v3928, %v3926
  %v4163 = vpack.c.b16 %v3931, %v3929
  %v4164 = vpack.c.b16 %v3932, %v3930
  %v4165 = vpack.c.b16 %v3935, %v3933
  %v4166 = vpack.c.b16 %v3936, %v3934
  %v4167 = vpack.c.b16 %v3939, %v3937
  %v4168 = vpack.c.b16 %v3940, %v3938
  %v4169 = vpack.c.b16 %v3943, %v3941
  %v4170 = vpack.c.b16 %v3944, %v3942
  %v4171 = vpack.c.b16 %v3947, %v3945
  %v4172 = vpack.c.b16 %v3948, %v3946
  %v4173 = vpack.c.b16 %v3951, %v3949
  %v4174 = vpack.c.b16 %v3952, %v3950
  %v4175 = vpack.c.b16 %v3955, %v3953
  %v4176 = vpack.c.b16 %v3956, %v3954
  %v4177 = vpack.c.b16 %v3959, %v3957
  %v4178 = vpack.c.b16 %v3960, %v3958
  %v4179 = vpack.c.b16 %v3963, %v3961
  %v4180 = vpack.c.b16 %v3964, %v3962
  %v4181 = vpack.c.b16 %v3967, %v3965
  %v4182 = vpack.c.b16 %v3968, %v3966
  %v4183 = vpack.c.b16 %v3971, %v3969
  %v4184 = vpack.c.b16 %v3972, %v3970
  %v4185 = vpack.c.b16 %v3975, %v3973
  %v4186 = vpack.c.b16 %v3976, %v3974
  %v4187 = vpack.c.b16 %v3979, %v3977
  %v4188 = vpack.c.b16 %v3980, %v3978
  %v4189 = vpack.c.b16 %v3983, %v3981
  %v4190 = vpack.c.b16 %v3984, %v3982
  %v4191 = vpack.c.b16 %v3987, %v3985
  %v4192 = vpack.c.b16 %v3988, %v3986
  %v4193 = vpack.c.b16 %v3991, %v3989
  %v4194 = vpack.c.b16 %v3992, %v3990
  %v4195 = vpack.c.b16 %v3995, %v3993
  %v4196 = vpack.c.b16 %v3996, %v3994
  %v4197 = vpack.c.b16 %v3999, %v3997
  %v4198 = vpack.c.b16 %v4000, %v3998
  %v4199 = vpack.c.b16 %v4003, %v4001
  %v4200 = vpack.c.b16 %v4004, %v4002
  %v4201 = vpack.c.b16 %v4007, %v4005
  %v4202 = vpack.c.b16 %v4008, %v4006
  %v4203 = vpack.c.b16 %v4011, %v4009
  %v4204 = vpack.c.b16 %v4012, %v4010
  %v4205 = vpack.c.b16 %v4015, %v4013
  %v4206 = vpack.c.b16 %v4016, %v4014
  %v4207 = vpack.c.b16 %v4019, %v4017
  %v4208 = vpack.c.b16 %v4020, %v4018
  %v4209 = vpack.c.b16 %v4023, %v4021
  %v4210 = vpack.c.b16 %v4024, %v4022
  %v4211 = vpack.c.b16 %v4027, %v4025
  %v4212 = vpack.c.b16 %v4028, %v4026
  %v4213 = vpack.c.b16 %v4031, %v4029
  %v4214 = vpack.c.b16 %v4032, %v4030
  %v4215 = vpack.c.b16 %v4035, %v4033
  %v4216 = vpack.c.b16 %v4036, %v4034
  %v4217 = vpack.c.b16 %v4039, %v4037
  %v4218 = vpack.c.b16 %v4040, %v4038
  %v4219 = vpack.c.b16 %v4043, %v4041
  %v4220 = vpack.c.b16 %v4044, %v4042
  %v4221 = vpack.c.b16 %v4047, %v4045
  %v4222 = vpack.c.b16 %v4048, %v4046
  %v4223 = vpack.c.b16 %v4051, %v4049
  %v4224 = vpack.c.b16 %v4052, %v4050
  %v4225 = vpack.c.b16 %v4055, %v4053
  %v4226 = vpack.c.b16 %v4056, %v4054
  %v4227 = vpack.c.b16 %v4059, %v4057
  %v4228 = vpack.c.b16 %v4060, %v4058
  %v4229 = vpack.c.b16 %v4063, %v4061
  %v4230 = vpack.c.b16 %v4064, %v4062
  %v4231 = vpack.c.b16 %v4067, %v4065
  %v4232 = vpack.c.b16 %v4068, %v4066
  %v4233 = vpack.c.b16 %v4071, %v4069
  %v4234 = vpack.c.b16 %v4072, %v4070
  %v4235 = vpack.c.b16 %v4075, %v4073
  %v4236 = vpack.c.b16 %v4076, %v4074
  %v4237 = vpack.c.b16 %v4079, %v4077
  %v4238 = vpack.c.b16 %v4080, %v4078
  %v4239 = vpack.c.b16 %v4083, %v4081
  %v4240 = vpack.c.b16 %v4084, %v4082
  %v4241 = vpack.c.b16 %v4087, %v4085
  %v4242 = vpack.c.b16 %v4088, %v4086
  %v4243 = vpack.c.b16 %v4091, %v4089
  %v4244 = vpack.c.b16 %v4092, %v4090
  %v4245 = vpack.c.b16 %v4095, %v4093
  %v4246 = vpack.c.b16 %v4096, %v4094
  %v4247 = vpack.c.b16 %v4099, %v4097
  %v4248 = vpack.c.b16 %v4100, %v4098
  %v4249 = vpack.c.b16 %v4103, %v4101
  %v4250 = vpack.c.b16 %v4104, %v4102
  %v4251 = vpack.c.b16 %v4107, %v4105
  %v4252 = vpack.c.b16 %v4108, %v4106
  %v4253 = vpack.c.b16 %v4111, %v4109
  %v4254 = vpack.c.b16 %v4112, %v4110
  %v4255 = vpack.c.b16 %v4115, %v4113
  %v4256 = vpack.c.b16 %v4116, %v4114
  %v4257 = vpack.c.b16 %v4119, %v4117
  %v4258 = vpack.c.b16 %v4120, %v4118
  %v4259 = vpack.c.b16 %v4123, %v4121
  %v4260 = vpack.c.b16 %v4124, %v4122
  %v4261 = vpack.c.b16 %v4127, %v4125
  %v4262 = vpack.c.b16 %v4128, %v4126
  %v4263 = vpack.c.b16 %v4131, %v4129
  %v4264 = vpack.c.b16 %v4132, %v4130
  %v4265 = vpack.c.b16 %v4135, %v4133
  %v4266 = vpack.c.b16 %v4136, %v4134
  %v4267 = vpack.c.b16 %v4139, %v4137
  %v4268 = vpack.c.b16 %v4140, %v4138
  %4397 = vmatprep.subr.bf16.mxu0 %v4142
  %4398 = vmatpush1.bf16.msra.mxu0 %v4141
  %4399 = vmatprep.subr.bf16.mxu0 %v4144
  %4400 = vmatpush1.bf16.msra.mxu0 %v4143
  %4401 = vmatprep.subr.bf16.mxu0 %v4146
  %4402 = vmatpush1.bf16.msra.mxu0 %v4145
  %4403 = vmatprep.subr.bf16.mxu0 %v4148
  %4404 = vmatpush1.bf16.msra.mxu0 %v4147
  %4405 = vmatprep.subr.bf16.mxu0 %v4150
  %4406 = vmatpush1.bf16.msra.mxu0 %v4149
  %4407 = vmatprep.subr.bf16.mxu0 %v4152
  %4408 = vmatpush1.bf16.msra.mxu0 %v4151
  %4409 = vmatprep.subr.bf16.mxu0 %v4154
  %4410 = vmatpush1.bf16.msra.mxu0 %v4153
  %4411 = vmatprep.subr.bf16.mxu0 %v4156
  %4412 = vmatpush1.bf16.msra.mxu0 %v4155
  %4413 = vmatprep.subr.bf16.mxu0 %v4158
  %4414 = vmatpush1.bf16.msra.mxu0 %v4157
  %4415 = vmatprep.subr.bf16.mxu0 %v4160
  %4416 = vmatpush1.bf16.msra.mxu0 %v4159
  %4417 = vmatprep.subr.bf16.mxu0 %v4162
  %4418 = vmatpush1.bf16.msra.mxu0 %v4161
  %4419 = vmatprep.subr.bf16.mxu0 %v4164
  %4420 = vmatpush1.bf16.msra.mxu0 %v4163
  %4421 = vmatprep.subr.bf16.mxu0 %v4166
  %4422 = vmatpush1.bf16.msra.mxu0 %v4165
  %4423 = vmatprep.subr.bf16.mxu0 %v4168
  %4424 = vmatpush1.bf16.msra.mxu0 %v4167
  %4425 = vmatprep.subr.bf16.mxu0 %v4170
  %4426 = vmatpush1.bf16.msra.mxu0 %v4169
  %4427 = vmatprep.subr.bf16.mxu0 %v4172
  %4428 = vmatpush1.bf16.msra.mxu0 %v4171
  %4429 = vmatprep.mubr.bf16.mxu0 %v3611
  %4430 = vmatmul.mubr.bf16.gmra.mrb[0].mxu0 %v3610
  %v4431 = vpop.f32.mrb[0].mxu0
  %v4432 = vadd.f32 %v3750, %v4431
  %v4433 = vpop.f32.mrb[0].mxu0
  %v4434 = vadd.f32 %v3754, %v4433
  %v4435 = vpop.f32.mrb[0].mxu0
  %v4436 = vpop.f32.mrb[0].mxu0
  %4437 = vdwg.mxu0
  %4438 = vmatprep.subr.bf16.mxu0 %v4174
  %4439 = vmatpush1.bf16.msra.mxu0 %v4173
  %4440 = vmatprep.subr.bf16.mxu0 %v4176
  %4441 = vmatpush1.bf16.msra.mxu0 %v4175
  %4442 = vmatprep.subr.bf16.mxu0 %v4178
  %4443 = vmatpush1.bf16.msra.mxu0 %v4177
  %4444 = vmatprep.subr.bf16.mxu0 %v4180
  %4445 = vmatpush1.bf16.msra.mxu0 %v4179
  %4446 = vmatprep.subr.bf16.mxu0 %v4182
  %4447 = vmatpush1.bf16.msra.mxu0 %v4181
  %4448 = vmatprep.subr.bf16.mxu0 %v4184
  %4449 = vmatpush1.bf16.msra.mxu0 %v4183
  %4450 = vmatprep.subr.bf16.mxu0 %v4186
  %4451 = vmatpush1.bf16.msra.mxu0 %v4185
  %4452 = vmatprep.subr.bf16.mxu0 %v4188
  %4453 = vmatpush1.bf16.msra.mxu0 %v4187
  %4454 = vmatprep.subr.bf16.mxu0 %v4190
  %4455 = vmatpush1.bf16.msra.mxu0 %v4189
  %4456 = vmatprep.subr.bf16.mxu0 %v4192
  %4457 = vmatpush1.bf16.msra.mxu0 %v4191
  %4458 = vmatprep.subr.bf16.mxu0 %v4194
  %4459 = vmatpush1.bf16.msra.mxu0 %v4193
  %4460 = vmatprep.subr.bf16.mxu0 %v4196
  %4461 = vmatpush1.bf16.msra.mxu0 %v4195
  %4462 = vmatprep.subr.bf16.mxu0 %v4198
  %4463 = vmatpush1.bf16.msra.mxu0 %v4197
  %4464 = vmatprep.subr.bf16.mxu0 %v4200
  %4465 = vmatpush1.bf16.msra.mxu0 %v4199
  %4466 = vmatprep.subr.bf16.mxu0 %v4202
  %4467 = vmatpush1.bf16.msra.mxu0 %v4201
  %4468 = vmatprep.subr.bf16.mxu0 %v4204
  %4469 = vmatpush1.bf16.msra.mxu0 %v4203
  %4470 = vmatprep.mubr.bf16.mxu0 %v3613
  %4471 = vmatmul.mubr.bf16.gmra.mrb[0].mxu0 %v3612
  %v4472 = vpop.f32.mrb[0].mxu0
  %v4473 = vadd.f32 %v4432, %v4472
  %v4474 = vpop.f32.mrb[0].mxu0
  %v4475 = vadd.f32 %v4434, %v4474
  %v4476 = vpop.f32.mrb[0].mxu0
  %v4477 = vpop.f32.mrb[0].mxu0
  %4478 = vdwg.mxu0
  %4479 = vmatprep.subr.bf16.mxu0 %v4206
  %4480 = vmatpush1.bf16.msra.mxu0 %v4205
  %4481 = vmatprep.subr.bf16.mxu0 %v4208
  %4482 = vmatpush1.bf16.msra.mxu0 %v4207
  %4483 = vmatprep.subr.bf16.mxu0 %v4210
  %4484 = vmatpush1.bf16.msra.mxu0 %v4209
  %4485 = vmatprep.subr.bf16.mxu0 %v4212
  %4486 = vmatpush1.bf16.msra.mxu0 %v4211
  %4487 = vmatprep.subr.bf16.mxu0 %v4214
  %4488 = vmatpush1.bf16.msra.mxu0 %v4213
  %4489 = vmatprep.subr.bf16.mxu0 %v4216
  %4490 = vmatpush1.bf16.msra.mxu0 %v4215
  %4491 = vmatprep.subr.bf16.mxu0 %v4218
  %4492 = vmatpush1.bf16.msra.mxu0 %v4217
  %4493 = vmatprep.subr.bf16.mxu0 %v4220
  %4494 = vmatpush1.bf16.msra.mxu0 %v4219
  %4495 = vmatprep.subr.bf16.mxu0 %v4222
  %4496 = vmatpush1.bf16.msra.mxu0 %v4221
  %4497 = vmatprep.subr.bf16.mxu0 %v4224
  %4498 = vmatpush1.bf16.msra.mxu0 %v4223
  %4499 = vmatprep.subr.bf16.mxu0 %v4226
  %4500 = vmatpush1.bf16.msra.mxu0 %v4225
  %4501 = vmatprep.subr.bf16.mxu0 %v4228
  %4502 = vmatpush1.bf16.msra.mxu0 %v4227
  %4503 = vmatprep.subr.bf16.mxu0 %v4230
  %4504 = vmatpush1.bf16.msra.mxu0 %v4229
  %4505 = vmatprep.subr.bf16.mxu0 %v4232
  %4506 = vmatpush1.bf16.msra.mxu0 %v4231
  %4507 = vmatprep.subr.bf16.mxu0 %v4234
  %4508 = vmatpush1.bf16.msra.mxu0 %v4233
  %4509 = vmatprep.subr.bf16.mxu0 %v4236
  %4510 = vmatpush1.bf16.msra.mxu0 %v4235
  %4511 = vmatprep.mubr.bf16.mxu0 %v3615
  %4512 = vmatmul.mubr.bf16.gmra.mrb[0].mxu0 %v3614
  %v4513 = vpop.f32.mrb[0].mxu0
  %v4514 = vadd.f32 %v4473, %v4513
  %v4515 = vpop.f32.mrb[0].mxu0
  %v4516 = vadd.f32 %v4475, %v4515
  %v4517 = vpop.f32.mrb[0].mxu0
  %v4518 = vpop.f32.mrb[0].mxu0
  %4519 = vdwg.mxu0
  %4520 = vmatprep.subr.bf16.mxu0 %v4238
  %4521 = vmatpush1.bf16.msra.mxu0 %v4237
  %4522 = vmatprep.subr.bf16.mxu0 %v4240
  %4523 = vmatpush1.bf16.msra.mxu0 %v4239
  %4524 = vmatprep.subr.bf16.mxu0 %v4242
  %4525 = vmatpush1.bf16.msra.mxu0 %v4241
  %4526 = vmatprep.subr.bf16.mxu0 %v4244
  %4527 = vmatpush1.bf16.msra.mxu0 %v4243
  %4528 = vmatprep.subr.bf16.mxu0 %v4246
  %4529 = vmatpush1.bf16.msra.mxu0 %v4245
  %4530 = vmatprep.subr.bf16.mxu0 %v4248
  %4531 = vmatpush1.bf16.msra.mxu0 %v4247
  %4532 = vmatprep.subr.bf16.mxu0 %v4250
  %4533 = vmatpush1.bf16.msra.mxu0 %v4249
  %4534 = vmatprep.subr.bf16.mxu0 %v4252
  %4535 = vmatpush1.bf16.msra.mxu0 %v4251
  %4536 = vmatprep.subr.bf16.mxu0 %v4254
  %4537 = vmatpush1.bf16.msra.mxu0 %v4253
  %4538 = vmatprep.subr.bf16.mxu0 %v4256
  %4539 = vmatpush1.bf16.msra.mxu0 %v4255
  %4540 = vmatprep.subr.bf16.mxu0 %v4258
  %4541 = vmatpush1.bf16.msra.mxu0 %v4257
  %4542 = vmatprep.subr.bf16.mxu0 %v4260
  %4543 = vmatpush1.bf16.msra.mxu0 %v4259
  %4544 = vmatprep.subr.bf16.mxu0 %v4262
  %4545 = vmatpush1.bf16.msra.mxu0 %v4261
  %4546 = vmatprep.subr.bf16.mxu0 %v4264
  %4547 = vmatpush1.bf16.msra.mxu0 %v4263
  %4548 = vmatprep.subr.bf16.mxu0 %v4266
  %4549 = vmatpush1.bf16.msra.mxu0 %v4265
  %4550 = vmatprep.subr.bf16.mxu0 %v4268
  %4551 = vmatpush1.bf16.msra.mxu0 %v4267
  %4552 = vmatprep.mubr.bf16.mxu0 %v3617
  %4553 = vmatmul.mubr.bf16.gmra.mrb[0].mxu0 %v3616
  %v4554 = vpop.f32.mrb[0].mxu0
  %v4555 = vadd.f32 %v4514, %v4554
  %v4556 = vpop.f32.mrb[0].mxu0
  %v4557 = vadd.f32 %v4516, %v4556
  %v4558 = vpop.f32.mrb[0].mxu0
  %v4559 = vpop.f32.mrb[0].mxu0
  %4560 = vdwg.mxu0
  %v4561 = vmax.f32 %v4555, 0.0
  %v4562 = vmax.f32 %v4557, 0.0
  %v4563 = vld [vmem:[%s3 + $0xb] sm:$0x1]
  %v4564 = vpack.c.bf16 %v4561, %v4561
  %v4565 = vpack.c.bf16 %v4562, %v4562
  %v4566 = vld [vmem:[%s6] sm:$0xf]
  %v4567 = vld [vmem:[%s6 + $0x4] sm:$0xf]
  %v4568 = vld [vmem:[%s6 + $0x8] sm:$0xf]
  %v4569 = vld [vmem:[%s6 + $0xc] sm:$0xf]
  %v4570 = vld [vmem:[%s6 + $0x10] sm:$0xf]
  %v4571 = vld [vmem:[%s6 + $0x14] sm:$0xf]
  %v4572 = vld [vmem:[%s6 + $0x18] sm:$0xf]
  %v4573 = vld [vmem:[%s6 + $0x1c] sm:$0xf]
  %v4574 = vld [vmem:[%s6 + $0x20] sm:$0xf]
  %v4575 = vld [vmem:[%s6 + $0x24] sm:$0xf]
  %v4576 = vld [vmem:[%s6 + $0x28] sm:$0xf]
  %v4577 = vld [vmem:[%s6 + $0x2c] sm:$0xf]
  %v4578 = vld [vmem:[%s6 + $0x30] sm:$0xf]
  %v4579 = vld [vmem:[%s6 + $0x34] sm:$0xf]
  %v4580 = vld [vmem:[%s6 + $0x38] sm:$0xf]
  %v4581 = vld [vmem:[%s6 + $0x3c] sm:$0xf]
  %v4582 = vld [vmem:[%s6 + $0x40] sm:$0xf]
  %v4583 = vld [vmem:[%s6 + $0x44] sm:$0xf]
  %v4584 = vld [vmem:[%s6 + $0x48] sm:$0xf]
  %v4585 = vld [vmem:[%s6 + $0x4c] sm:$0xf]
  %v4586 = vld [vmem:[%s6 + $0x50] sm:$0xf]
  %v4587 = vld [vmem:[%s6 + $0x54] sm:$0xf]
  %v4588 = vld [vmem:[%s6 + $0x58] sm:$0xf]
  %v4589 = vld [vmem:[%s6 + $0x5c] sm:$0xf]
  %v4590 = vld [vmem:[%s6 + $0x60] sm:$0xf]
  %v4591 = vld [vmem:[%s6 + $0x64] sm:$0xf]
  %v4592 = vld [vmem:[%s6 + $0x68] sm:$0xf]
  %v4593 = vld [vmem:[%s6 + $0x6c] sm:$0xf]
  %v4594 = vld [vmem:[%s6 + $0x70] sm:$0xf]
  %v4595 = vld [vmem:[%s6 + $0x74] sm:$0xf]
  %v4596 = vld [vmem:[%s6 + $0x78] sm:$0xf]
  %v4597 = vld [vmem:[%s6 + $0x7c] sm:$0xf]
  %v4599 = vlaneseq
  %v4600 = vshrl.u32 %v4599, 7
  %v4601 = vsub.s32 0, %v4600
  %v4602 = vrot.slane %v4563, %v4601
  %v4636 = vunpack.c.l.b16 %v4566
  %v4637 = vunpack.c.l.b16 %v4567
  %v4638 = vunpack.c.l.b16 %v4568
  %v4639 = vunpack.c.l.b16 %v4569
  %v4640 = vunpack.c.l.b16 %v4570
  %v4641 = vunpack.c.l.b16 %v4571
  %v4642 = vunpack.c.l.b16 %v4572
  %v4643 = vunpack.c.l.b16 %v4573
  %v4644 = vunpack.c.l.b16 %v4574
  %v4645 = vunpack.c.l.b16 %v4575
  %v4646 = vunpack.c.l.b16 %v4576
  %v4647 = vunpack.c.l.b16 %v4577
  %v4648 = vunpack.c.l.b16 %v4578
  %v4649 = vunpack.c.l.b16 %v4579
  %v4650 = vunpack.c.l.b16 %v4580
  %v4651 = vunpack.c.l.b16 %v4581
  %v4652 = vunpack.c.l.b16 %v4582
  %v4653 = vunpack.c.l.b16 %v4583
  %v4654 = vunpack.c.l.b16 %v4584
  %v4655 = vunpack.c.l.b16 %v4585
  %v4656 = vunpack.c.l.b16 %v4586
  %v4657 = vunpack.c.l.b16 %v4587
  %v4658 = vunpack.c.l.b16 %v4588
  %v4659 = vunpack.c.l.b16 %v4589
  %v4660 = vunpack.c.l.b16 %v4590
  %v4661 = vunpack.c.l.b16 %v4591
  %v4662 = vunpack.c.l.b16 %v4592
  %v4663 = vunpack.c.l.b16 %v4593
  %v4664 = vunpack.c.l.b16 %v4594
  %v4665 = vunpack.c.l.b16 %v4595
  %v4666 = vunpack.c.l.b16 %v4596
  %v4667 = vunpack.c.l.b16 %v4597
  %v4668 = vpack.c.b16 %v4637, %v4636
  %v4669 = vpack.c.b16 %v4639, %v4638
  %v4670 = vpack.c.b16 %v4641, %v4640
  %v4671 = vpack.c.b16 %v4643, %v4642
  %v4672 = vpack.c.b16 %v4645, %v4644
  %v4673 = vpack.c.b16 %v4647, %v4646
  %v4674 = vpack.c.b16 %v4649, %v4648
  %v4675 = vpack.c.b16 %v4651, %v4650
  %v4676 = vpack.c.b16 %v4653, %v4652
  %v4677 = vpack.c.b16 %v4655, %v4654
  %v4678 = vpack.c.b16 %v4657, %v4656
  %v4679 = vpack.c.b16 %v4659, %v4658
  %v4680 = vpack.c.b16 %v4661, %v4660
  %v4681 = vpack.c.b16 %v4663, %v4662
  %v4682 = vpack.c.b16 %v4665, %v4664
  %v4683 = vpack.c.b16 %v4667, %v4666
  %4700 = vmatprep.subr.bf16.mxu0 0
  %4701 = vmatpush1.bf16.msra.mxu0 %v4668
  %4702 = vmatprep.subr.bf16.mxu0 0
  %4703 = vmatpush1.bf16.msra.mxu0 %v4669
  %4704 = vmatprep.subr.bf16.mxu0 0
  %4705 = vmatpush1.bf16.msra.mxu0 %v4670
  %4706 = vmatprep.subr.bf16.mxu0 0
  %4707 = vmatpush1.bf16.msra.mxu0 %v4671
  %4708 = vmatprep.subr.bf16.mxu0 0
  %4709 = vmatpush1.bf16.msra.mxu0 %v4672
  %4710 = vmatprep.subr.bf16.mxu0 0
  %4711 = vmatpush1.bf16.msra.mxu0 %v4673
  %4712 = vmatprep.subr.bf16.mxu0 0
  %4713 = vmatpush1.bf16.msra.mxu0 %v4674
  %4714 = vmatprep.subr.bf16.mxu0 0
  %4715 = vmatpush1.bf16.msra.mxu0 %v4675
  %4716 = vmatprep.subr.bf16.mxu0 0
  %4717 = vmatpush1.bf16.msra.mxu0 %v4676
  %4718 = vmatprep.subr.bf16.mxu0 0
  %4719 = vmatpush1.bf16.msra.mxu0 %v4677
  %4720 = vmatprep.subr.bf16.mxu0 0
  %4721 = vmatpush1.bf16.msra.mxu0 %v4678
  %4722 = vmatprep.subr.bf16.mxu0 0
  %4723 = vmatpush1.bf16.msra.mxu0 %v4679
  %4724 = vmatprep.subr.bf16.mxu0 0
  %4725 = vmatpush1.bf16.msra.mxu0 %v4680
  %4726 = vmatprep.subr.bf16.mxu0 0
  %4727 = vmatpush1.bf16.msra.mxu0 %v4681
  %4728 = vmatprep.subr.bf16.mxu0 0
  %4729 = vmatpush1.bf16.msra.mxu0 %v4682
  %4730 = vmatprep.subr.bf16.mxu0 0
  %4731 = vmatpush1.bf16.msra.mxu0 %v4683
  %4732 = vmatprep.mubr.bf16.mxu0 %v4565
  %4733 = vmatmul.mubr.bf16.gmra.mrb[0].mxu0 %v4564
  %v4734 = vpop.f32.mrb[0].mxu0
  %v4735 = vadd.f32 %v4602, %v4734
  %v4736 = vpop.f32.mrb[0].mxu0
  %v4737 = vpop.f32.mrb[0].mxu0
  %v4738 = vpop.f32.mrb[0].mxu0
  %4739 = vdwg.mxu0
  %v4740 = vmax.f32 %v4735, 0.0
  %v4741 = vld [vmem:[%s3 + $0xc] sm:$0x1]
  %v4742 = vpack.c.bf16 %v4740, %v4740
  %v4743 = vld [vmem:[%s7] sm:$0xf]
  %v4744 = vld [vmem:[%s7 + $0x4] sm:$0xf]
  %v4745 = vld [vmem:[%s7 + $0x8] sm:$0xf]
  %v4746 = vld [vmem:[%s7 + $0xc] sm:$0xf]
  %v4747 = vld [vmem:[%s7 + $0x10] sm:$0xf]
  %v4748 = vld [vmem:[%s7 + $0x14] sm:$0xf]
  %v4749 = vld [vmem:[%s7 + $0x18] sm:$0xf]
  %v4750 = vld [vmem:[%s7 + $0x1c] sm:$0xf]
  %v4751 = vld [vmem:[%s7 + $0x20] sm:$0xf]
  %v4752 = vld [vmem:[%s7 + $0x24] sm:$0xf]
  %v4753 = vld [vmem:[%s7 + $0x28] sm:$0xf]
  %v4754 = vld [vmem:[%s7 + $0x2c] sm:$0xf]
  %v4755 = vld [vmem:[%s7 + $0x30] sm:$0xf]
  %v4756 = vld [vmem:[%s7 + $0x34] sm:$0xf]
  %v4757 = vld [vmem:[%s7 + $0x38] sm:$0xf]
  %v4758 = vld [vmem:[%s7 + $0x3c] sm:$0xf]
  %v4760 = vlaneseq
  %v4761 = vshrl.u32 %v4760, 7
  %v4762 = vsub.s32 0, %v4761
  %v4763 = vrot.slane %v4741, %v4762
  %v4781 = vunpack.c.l.b16 %v4743
  %v4782 = vunpack.c.l.b16 %v4744
  %v4783 = vunpack.c.l.b16 %v4745
  %v4784 = vunpack.c.l.b16 %v4746
  %v4785 = vunpack.c.l.b16 %v4747
  %v4786 = vunpack.c.l.b16 %v4748
  %v4787 = vunpack.c.l.b16 %v4749
  %v4788 = vunpack.c.l.b16 %v4750
  %v4789 = vunpack.c.l.b16 %v4751
  %v4790 = vunpack.c.l.b16 %v4752
  %v4791 = vunpack.c.l.b16 %v4753
  %v4792 = vunpack.c.l.b16 %v4754
  %v4793 = vunpack.c.l.b16 %v4755
  %v4794 = vunpack.c.l.b16 %v4756
  %v4795 = vunpack.c.l.b16 %v4757
  %v4796 = vunpack.c.l.b16 %v4758
  %v4797 = vpack.c.b16 %v4782, %v4781
  %v4798 = vpack.c.b16 %v4784, %v4783
  %v4799 = vpack.c.b16 %v4786, %v4785
  %v4800 = vpack.c.b16 %v4788, %v4787
  %v4801 = vpack.c.b16 %v4790, %v4789
  %v4802 = vpack.c.b16 %v4792, %v4791
  %v4803 = vpack.c.b16 %v4794, %v4793
  %v4804 = vpack.c.b16 %v4796, %v4795
  %4813 = vmatprep.subr.bf16.mxu0 0
  %4814 = vmatpush1.bf16.msra.mxu0 %v4797
  %4815 = vmatprep.subr.bf16.mxu0 0
  %4816 = vmatpush1.bf16.msra.mxu0 %v4798
  %4817 = vmatprep.subr.bf16.mxu0 0
  %4818 = vmatpush1.bf16.msra.mxu0 %v4799
  %4819 = vmatprep.subr.bf16.mxu0 0
  %4820 = vmatpush1.bf16.msra.mxu0 %v4800
  %4821 = vmatprep.subr.bf16.mxu0 0
  %4822 = vmatpush1.bf16.msra.mxu0 %v4801
  %4823 = vmatprep.subr.bf16.mxu0 0
  %4824 = vmatpush1.bf16.msra.mxu0 %v4802
  %4825 = vmatprep.subr.bf16.mxu0 0
  %4826 = vmatpush1.bf16.msra.mxu0 %v4803
  %4827 = vmatprep.subr.bf16.mxu0 0
  %4828 = vmatpush1.bf16.msra.mxu0 %v4804
  %4829 = vmatprep.subr.bf16.mxu0 0
  %4830 = vmatpush1.bf16.msra.mxu0 0
  %4831 = vmatprep.subr.bf16.mxu0 0
  %4832 = vmatpush1.bf16.msra.mxu0 0
  %4833 = vmatprep.subr.bf16.mxu0 0
  %4834 = vmatpush1.bf16.msra.mxu0 0
  %4835 = vmatprep.subr.bf16.mxu0 0
  %4836 = vmatpush1.bf16.msra.mxu0 0
  %4837 = vmatprep.subr.bf16.mxu0 0
  %4838 = vmatpush1.bf16.msra.mxu0 0
  %4839 = vmatprep.subr.bf16.mxu0 0
  %4840 = vmatpush1.bf16.msra.mxu0 0
  %4841 = vmatprep.subr.bf16.mxu0 0
  %4842 = vmatpush1.bf16.msra.mxu0 0
  %4843 = vmatprep.subr.bf16.mxu0 0
  %4844 = vmatpush1.bf16.msra.mxu0 0
  %4845 = vmatprep.mubr.bf16.mxu0 0
  %4846 = vmatmul.mubr.bf16.gmra.mrb[0].mxu0 %v4742
  %v4847 = vpop.f32.mrb[0].mxu0
  %v4848 = vadd.f32 %v4763, %v4847
  %v4849 = vpop.f32.mrb[0].mxu0
  %v4850 = vpop.f32.mrb[0].mxu0
  %v4851 = vpop.f32.mrb[0].mxu0
  %4852 = vdwg.mxu0
  %v4853 = vmax.f32 %v4848, 0.0
  %v4854 = vld [vmem:[%s3 + $0xd] sm:$0x1]
  %v4855 = vpack.c.bf16 %v4853, %v4853
  %v4856 = vld [vmem:[%s8] sm:$0xf]
  %v4857 = vld [vmem:[%s8 + $0x4] sm:$0xf]
  %v4858 = vld [vmem:[%s8 + $0x8] sm:$0xf]
  %v4859 = vld [vmem:[%s8 + $0xc] sm:$0xf]
  %v4860 = vld [vmem:[%s8 + $0x10] sm:$0xf]
  %v4861 = vld [vmem:[%s8 + $0x14] sm:$0xf]
  %v4862 = vld [vmem:[%s8 + $0x18] sm:$0xf]
  %v4863 = vld [vmem:[%s8 + $0x1c] sm:$0xf]
  %v4864 = vld [vmem:[%s8 + $0x20] sm:$0xf]
  %v4865 = vld [vmem:[%s8 + $0x24] sm:$0xf]
  %v4866 = vld [vmem:[%s8 + $0x28] sm:$0xf]
  %v4867 = vld [vmem:[%s8 + $0x2c] sm:$0xf]
  %v4868 = vld [vmem:[%s8 + $0x30] sm:$0xf]
  %v4869 = vld [vmem:[%s8 + $0x34] sm:$0xf]
  %v4870 = vld [vmem:[%s8 + $0x38] sm:$0xf]
  %v4871 = vld [vmem:[%s8 + $0x3c] sm:$0xf]
  %v4873 = vlaneseq
  %v4874 = vshrl.u32 %v4873, 7
  %v4875 = vsub.s32 0, %v4874
  %v4876 = vrot.slane %v4854, %v4875
  %v4894 = vunpack.c.l.b16 %v4856
  %v4895 = vunpack.c.l.b16 %v4857
  %v4896 = vunpack.c.l.b16 %v4858
  %v4897 = vunpack.c.l.b16 %v4859
  %v4898 = vunpack.c.l.b16 %v4860
  %v4899 = vunpack.c.l.b16 %v4861
  %v4900 = vunpack.c.l.b16 %v4862
  %v4901 = vunpack.c.l.b16 %v4863
  %v4902 = vunpack.c.l.b16 %v4864
  %v4903 = vunpack.c.l.b16 %v4865
  %v4904 = vunpack.c.l.b16 %v4866
  %v4905 = vunpack.c.l.b16 %v4867
  %v4906 = vunpack.c.l.b16 %v4868
  %v4907 = vunpack.c.l.b16 %v4869
  %v4908 = vunpack.c.l.b16 %v4870
  %v4909 = vunpack.c.l.b16 %v4871
  %v4910 = vpack.c.b16 %v4895, %v4894
  %v4911 = vpack.c.b16 %v4897, %v4896
  %v4912 = vpack.c.b16 %v4899, %v4898
  %v4913 = vpack.c.b16 %v4901, %v4900
  %v4914 = vpack.c.b16 %v4903, %v4902
  %v4915 = vpack.c.b16 %v4905, %v4904
  %v4916 = vpack.c.b16 %v4907, %v4906
  %v4917 = vpack.c.b16 %v4909, %v4908
  %4926 = vmatprep.subr.bf16.mxu0 0
  %4927 = vmatpush1.bf16.msra.mxu0 %v4910
  %4928 = vmatprep.subr.bf16.mxu0 0
  %4929 = vmatpush1.bf16.msra.mxu0 %v4911
  %4930 = vmatprep.subr.bf16.mxu0 0
  %4931 = vmatpush1.bf16.msra.mxu0 %v4912
  %4932 = vmatprep.subr.bf16.mxu0 0
  %4933 = vmatpush1.bf16.msra.mxu0 %v4913
  %4934 = vmatprep.subr.bf16.mxu0 0
  %4935 = vmatpush1.bf16.msra.mxu0 %v4914
  %4936 = vmatprep.subr.bf16.mxu0 0
  %4937 = vmatpush1.bf16.msra.mxu0 %v4915
  %4938 = vmatprep.subr.bf16.mxu0 0
  %4939 = vmatpush1.bf16.msra.mxu0 %v4916
  %4940 = vmatprep.subr.bf16.mxu0 0
  %4941 = vmatpush1.bf16.msra.mxu0 %v4917
  %4942 = vmatprep.subr.bf16.mxu0 0
  %4943 = vmatpush1.bf16.msra.mxu0 0
  %4944 = vmatprep.subr.bf16.mxu0 0
  %4945 = vmatpush1.bf16.msra.mxu0 0
  %4946 = vmatprep.subr.bf16.mxu0 0
  %4947 = vmatpush1.bf16.msra.mxu0 0
  %4948 = vmatprep.subr.bf16.mxu0 0
  %4949 = vmatpush1.bf16.msra.mxu0 0
  %4950 = vmatprep.subr.bf16.mxu0 0
  %4951 = vmatpush1.bf16.msra.mxu0 0
  %4952 = vmatprep.subr.bf16.mxu0 0
  %4953 = vmatpush1.bf16.msra.mxu0 0
  %4954 = vmatprep.subr.bf16.mxu0 0
  %4955 = vmatpush1.bf16.msra.mxu0 0
  %4956 = vmatprep.subr.bf16.mxu0 0
  %4957 = vmatpush1.bf16.msra.mxu0 0
  %4958 = vmatprep.mubr.bf16.mxu0 0
  %4959 = vmatmul.mubr.bf16.gmra.mrb[0].mxu0 %v4855
  %v4960 = vpop.f32.mrb[0].mxu0
  %v4961 = vadd.f32 %v4876, %v4960
  %v4962 = vpop.f32.mrb[0].mxu0
  %v4963 = vpop.f32.mrb[0].mxu0
  %v4964 = vpop.f32.mrb[0].mxu0
  %4965 = vdwg.mxu0
  %v4966 = vmax.f32 %v4961, 0.0
  %4967 = vst [vmem:[%s9] sm:$0xff] %v4966
  // Predicated region
  $region38: #{petnet_forward.1} parent=0 // pred_check
    _
  $region39: #{petnet_forward.1} parent=0 // pred_check_branch
    %4969 = sbr.rel (0) target = $region41
  $region40: #{petnet_forward.1} parent=0 // pred_region
    _
  $region41: #{petnet_forward.1} parent=0 // pred_fallthru
    _
  // Predicated region
  $region42: #{petnet_forward.1} parent=0 // pred_check
    _
  $region43: #{petnet_forward.1} parent=0 // pred_check_branch
    %4971 = sbr.rel (0) target = $region45
  $region44: #{petnet_forward.1} parent=0 // pred_region
    _
  $region45: #{petnet_forward.1} parent=0 // pred_fallthru
    _

</llo_original>
